<compile_context>
chip_gen: v6e
topology: v6e:2x2x1
jax: 0.10.0
libtpu: 0.0.40
codegen_flags: <defaults>
</compile_context>

<pallas_src>
import jax
import jax.numpy as jnp
from jax.experimental import pallas as pl
from jax.experimental.pallas import tpu as pltpu


_VMEM = pl.BlockSpec(memory_space=pltpu.MemorySpace.VMEM)
_CHUNK_T = 32   # timesteps per input-projection chunk (look-ahead granularity)


def _vmem_limit_bytes():
    """85% of physical VMEM, capped at 100 MiB (headroom for compiler scratch)."""
    cap = 64 * 1024 * 1024
    try:
        info = pltpu.get_tpu_info()
        cap = int(getattr(info, "vmem_capacity_bytes", cap))
    except Exception:
        pass
    return min(int(cap * 0.85), 100 * 1024 * 1024)


# ----------------------------------------------------------------------------
# Fused kernel: 2-layer bi-LSTM + FC head
# ----------------------------------------------------------------------------
def _fused_model_kernel(
    x_ref,                                   # (T, Bp, Din)  matmul dtype
    wih0f_ref, wih0b_ref,                    # (Din, 4H)     layer-0 input weights
    whh0f_ref, whh0b_ref,                    # (H, 4H)       layer-0 recurrent weights
    b0f_ref, b0b_ref,                        # (1, 4H)       layer-0 biases (b_ih + b_hh)
    wih1f_ref, wih1b_ref,                    # (2H, 4H)      layer-1 input weights (fused)
    whh1f_ref, whh1b_ref,                    # (H, 4H)       layer-1 recurrent weights
    b1f_ref, b1b_ref,                        # (1, 4H)
    wfc1f_ref, wfc1b_ref,                    # (H, H)        fc1 weight split (fwd/bwd halves)
    bfc1_ref,                                # (1, H)
    wfc2_ref,                                # (H, out)
    bfc2_ref,                                # (1, out)
    out_ref,                                 # (Bp, out) f32
    gxf_scr, gxb_scr,                        # (T, Bp, 4H) f32  input projections (+bias)
    seq_scr,                                 # (T, Bp, 2H) f32  merged layer-0 outputs
):
    T, Bp, _ = x_ref.shape
    H = whh0f_ref.shape[0]
    md = whh0f_ref.dtype      # matmul compute dtype; accumulation/state always f32

    C = min(T, _CHUNK_T)
    chunks = [(s, min(s + C, T)) for s in range(0, T, C)]
    n_chunks = len(chunks)

    # PyTorch gate order (i, f, g, o). One full-vreg sigmoid + one partial tanh.
    def cell(gates, c):
        sg = jax.nn.sigmoid(gates)                       # i, f, (unused), o
        g_g = jnp.tanh(gates[:, 2 * H:3 * H])
        c_new = sg[:, H:2 * H] * c + sg[:, 0:H] * g_g
        h_new = sg[:, 3 * H:4 * H] * jnp.tanh(c_new)
        return h_new, c_new

    def project(src_ref, wf_ref, wb_ref, bf_ref, bb_ref, lo, hi):
        """Input projection (+bias) for fwd times [lo,hi) and bwd times [T-hi,T-lo)."""
        n = hi - lo
        K = src_ref.shape[-1]
        xf = src_ref[lo:hi].reshape(n * Bp, K).astype(md)
        gxf_scr[lo:hi] = (
            jnp.dot(xf, wf_ref[...], preferred_element_type=jnp.float32)
            + bf_ref[...]).reshape(n, Bp, 4 * H)
        blo, bhi = T - hi, T - lo
        xb = src_ref[blo:bhi].reshape(n * Bp, K).astype(md)
        gxb_scr[blo:bhi] = (
            jnp.dot(xb, wb_ref[...], preferred_element_type=jnp.float32)
            + bb_ref[...]).reshape(n, Bp, 4 * H)

    def run_layer(src_ref, wihf, wihb, bf, bb, whhf_ref, whhb_ref, store_seq):
        # Prologue: project chunk 0; inside the loop project chunk c+1 ahead of
        # running chunk c's steps (independent work the scheduler can interleave).
        project(src_ref, wihf, wihb, bf, bb, *chunks[0])
        hf = cf = hb = cb = jnp.zeros((Bp, H), jnp.float32)
        for ci, (lo, hi) in enumerate(chunks):
            if ci + 1 < n_chunks:
                project(src_ref, wihf, wihb, bf, bb, *chunks[ci + 1])
            for t in range(lo, hi):                       # static unroll
                tb = T - 1 - t                            # backward-direction time
                gf = gxf_scr[t] + jnp.dot(hf.astype(md), whhf_ref[...],
                                          preferred_element_type=jnp.float32)
                gb = gxb_scr[tb] + jnp.dot(hb.astype(md), whhb_ref[...],
                                           preferred_element_type=jnp.float32)
                hf, cf = cell(gf, cf)
                hb, cb = cell(gb, cb)
                if store_seq:
                    seq_scr[t, :, 0:H] = hf               # fwd half of concat
                    seq_scr[tb, :, H:2 * H] = hb          # bwd half of concat
        return hf, hb

    # ---------------- Layer 0 ---------------- (outputs needed by layer 1)
    run_layer(x_ref, wih0f_ref, wih0b_ref, b0f_ref, b0b_ref,
              whh0f_ref, whh0b_ref, store_seq=True)

    # ---------------- Layer 1 ---------------- (only final hidden states needed)
    hf1, hb1 = run_layer(seq_scr, wih1f_ref, wih1b_ref, b1f_ref, b1b_ref,
                         whh1f_ref, whh1b_ref, store_seq=False)

    # ---------------- FC head epilogue ----------------
    # cat(hidden[-2], hidden[-1]) @ W1^T expressed as a split matmul (no concat).
    hid = (jnp.dot(hf1.astype(md), wfc1f_ref[...], preferred_element_type=jnp.float32)
           + jnp.dot(hb1.astype(md), wfc1b_ref[...], preferred_element_type=jnp.float32)
           + bfc1_ref[...])
    hid = jnp.maximum(hid, 0.0)            # ReLU; Dropout(0.5) is identity in eval
    out_ref[...] = (jnp.dot(hid.astype(md), wfc2_ref[...],
                            preferred_element_type=jnp.float32)
                    + bfc2_ref[...])


# ----------------------------------------------------------------------------
# One-time weight preparation (hoisted out of the forward path)
# ----------------------------------------------------------------------------
def prepare_params(params, matmul_dtype=jnp.float32):
    """Transpose / cast / bias-fold / FC-split once; returns kernel-ready arrays."""
    md = matmul_dtype
    H = params["lstm"][(0, 0)][1].shape[1]

    def prep_dir(layer, direction):
        w_ih, w_hh, b_ih, b_hh = params["lstm"][(layer, direction)]
        return (jnp.transpose(w_ih).astype(md),                  # (in, 4H)
                jnp.transpose(w_hh).astype(md),                  # (H, 4H)
                (b_ih + b_hh).reshape(1, 4 * H).astype(jnp.float32))

    wih0f, whh0f, b0f = prep_dir(0, 0)
    wih0b, whh0b, b0b = prep_dir(0, 1)
    wih1f, whh1f, b1f = prep_dir(1, 0)      # (2H, 4H) kept fused -> K=2H GEMM
    wih1b, whh1b, b1b = prep_dir(1, 1)

    w1, b1, w2, b2 = params["fc"]
    out_dim = w2.shape[0]
    w1t = jnp.transpose(w1).astype(md)                            # (2H, H)
    return dict(
        wih0f=wih0f, wih0b=wih0b, whh0f=whh0f, whh0b=whh0b, b0f=b0f, b0b=b0b,
        wih1f=wih1f, wih1b=wih1b, whh1f=whh1f, whh1b=whh1b, b1f=b1f, b1b=b1b,
        wfc1f=w1t[:H], wfc1b=w1t[H:],
        bfc1=b1.reshape(1, H).astype(jnp.float32),
        wfc2=jnp.transpose(w2).astype(md),                        # (H, out)
        bfc2=b2.reshape(1, out_dim).astype(jnp.float32),
    )


# ----------------------------------------------------------------------------
# Forward (jitted; expects prepared weights)
# ----------------------------------------------------------------------------
@jax.jit
def classification_model_forward_prepared(x, prepared):
    """x: (B, T, input_dim) f32. Returns (B, output_dim) f32."""
    B, T, _ = x.shape
    H = prepared["whh0f"].shape[0]
    out_dim = prepared["wfc2"].shape[1]
    md = prepared["whh0f"].dtype

    # Pad batch to a full (packed) sublane group: 8 rows for f32, 16 for bf16.
    sub = 16 if md == jnp.bfloat16 else 8
    Bp = ((max(B, sub) + sub - 1) // sub) * sub
    x_tm = jnp.transpose(x, (1, 0, 2)).astype(md)                 # (T, B, Din)
    if Bp != B:
        x_tm = jnp.pad(x_tm, ((0, 0), (0, Bp - B), (0, 0)))

    out = pl.pallas_call(
        _fused_model_kernel,
        out_shape=jax.ShapeDtypeStruct((Bp, out_dim), jnp.float32),
        in_specs=[_VMEM] * 18,
        out_specs=_VMEM,
        scratch_shapes=[
            pltpu.VMEM((T, Bp, 4 * H), jnp.float32),   # fwd input projections
            pltpu.VMEM((T, Bp, 4 * H), jnp.float32),   # bwd input projections
            pltpu.VMEM((T, Bp, 2 * H), jnp.float32),   # merged layer-0 outputs
        ],
        compiler_params=pltpu.CompilerParams(
            vmem_limit_bytes=_vmem_limit_bytes()),
    )(x_tm,
      prepared["wih0f"], prepared["wih0b"], prepared["whh0f"], prepared["whh0b"],
      prepared["b0f"], prepared["b0b"],
      prepared["wih1f"], prepared["wih1b"], prepared["whh1f"], prepared["whh1b"],
      prepared["b1f"], prepared["b1b"],
      prepared["wfc1f"], prepared["wfc1b"], prepared["bfc1"],
      prepared["wfc2"], prepared["bfc2"])
    return out[:B]


def classification_model_forward(x, params, *, matmul_dtype=jnp.float32):
    """Convenience path (re-preps weights; prefer prepare_params + *_prepared)."""
    return classification_model_forward_prepared(
        x, prepare_params(params, matmul_dtype))


# ----------------------------------------------------------------------------
# Pure-JAX reference (for correctness check only)
# ----------------------------------------------------------------------------
def _lstm_dir_ref(x_tm, w_ih, w_hh, bias):
    H = w_hh.shape[1]

    def step(carry, x_t):
        h, c = carry
        gates = x_t @ w_ih.T + h @ w_hh.T + bias
        i_g = jax.nn.sigmoid(gates[:, 0 * H:1 * H])
        f_g = jax.nn.sigmoid(gates[:, 1 * H:2 * H])
        g_g = jnp.tanh(gates[:, 2 * H:3 * H])
        o_g = jax.nn.sigmoid(gates[:, 3 * H:4 * H])
        c_new = f_g * c + i_g * g_g
        h_new = o_g * jnp.tanh(c_new)
        return (h_new, c_new), h_new

    B = x_tm.shape[1]
    init = (jnp.zeros((B, H), jnp.float32), jnp.zeros((B, H), jnp.float32))
    (h_f, _), outs = jax.lax.scan(step, init, x_tm)
    return outs, h_f


def _forward_ref(x, params):
    x_tm = jnp.transpose(x, (1, 0, 2)).astype(jnp.float32)
    layer_in = x_tm
    finals = []
    for layer in range(2):
        dir_outputs = []
        for direction in range(2):
            w_ih, w_hh, b_ih, b_hh = params["lstm"][(layer, direction)]
            inp = layer_in if direction == 0 else layer_in[::-1]
            out, hfin = _lstm_dir_ref(inp, w_ih, w_hh, b_ih + b_hh)
            if direction == 1:
                out = out[::-1]
            dir_outputs.append(out)
            if layer == 1:
                finals.append(hfin)
        layer_in = jnp.concatenate(dir_outputs, axis=-1)
    hidden_cat = jnp.concatenate(finals, axis=-1)
    w1, b1, w2, b2 = params["fc"]
    h = jnp.maximum(hidden_cat @ w1.T + b1, 0.0)
    return h @ w2.T + b2


# ----------------------------------------------------------------------------
# Deterministic parameter init (PyTorch-style uniform(-1/sqrt(H), 1/sqrt(H)))
# ----------------------------------------------------------------------------
def init_params(key, input_dim, hidden_dim, output_dim):
    H = hidden_dim
    bound = 1.0 / jnp.sqrt(jnp.float32(H))
    params = {"lstm": {}}
    for layer in range(2):
        in_dim = input_dim if layer == 0 else 2 * H
        for direction in range(2):
            key, k1, k2, k3, k4 = jax.random.split(key, 5)
            params["lstm"][(layer, direction)] = (
                jax.random.uniform(k1, (4 * H, in_dim), jnp.float32, -bound, bound),
                jax.random.uniform(k2, (4 * H, H), jnp.float32, -bound, bound),
                jax.random.uniform(k3, (4 * H,), jnp.float32, -bound, bound),
                jax.random.uniform(k4, (4 * H,), jnp.float32, -bound, bound),
            )
    key, k1, k2, k3, k4 = jax.random.split(key, 5)
    fc_bound1 = 1.0 / jnp.sqrt(jnp.float32(2 * H))
    fc_bound2 = 1.0 / jnp.sqrt(jnp.float32(H))
    params["fc"] = (
        jax.random.uniform(k1, (H, 2 * H), jnp.float32, -fc_bound1, fc_bound1),
        jax.random.uniform(k2, (H,), jnp.float32, -fc_bound1, fc_bound1),
        jax.random.uniform(k3, (output_dim, H), jnp.float32, -fc_bound2, fc_bound2),
        jax.random.uniform(k4, (output_dim,), jnp.float32, -fc_bound2, fc_bound2),
    )
    return params


# ----------------------------------------------------------------------------
if __name__ == "__main__":
    B, T = 2, 8
    input_dim, hidden_dim, output_dim = 16, 32, 4

    key = jax.random.PRNGKey(0)
    key, kx, kp = jax.random.split(key, 3)
    x = jax.random.normal(kx, (B, T, input_dim), jnp.float32)
    params = init_params(kp, input_dim, hidden_dim, output_dim)

    ref = jax.block_until_ready(_forward_ref(x, params))

    # f32 matmul path: numerically faithful; weight prep hoisted out of the call.
    prepared_f32 = jax.block_until_ready(prepare_params(params, jnp.float32))
    out_f32 = jax.block_until_ready(
        classification_model_forward_prepared(x, prepared_f32))
    assert out_f32.shape == (B, output_dim), out_f32.shape
    err_f32 = float(jnp.max(jnp.abs(out_f32 - ref)))
    assert err_f32 < 2e-3, f"f32 path mismatch vs reference: {err_f32}"

    # bf16 MXU-input path (opt-in; f32 state + accumulation), batch padded to 16.
    prepared_bf16 = jax.block_until_ready(prepare_params(params, jnp.bfloat16))
    out_bf16 = jax.block_until_ready(
        classification_model_forward_prepared(x, prepared_bf16))
    assert out_bf16.shape == (B, output_dim), out_bf16.shape
    err_bf16 = float(jnp.max(jnp.abs(out_bf16 - ref)))
    assert err_bf16 < 1e-1, f"bf16 path mismatch vs reference: {err_bf16}"

    print("KERNEL_OK")
</pallas_src>

<mosaic_0001>
module attributes {stable_mosaic.version = 11 : i64} {
  func.func @_fused_model_kernel(%arg0: memref<8x8x16xf32, #tpu.memory_space<vmem>>, %arg1: memref<16x128xf32, #tpu.memory_space<vmem>>, %arg2: memref<16x128xf32, #tpu.memory_space<vmem>>, %arg3: memref<32x128xf32, #tpu.memory_space<vmem>>, %arg4: memref<32x128xf32, #tpu.memory_space<vmem>>, %arg5: memref<1x128xf32, #tpu.memory_space<vmem>>, %arg6: memref<1x128xf32, #tpu.memory_space<vmem>>, %arg7: memref<64x128xf32, #tpu.memory_space<vmem>>, %arg8: memref<64x128xf32, #tpu.memory_space<vmem>>, %arg9: memref<32x128xf32, #tpu.memory_space<vmem>>, %arg10: memref<32x128xf32, #tpu.memory_space<vmem>>, %arg11: memref<1x128xf32, #tpu.memory_space<vmem>>, %arg12: memref<1x128xf32, #tpu.memory_space<vmem>>, %arg13: memref<32x32xf32, #tpu.memory_space<vmem>>, %arg14: memref<32x32xf32, #tpu.memory_space<vmem>>, %arg15: memref<1x32xf32, #tpu.memory_space<vmem>>, %arg16: memref<32x4xf32, #tpu.memory_space<vmem>>, %arg17: memref<1x4xf32, #tpu.memory_space<vmem>>, %arg18: memref<8x4xf32, #tpu.memory_space<vmem>>, %arg19: memref<8x8x128xf32, #tpu.memory_space<vmem>>, %arg20: memref<8x8x128xf32, #tpu.memory_space<vmem>>, %arg21: memref<8x8x64xf32, #tpu.memory_space<vmem>>) attributes {dimension_semantics = [], scalar_prefetch = 0 : i64, scratch_operands = 3 : i64, tpu.core_type = #tpu.core_type<tc>} {
    %c0 = arith.constant 0 : index
    %c0_0 = arith.constant 0 : index
    %c0_1 = arith.constant 0 : index
    %0 = vector.load %arg0[%c0, %c0_0, %c0_1] : memref<8x8x16xf32, #tpu.memory_space<vmem>>, vector<8x8x16xf32>
    %1 = vector.shape_cast %0 : vector<8x8x16xf32> to vector<64x16xf32>
    %c0_2 = arith.constant 0 : index
    %c0_3 = arith.constant 0 : index
    %2 = vector.load %arg1[%c0_2, %c0_3] : memref<16x128xf32, #tpu.memory_space<vmem>>, vector<16x128xf32>
    %cst = arith.constant dense<0.000000e+00> : vector<64x128xf32>
    %3 = tpu.matmul %1, %2, %cst {dimension_numbers = #tpu.dot_dimension_numbers<[1], [0], [0], [1], [0, 0, 1, 1], [], []>} : vector<64x16xf32>, vector<16x128xf32>, vector<64x128xf32> -> vector<64x128xf32>
    %c0_4 = arith.constant 0 : index
    %c0_5 = arith.constant 0 : index
    %4 = vector.load %arg5[%c0_4, %c0_5] : memref<1x128xf32, #tpu.memory_space<vmem>>, vector<1x128xf32>
    %5 = vector.broadcast %4 : vector<1x128xf32> to vector<64x128xf32>
    %6 = arith.addf %3, %5 : vector<64x128xf32>
    %7 = vector.shape_cast %6 : vector<64x128xf32> to vector<8x8x128xf32>
    %c0_6 = arith.constant 0 : index
    %c0_7 = arith.constant 0 : index
    %c0_8 = arith.constant 0 : index
    %8 = vector.load %arg19[%c0_6, %c0_7, %c0_8] : memref<8x8x128xf32, #tpu.memory_space<vmem>>, vector<8x8x128xf32>
    tpu.vector_store %arg19[%c0_6, %c0_7, %c0_8], %7 {strides = array<i32>} : memref<8x8x128xf32, #tpu.memory_space<vmem>>, vector<8x8x128xf32>,
    %c0_9 = arith.constant 0 : index
    %c0_10 = arith.constant 0 : index
    %c0_11 = arith.constant 0 : index
    %9 = vector.load %arg0[%c0_9, %c0_10, %c0_11] : memref<8x8x16xf32, #tpu.memory_space<vmem>>, vector<8x8x16xf32>
    %10 = vector.shape_cast %9 : vector<8x8x16xf32> to vector<64x16xf32>
    %c0_12 = arith.constant 0 : index
    %c0_13 = arith.constant 0 : index
    %11 = vector.load %arg2[%c0_12, %c0_13] : memref<16x128xf32, #tpu.memory_space<vmem>>, vector<16x128xf32>
    %cst_14 = arith.constant dense<0.000000e+00> : vector<64x128xf32>
    %12 = tpu.matmul %10, %11, %cst_14 {dimension_numbers = #tpu.dot_dimension_numbers<[1], [0], [0], [1], [0, 0, 1, 1], [], []>} : vector<64x16xf32>, vector<16x128xf32>, vector<64x128xf32> -> vector<64x128xf32>
    %c0_15 = arith.constant 0 : index
    %c0_16 = arith.constant 0 : index
    %13 = vector.load %arg6[%c0_15, %c0_16] : memref<1x128xf32, #tpu.memory_space<vmem>>, vector<1x128xf32>
    %14 = vector.broadcast %13 : vector<1x128xf32> to vector<64x128xf32>
    %15 = arith.addf %12, %14 : vector<64x128xf32>
    %16 = vector.shape_cast %15 : vector<64x128xf32> to vector<8x8x128xf32>
    %c0_17 = arith.constant 0 : index
    %c0_18 = arith.constant 0 : index
    %c0_19 = arith.constant 0 : index
    %17 = vector.load %arg20[%c0_17, %c0_18, %c0_19] : memref<8x8x128xf32, #tpu.memory_space<vmem>>, vector<8x8x128xf32>
    tpu.vector_store %arg20[%c0_17, %c0_18, %c0_19], %16 {strides = array<i32>} : memref<8x8x128xf32, #tpu.memory_space<vmem>>, vector<8x8x128xf32>,
    %cst_20 = arith.constant 0.000000e+00 : f32
    %18 = vector.broadcast %cst_20 : f32 to vector<8x32xf32>
    %c0_21 = arith.constant 0 : index
    %c0_22 = arith.constant 0 : index
    %c0_23 = arith.constant 0 : index
    %19 = vector.load %arg19[%c0_21, %c0_22, %c0_23] : memref<8x8x128xf32, #tpu.memory_space<vmem>>, vector<1x8x128xf32>
    %20 = vector.shape_cast %19 : vector<1x8x128xf32> to vector<8x128xf32>
    %c0_24 = arith.constant 0 : index
    %c0_25 = arith.constant 0 : index
    %21 = vector.load %arg3[%c0_24, %c0_25] : memref<32x128xf32, #tpu.memory_space<vmem>>, vector<32x128xf32>
    %cst_26 = arith.constant dense<0.000000e+00> : vector<8x128xf32>
    %22 = tpu.matmul %18, %21, %cst_26 {dimension_numbers = #tpu.dot_dimension_numbers<[1], [0], [0], [1], [0, 0, 1, 1], [], []>} : vector<8x32xf32>, vector<32x128xf32>, vector<8x128xf32> -> vector<8x128xf32>
    %23 = arith.addf %20, %22 : vector<8x128xf32>
    %c7 = arith.constant 7 : index
    %c0_27 = arith.constant 0 : index
    %c0_28 = arith.constant 0 : index
    %24 = vector.load %arg20[%c7, %c0_27, %c0_28] : memref<8x8x128xf32, #tpu.memory_space<vmem>>, vector<1x8x128xf32>
    %25 = vector.shape_cast %24 : vector<1x8x128xf32> to vector<8x128xf32>
    %c0_29 = arith.constant 0 : index
    %c0_30 = arith.constant 0 : index
    %26 = vector.load %arg4[%c0_29, %c0_30] : memref<32x128xf32, #tpu.memory_space<vmem>>, vector<32x128xf32>
    %cst_31 = arith.constant dense<0.000000e+00> : vector<8x128xf32>
    %27 = tpu.matmul %18, %26, %cst_31 {dimension_numbers = #tpu.dot_dimension_numbers<[1], [0], [0], [1], [0, 0, 1, 1], [], []>} : vector<8x32xf32>, vector<32x128xf32>, vector<8x128xf32> -> vector<8x128xf32>
    %28 = arith.addf %25, %27 : vector<8x128xf32>
    %29 = arith.negf %23 : vector<8x128xf32>
    %30 = math.exp %29 : vector<8x128xf32>
    %cst_32 = arith.constant 1.000000e+00 : f32
    %31 = vector.broadcast %cst_32 : f32 to vector<8x128xf32>
    %32 = arith.addf %31, %30 : vector<8x128xf32>
    %33 = arith.divf %31, %32 : vector<8x128xf32>
    %34 = vector.extract_strided_slice %23 {offsets = [0, 64], sizes = [8, 32], strides = [1, 1]} : vector<8x128xf32> to vector<8x32xf32>
    %35 = math.tanh %34 : vector<8x32xf32>
    %36 = vector.extract_strided_slice %33 {offsets = [0, 32], sizes = [8, 32], strides = [1, 1]} : vector<8x128xf32> to vector<8x32xf32>
    %37 = arith.mulf %36, %18 : vector<8x32xf32>
    %38 = vector.extract_strided_slice %33 {offsets = [0, 0], sizes = [8, 32], strides = [1, 1]} : vector<8x128xf32> to vector<8x32xf32>
    %39 = arith.mulf %38, %35 : vector<8x32xf32>
    %40 = arith.addf %37, %39 : vector<8x32xf32>
    %41 = vector.extract_strided_slice %33 {offsets = [0, 96], sizes = [8, 32], strides = [1, 1]} : vector<8x128xf32> to vector<8x32xf32>
    %42 = math.tanh %40 : vector<8x32xf32>
    %43 = arith.mulf %41, %42 : vector<8x32xf32>
    %44 = arith.negf %28 : vector<8x128xf32>
    %45 = math.exp %44 : vector<8x128xf32>
    %cst_33 = arith.constant 1.000000e+00 : f32
    %46 = vector.broadcast %cst_33 : f32 to vector<8x128xf32>
    %47 = arith.addf %46, %45 : vector<8x128xf32>
    %48 = arith.divf %46, %47 : vector<8x128xf32>
    %49 = vector.extract_strided_slice %28 {offsets = [0, 64], sizes = [8, 32], strides = [1, 1]} : vector<8x128xf32> to vector<8x32xf32>
    %50 = math.tanh %49 : vector<8x32xf32>
    %51 = vector.extract_strided_slice %48 {offsets = [0, 32], sizes = [8, 32], strides = [1, 1]} : vector<8x128xf32> to vector<8x32xf32>
    %52 = arith.mulf %51, %18 : vector<8x32xf32>
    %53 = vector.extract_strided_slice %48 {offsets = [0, 0], sizes = [8, 32], strides = [1, 1]} : vector<8x128xf32> to vector<8x32xf32>
    %54 = arith.mulf %53, %50 : vector<8x32xf32>
    %55 = arith.addf %52, %54 : vector<8x32xf32>
    %56 = vector.extract_strided_slice %48 {offsets = [0, 96], sizes = [8, 32], strides = [1, 1]} : vector<8x128xf32> to vector<8x32xf32>
    %57 = math.tanh %55 : vector<8x32xf32>
    %58 = arith.mulf %56, %57 : vector<8x32xf32>
    %c0_34 = arith.constant 0 : index
    %c0_35 = arith.constant 0 : index
    %c0_36 = arith.constant 0 : index
    %59 = vector.load %arg21[%c0_34, %c0_35, %c0_36] : memref<8x8x64xf32, #tpu.memory_space<vmem>>, vector<1x8x32xf32>
    %60 = vector.shape_cast %59 : vector<1x8x32xf32> to vector<8x32xf32>
    %61 = vector.shape_cast %43 : vector<8x32xf32> to vector<1x8x32xf32>
    tpu.vector_store %arg21[%c0_34, %c0_35, %c0_36], %61 {strides = array<i32>} : memref<8x8x64xf32, #tpu.memory_space<vmem>>, vector<1x8x32xf32>,
    %c7_37 = arith.constant 7 : index
    %c0_38 = arith.constant 0 : index
    %c32 = arith.constant 32 : index
    %62 = vector.load %arg21[%c7_37, %c0_38, %c32] : memref<8x8x64xf32, #tpu.memory_space<vmem>>, vector<1x8x32xf32>
    %63 = vector.shape_cast %62 : vector<1x8x32xf32> to vector<8x32xf32>
    %64 = vector.shape_cast %58 : vector<8x32xf32> to vector<1x8x32xf32>
    tpu.vector_store %arg21[%c7_37, %c0_38, %c32], %64 {strides = array<i32>} : memref<8x8x64xf32, #tpu.memory_space<vmem>>, vector<1x8x32xf32>,
    %c1 = arith.constant 1 : index
    %c0_39 = arith.constant 0 : index
    %c0_40 = arith.constant 0 : index
    %65 = vector.load %arg19[%c1, %c0_39, %c0_40] : memref<8x8x128xf32, #tpu.memory_space<vmem>>, vector<1x8x128xf32>
    %66 = vector.shape_cast %65 : vector<1x8x128xf32> to vector<8x128xf32>
    %c0_41 = arith.constant 0 : index
    %c0_42 = arith.constant 0 : index
    %67 = vector.load %arg3[%c0_41, %c0_42] : memref<32x128xf32, #tpu.memory_space<vmem>>, vector<32x128xf32>
    %cst_43 = arith.constant dense<0.000000e+00> : vector<8x128xf32>
    %68 = tpu.matmul %43, %67, %cst_43 {dimension_numbers = #tpu.dot_dimension_numbers<[1], [0], [0], [1], [0, 0, 1, 1], [], []>} : vector<8x32xf32>, vector<32x128xf32>, vector<8x128xf32> -> vector<8x128xf32>
    %69 = arith.addf %66, %68 : vector<8x128xf32>
    %c6 = arith.constant 6 : index
    %c0_44 = arith.constant 0 : index
    %c0_45 = arith.constant 0 : index
    %70 = vector.load %arg20[%c6, %c0_44, %c0_45] : memref<8x8x128xf32, #tpu.memory_space<vmem>>, vector<1x8x128xf32>
    %71 = vector.shape_cast %70 : vector<1x8x128xf32> to vector<8x128xf32>
    %c0_46 = arith.constant 0 : index
    %c0_47 = arith.constant 0 : index
    %72 = vector.load %arg4[%c0_46, %c0_47] : memref<32x128xf32, #tpu.memory_space<vmem>>, vector<32x128xf32>
    %cst_48 = arith.constant dense<0.000000e+00> : vector<8x128xf32>
    %73 = tpu.matmul %58, %72, %cst_48 {dimension_numbers = #tpu.dot_dimension_numbers<[1], [0], [0], [1], [0, 0, 1, 1], [], []>} : vector<8x32xf32>, vector<32x128xf32>, vector<8x128xf32> -> vector<8x128xf32>
    %74 = arith.addf %71, %73 : vector<8x128xf32>
    %75 = arith.negf %69 : vector<8x128xf32>
    %76 = math.exp %75 : vector<8x128xf32>
    %cst_49 = arith.constant 1.000000e+00 : f32
    %77 = vector.broadcast %cst_49 : f32 to vector<8x128xf32>
    %78 = arith.addf %77, %76 : vector<8x128xf32>
    %79 = arith.divf %77, %78 : vector<8x128xf32>
    %80 = vector.extract_strided_slice %69 {offsets = [0, 64], sizes = [8, 32], strides = [1, 1]} : vector<8x128xf32> to vector<8x32xf32>
    %81 = math.tanh %80 : vector<8x32xf32>
    %82 = vector.extract_strided_slice %79 {offsets = [0, 32], sizes = [8, 32], strides = [1, 1]} : vector<8x128xf32> to vector<8x32xf32>
    %83 = arith.mulf %82, %40 : vector<8x32xf32>
    %84 = vector.extract_strided_slice %79 {offsets = [0, 0], sizes = [8, 32], strides = [1, 1]} : vector<8x128xf32> to vector<8x32xf32>
    %85 = arith.mulf %84, %81 : vector<8x32xf32>
    %86 = arith.addf %83, %85 : vector<8x32xf32>
    %87 = vector.extract_strided_slice %79 {offsets = [0, 96], sizes = [8, 32], strides = [1, 1]} : vector<8x128xf32> to vector<8x32xf32>
    %88 = math.tanh %86 : vector<8x32xf32>
    %89 = arith.mulf %87, %88 : vector<8x32xf32>
    %90 = arith.negf %74 : vector<8x128xf32>
    %91 = math.exp %90 : vector<8x128xf32>
    %cst_50 = arith.constant 1.000000e+00 : f32
    %92 = vector.broadcast %cst_50 : f32 to vector<8x128xf32>
    %93 = arith.addf %92, %91 : vector<8x128xf32>
    %94 = arith.divf %92, %93 : vector<8x128xf32>
    %95 = vector.extract_strided_slice %74 {offsets = [0, 64], sizes = [8, 32], strides = [1, 1]} : vector<8x128xf32> to vector<8x32xf32>
    %96 = math.tanh %95 : vector<8x32xf32>
    %97 = vector.extract_strided_slice %94 {offsets = [0, 32], sizes = [8, 32], strides = [1, 1]} : vector<8x128xf32> to vector<8x32xf32>
    %98 = arith.mulf %97, %55 : vector<8x32xf32>
    %99 = vector.extract_strided_slice %94 {offsets = [0, 0], sizes = [8, 32], strides = [1, 1]} : vector<8x128xf32> to vector<8x32xf32>
    %100 = arith.mulf %99, %96 : vector<8x32xf32>
    %101 = arith.addf %98, %100 : vector<8x32xf32>
    %102 = vector.extract_strided_slice %94 {offsets = [0, 96], sizes = [8, 32], strides = [1, 1]} : vector<8x128xf32> to vector<8x32xf32>
    %103 = math.tanh %101 : vector<8x32xf32>
    %104 = arith.mulf %102, %103 : vector<8x32xf32>
    %c1_51 = arith.constant 1 : index
    %c0_52 = arith.constant 0 : index
    %c0_53 = arith.constant 0 : index
    %105 = vector.load %arg21[%c1_51, %c0_52, %c0_53] : memref<8x8x64xf32, #tpu.memory_space<vmem>>, vector<1x8x32xf32>
    %106 = vector.shape_cast %105 : vector<1x8x32xf32> to vector<8x32xf32>
    %107 = vector.shape_cast %89 : vector<8x32xf32> to vector<1x8x32xf32>
    tpu.vector_store %arg21[%c1_51, %c0_52, %c0_53], %107 {strides = array<i32>} : memref<8x8x64xf32, #tpu.memory_space<vmem>>, vector<1x8x32xf32>,
    %c6_54 = arith.constant 6 : index
    %c0_55 = arith.constant 0 : index
    %c32_56 = arith.constant 32 : index
    %108 = vector.load %arg21[%c6_54, %c0_55, %c32_56] : memref<8x8x64xf32, #tpu.memory_space<vmem>>, vector<1x8x32xf32>
    %109 = vector.shape_cast %108 : vector<1x8x32xf32> to vector<8x32xf32>
    %110 = vector.shape_cast %104 : vector<8x32xf32> to vector<1x8x32xf32>
    tpu.vector_store %arg21[%c6_54, %c0_55, %c32_56], %110 {strides = array<i32>} : memref<8x8x64xf32, #tpu.memory_space<vmem>>, vector<1x8x32xf32>,
    %c2 = arith.constant 2 : index
    %c0_57 = arith.constant 0 : index
    %c0_58 = arith.constant 0 : index
    %111 = vector.load %arg19[%c2, %c0_57, %c0_58] : memref<8x8x128xf32, #tpu.memory_space<vmem>>, vector<1x8x128xf32>
    %112 = vector.shape_cast %111 : vector<1x8x128xf32> to vector<8x128xf32>
    %c0_59 = arith.constant 0 : index
    %c0_60 = arith.constant 0 : index
    %113 = vector.load %arg3[%c0_59, %c0_60] : memref<32x128xf32, #tpu.memory_space<vmem>>, vector<32x128xf32>
    %cst_61 = arith.constant dense<0.000000e+00> : vector<8x128xf32>
    %114 = tpu.matmul %89, %113, %cst_61 {dimension_numbers = #tpu.dot_dimension_numbers<[1], [0], [0], [1], [0, 0, 1, 1], [], []>} : vector<8x32xf32>, vector<32x128xf32>, vector<8x128xf32> -> vector<8x128xf32>
    %115 = arith.addf %112, %114 : vector<8x128xf32>
    %c5 = arith.constant 5 : index
    %c0_62 = arith.constant 0 : index
    %c0_63 = arith.constant 0 : index
    %116 = vector.load %arg20[%c5, %c0_62, %c0_63] : memref<8x8x128xf32, #tpu.memory_space<vmem>>, vector<1x8x128xf32>
    %117 = vector.shape_cast %116 : vector<1x8x128xf32> to vector<8x128xf32>
    %c0_64 = arith.constant 0 : index
    %c0_65 = arith.constant 0 : index
    %118 = vector.load %arg4[%c0_64, %c0_65] : memref<32x128xf32, #tpu.memory_space<vmem>>, vector<32x128xf32>
    %cst_66 = arith.constant dense<0.000000e+00> : vector<8x128xf32>
    %119 = tpu.matmul %104, %118, %cst_66 {dimension_numbers = #tpu.dot_dimension_numbers<[1], [0], [0], [1], [0, 0, 1, 1], [], []>} : vector<8x32xf32>, vector<32x128xf32>, vector<8x128xf32> -> vector<8x128xf32>
    %120 = arith.addf %117, %119 : vector<8x128xf32>
    %121 = arith.negf %115 : vector<8x128xf32>
    %122 = math.exp %121 : vector<8x128xf32>
    %cst_67 = arith.constant 1.000000e+00 : f32
    %123 = vector.broadcast %cst_67 : f32 to vector<8x128xf32>
    %124 = arith.addf %123, %122 : vector<8x128xf32>
    %125 = arith.divf %123, %124 : vector<8x128xf32>
    %126 = vector.extract_strided_slice %115 {offsets = [0, 64], sizes = [8, 32], strides = [1, 1]} : vector<8x128xf32> to vector<8x32xf32>
    %127 = math.tanh %126 : vector<8x32xf32>
    %128 = vector.extract_strided_slice %125 {offsets = [0, 32], sizes = [8, 32], strides = [1, 1]} : vector<8x128xf32> to vector<8x32xf32>
    %129 = arith.mulf %128, %86 : vector<8x32xf32>
    %130 = vector.extract_strided_slice %125 {offsets = [0, 0], sizes = [8, 32], strides = [1, 1]} : vector<8x128xf32> to vector<8x32xf32>
    %131 = arith.mulf %130, %127 : vector<8x32xf32>
    %132 = arith.addf %129, %131 : vector<8x32xf32>
    %133 = vector.extract_strided_slice %125 {offsets = [0, 96], sizes = [8, 32], strides = [1, 1]} : vector<8x128xf32> to vector<8x32xf32>
    %134 = math.tanh %132 : vector<8x32xf32>
    %135 = arith.mulf %133, %134 : vector<8x32xf32>
    %136 = arith.negf %120 : vector<8x128xf32>
    %137 = math.exp %136 : vector<8x128xf32>
    %cst_68 = arith.constant 1.000000e+00 : f32
    %138 = vector.broadcast %cst_68 : f32 to vector<8x128xf32>
    %139 = arith.addf %138, %137 : vector<8x128xf32>
    %140 = arith.divf %138, %139 : vector<8x128xf32>
    %141 = vector.extract_strided_slice %120 {offsets = [0, 64], sizes = [8, 32], strides = [1, 1]} : vector<8x128xf32> to vector<8x32xf32>
    %142 = math.tanh %141 : vector<8x32xf32>
    %143 = vector.extract_strided_slice %140 {offsets = [0, 32], sizes = [8, 32], strides = [1, 1]} : vector<8x128xf32> to vector<8x32xf32>
    %144 = arith.mulf %143, %101 : vector<8x32xf32>
    %145 = vector.extract_strided_slice %140 {offsets = [0, 0], sizes = [8, 32], strides = [1, 1]} : vector<8x128xf32> to vector<8x32xf32>
    %146 = arith.mulf %145, %142 : vector<8x32xf32>
    %147 = arith.addf %144, %146 : vector<8x32xf32>
    %148 = vector.extract_strided_slice %140 {offsets = [0, 96], sizes = [8, 32], strides = [1, 1]} : vector<8x128xf32> to vector<8x32xf32>
    %149 = math.tanh %147 : vector<8x32xf32>
    %150 = arith.mulf %148, %149 : vector<8x32xf32>
    %c2_69 = arith.constant 2 : index
    %c0_70 = arith.constant 0 : index
    %c0_71 = arith.constant 0 : index
    %151 = vector.load %arg21[%c2_69, %c0_70, %c0_71] : memref<8x8x64xf32, #tpu.memory_space<vmem>>, vector<1x8x32xf32>
    %152 = vector.shape_cast %151 : vector<1x8x32xf32> to vector<8x32xf32>
    %153 = vector.shape_cast %135 : vector<8x32xf32> to vector<1x8x32xf32>
    tpu.vector_store %arg21[%c2_69, %c0_70, %c0_71], %153 {strides = array<i32>} : memref<8x8x64xf32, #tpu.memory_space<vmem>>, vector<1x8x32xf32>,
    %c5_72 = arith.constant 5 : index
    %c0_73 = arith.constant 0 : index
    %c32_74 = arith.constant 32 : index
    %154 = vector.load %arg21[%c5_72, %c0_73, %c32_74] : memref<8x8x64xf32, #tpu.memory_space<vmem>>, vector<1x8x32xf32>
    %155 = vector.shape_cast %154 : vector<1x8x32xf32> to vector<8x32xf32>
    %156 = vector.shape_cast %150 : vector<8x32xf32> to vector<1x8x32xf32>
    tpu.vector_store %arg21[%c5_72, %c0_73, %c32_74], %156 {strides = array<i32>} : memref<8x8x64xf32, #tpu.memory_space<vmem>>, vector<1x8x32xf32>,
    %c3 = arith.constant 3 : index
    %c0_75 = arith.constant 0 : index
    %c0_76 = arith.constant 0 : index
    %157 = vector.load %arg19[%c3, %c0_75, %c0_76] : memref<8x8x128xf32, #tpu.memory_space<vmem>>, vector<1x8x128xf32>
    %158 = vector.shape_cast %157 : vector<1x8x128xf32> to vector<8x128xf32>
    %c0_77 = arith.constant 0 : index
    %c0_78 = arith.constant 0 : index
    %159 = vector.load %arg3[%c0_77, %c0_78] : memref<32x128xf32, #tpu.memory_space<vmem>>, vector<32x128xf32>
    %cst_79 = arith.constant dense<0.000000e+00> : vector<8x128xf32>
    %160 = tpu.matmul %135, %159, %cst_79 {dimension_numbers = #tpu.dot_dimension_numbers<[1], [0], [0], [1], [0, 0, 1, 1], [], []>} : vector<8x32xf32>, vector<32x128xf32>, vector<8x128xf32> -> vector<8x128xf32>
    %161 = arith.addf %158, %160 : vector<8x128xf32>
    %c4 = arith.constant 4 : index
    %c0_80 = arith.constant 0 : index
    %c0_81 = arith.constant 0 : index
    %162 = vector.load %arg20[%c4, %c0_80, %c0_81] : memref<8x8x128xf32, #tpu.memory_space<vmem>>, vector<1x8x128xf32>
    %163 = vector.shape_cast %162 : vector<1x8x128xf32> to vector<8x128xf32>
    %c0_82 = arith.constant 0 : index
    %c0_83 = arith.constant 0 : index
    %164 = vector.load %arg4[%c0_82, %c0_83] : memref<32x128xf32, #tpu.memory_space<vmem>>, vector<32x128xf32>
    %cst_84 = arith.constant dense<0.000000e+00> : vector<8x128xf32>
    %165 = tpu.matmul %150, %164, %cst_84 {dimension_numbers = #tpu.dot_dimension_numbers<[1], [0], [0], [1], [0, 0, 1, 1], [], []>} : vector<8x32xf32>, vector<32x128xf32>, vector<8x128xf32> -> vector<8x128xf32>
    %166 = arith.addf %163, %165 : vector<8x128xf32>
    %167 = arith.negf %161 : vector<8x128xf32>
    %168 = math.exp %167 : vector<8x128xf32>
    %cst_85 = arith.constant 1.000000e+00 : f32
    %169 = vector.broadcast %cst_85 : f32 to vector<8x128xf32>
    %170 = arith.addf %169, %168 : vector<8x128xf32>
    %171 = arith.divf %169, %170 : vector<8x128xf32>
    %172 = vector.extract_strided_slice %161 {offsets = [0, 64], sizes = [8, 32], strides = [1, 1]} : vector<8x128xf32> to vector<8x32xf32>
    %173 = math.tanh %172 : vector<8x32xf32>
    %174 = vector.extract_strided_slice %171 {offsets = [0, 32], sizes = [8, 32], strides = [1, 1]} : vector<8x128xf32> to vector<8x32xf32>
    %175 = arith.mulf %174, %132 : vector<8x32xf32>
    %176 = vector.extract_strided_slice %171 {offsets = [0, 0], sizes = [8, 32], strides = [1, 1]} : vector<8x128xf32> to vector<8x32xf32>
    %177 = arith.mulf %176, %173 : vector<8x32xf32>
    %178 = arith.addf %175, %177 : vector<8x32xf32>
    %179 = vector.extract_strided_slice %171 {offsets = [0, 96], sizes = [8, 32], strides = [1, 1]} : vector<8x128xf32> to vector<8x32xf32>
    %180 = math.tanh %178 : vector<8x32xf32>
    %181 = arith.mulf %179, %180 : vector<8x32xf32>
    %182 = arith.negf %166 : vector<8x128xf32>
    %183 = math.exp %182 : vector<8x128xf32>
    %cst_86 = arith.constant 1.000000e+00 : f32
    %184 = vector.broadcast %cst_86 : f32 to vector<8x128xf32>
    %185 = arith.addf %184, %183 : vector<8x128xf32>
    %186 = arith.divf %184, %185 : vector<8x128xf32>
    %187 = vector.extract_strided_slice %166 {offsets = [0, 64], sizes = [8, 32], strides = [1, 1]} : vector<8x128xf32> to vector<8x32xf32>
    %188 = math.tanh %187 : vector<8x32xf32>
    %189 = vector.extract_strided_slice %186 {offsets = [0, 32], sizes = [8, 32], strides = [1, 1]} : vector<8x128xf32> to vector<8x32xf32>
    %190 = arith.mulf %189, %147 : vector<8x32xf32>
    %191 = vector.extract_strided_slice %186 {offsets = [0, 0], sizes = [8, 32], strides = [1, 1]} : vector<8x128xf32> to vector<8x32xf32>
    %192 = arith.mulf %191, %188 : vector<8x32xf32>
    %193 = arith.addf %190, %192 : vector<8x32xf32>
    %194 = vector.extract_strided_slice %186 {offsets = [0, 96], sizes = [8, 32], strides = [1, 1]} : vector<8x128xf32> to vector<8x32xf32>
    %195 = math.tanh %193 : vector<8x32xf32>
    %196 = arith.mulf %194, %195 : vector<8x32xf32>
    %c3_87 = arith.constant 3 : index
    %c0_88 = arith.constant 0 : index
    %c0_89 = arith.constant 0 : index
    %197 = vector.load %arg21[%c3_87, %c0_88, %c0_89] : memref<8x8x64xf32, #tpu.memory_space<vmem>>, vector<1x8x32xf32>
    %198 = vector.shape_cast %197 : vector<1x8x32xf32> to vector<8x32xf32>
    %199 = vector.shape_cast %181 : vector<8x32xf32> to vector<1x8x32xf32>
    tpu.vector_store %arg21[%c3_87, %c0_88, %c0_89], %199 {strides = array<i32>} : memref<8x8x64xf32, #tpu.memory_space<vmem>>, vector<1x8x32xf32>,
    %c4_90 = arith.constant 4 : index
    %c0_91 = arith.constant 0 : index
    %c32_92 = arith.constant 32 : index
    %200 = vector.load %arg21[%c4_90, %c0_91, %c32_92] : memref<8x8x64xf32, #tpu.memory_space<vmem>>, vector<1x8x32xf32>
    %201 = vector.shape_cast %200 : vector<1x8x32xf32> to vector<8x32xf32>
    %202 = vector.shape_cast %196 : vector<8x32xf32> to vector<1x8x32xf32>
    tpu.vector_store %arg21[%c4_90, %c0_91, %c32_92], %202 {strides = array<i32>} : memref<8x8x64xf32, #tpu.memory_space<vmem>>, vector<1x8x32xf32>,
    %c4_93 = arith.constant 4 : index
    %c0_94 = arith.constant 0 : index
    %c0_95 = arith.constant 0 : index
    %203 = vector.load %arg19[%c4_93, %c0_94, %c0_95] : memref<8x8x128xf32, #tpu.memory_space<vmem>>, vector<1x8x128xf32>
    %204 = vector.shape_cast %203 : vector<1x8x128xf32> to vector<8x128xf32>
    %c0_96 = arith.constant 0 : index
    %c0_97 = arith.constant 0 : index
    %205 = vector.load %arg3[%c0_96, %c0_97] : memref<32x128xf32, #tpu.memory_space<vmem>>, vector<32x128xf32>
    %cst_98 = arith.constant dense<0.000000e+00> : vector<8x128xf32>
    %206 = tpu.matmul %181, %205, %cst_98 {dimension_numbers = #tpu.dot_dimension_numbers<[1], [0], [0], [1], [0, 0, 1, 1], [], []>} : vector<8x32xf32>, vector<32x128xf32>, vector<8x128xf32> -> vector<8x128xf32>
    %207 = arith.addf %204, %206 : vector<8x128xf32>
    %c3_99 = arith.constant 3 : index
    %c0_100 = arith.constant 0 : index
    %c0_101 = arith.constant 0 : index
    %208 = vector.load %arg20[%c3_99, %c0_100, %c0_101] : memref<8x8x128xf32, #tpu.memory_space<vmem>>, vector<1x8x128xf32>
    %209 = vector.shape_cast %208 : vector<1x8x128xf32> to vector<8x128xf32>
    %c0_102 = arith.constant 0 : index
    %c0_103 = arith.constant 0 : index
    %210 = vector.load %arg4[%c0_102, %c0_103] : memref<32x128xf32, #tpu.memory_space<vmem>>, vector<32x128xf32>
    %cst_104 = arith.constant dense<0.000000e+00> : vector<8x128xf32>
    %211 = tpu.matmul %196, %210, %cst_104 {dimension_numbers = #tpu.dot_dimension_numbers<[1], [0], [0], [1], [0, 0, 1, 1], [], []>} : vector<8x32xf32>, vector<32x128xf32>, vector<8x128xf32> -> vector<8x128xf32>
    %212 = arith.addf %209, %211 : vector<8x128xf32>
    %213 = arith.negf %207 : vector<8x128xf32>
    %214 = math.exp %213 : vector<8x128xf32>
    %cst_105 = arith.constant 1.000000e+00 : f32
    %215 = vector.broadcast %cst_105 : f32 to vector<8x128xf32>
    %216 = arith.addf %215, %214 : vector<8x128xf32>
    %217 = arith.divf %215, %216 : vector<8x128xf32>
    %218 = vector.extract_strided_slice %207 {offsets = [0, 64], sizes = [8, 32], strides = [1, 1]} : vector<8x128xf32> to vector<8x32xf32>
    %219 = math.tanh %218 : vector<8x32xf32>
    %220 = vector.extract_strided_slice %217 {offsets = [0, 32], sizes = [8, 32], strides = [1, 1]} : vector<8x128xf32> to vector<8x32xf32>
    %221 = arith.mulf %220, %178 : vector<8x32xf32>
    %222 = vector.extract_strided_slice %217 {offsets = [0, 0], sizes = [8, 32], strides = [1, 1]} : vector<8x128xf32> to vector<8x32xf32>
    %223 = arith.mulf %222, %219 : vector<8x32xf32>
    %224 = arith.addf %221, %223 : vector<8x32xf32>
    %225 = vector.extract_strided_slice %217 {offsets = [0, 96], sizes = [8, 32], strides = [1, 1]} : vector<8x128xf32> to vector<8x32xf32>
    %226 = math.tanh %224 : vector<8x32xf32>
    %227 = arith.mulf %225, %226 : vector<8x32xf32>
    %228 = arith.negf %212 : vector<8x128xf32>
    %229 = math.exp %228 : vector<8x128xf32>
    %cst_106 = arith.constant 1.000000e+00 : f32
    %230 = vector.broadcast %cst_106 : f32 to vector<8x128xf32>
    %231 = arith.addf %230, %229 : vector<8x128xf32>
    %232 = arith.divf %230, %231 : vector<8x128xf32>
    %233 = vector.extract_strided_slice %212 {offsets = [0, 64], sizes = [8, 32], strides = [1, 1]} : vector<8x128xf32> to vector<8x32xf32>
    %234 = math.tanh %233 : vector<8x32xf32>
    %235 = vector.extract_strided_slice %232 {offsets = [0, 32], sizes = [8, 32], strides = [1, 1]} : vector<8x128xf32> to vector<8x32xf32>
    %236 = arith.mulf %235, %193 : vector<8x32xf32>
    %237 = vector.extract_strided_slice %232 {offsets = [0, 0], sizes = [8, 32], strides = [1, 1]} : vector<8x128xf32> to vector<8x32xf32>
    %238 = arith.mulf %237, %234 : vector<8x32xf32>
    %239 = arith.addf %236, %238 : vector<8x32xf32>
    %240 = vector.extract_strided_slice %232 {offsets = [0, 96], sizes = [8, 32], strides = [1, 1]} : vector<8x128xf32> to vector<8x32xf32>
    %241 = math.tanh %239 : vector<8x32xf32>
    %242 = arith.mulf %240, %241 : vector<8x32xf32>
    %c4_107 = arith.constant 4 : index
    %c0_108 = arith.constant 0 : index
    %c0_109 = arith.constant 0 : index
    %243 = vector.load %arg21[%c4_107, %c0_108, %c0_109] : memref<8x8x64xf32, #tpu.memory_space<vmem>>, vector<1x8x32xf32>
    %244 = vector.shape_cast %243 : vector<1x8x32xf32> to vector<8x32xf32>
    %245 = vector.shape_cast %227 : vector<8x32xf32> to vector<1x8x32xf32>
    tpu.vector_store %arg21[%c4_107, %c0_108, %c0_109], %245 {strides = array<i32>} : memref<8x8x64xf32, #tpu.memory_space<vmem>>, vector<1x8x32xf32>,
    %c3_110 = arith.constant 3 : index
    %c0_111 = arith.constant 0 : index
    %c32_112 = arith.constant 32 : index
    %246 = vector.load %arg21[%c3_110, %c0_111, %c32_112] : memref<8x8x64xf32, #tpu.memory_space<vmem>>, vector<1x8x32xf32>
    %247 = vector.shape_cast %246 : vector<1x8x32xf32> to vector<8x32xf32>
    %248 = vector.shape_cast %242 : vector<8x32xf32> to vector<1x8x32xf32>
    tpu.vector_store %arg21[%c3_110, %c0_111, %c32_112], %248 {strides = array<i32>} : memref<8x8x64xf32, #tpu.memory_space<vmem>>, vector<1x8x32xf32>,
    %c5_113 = arith.constant 5 : index
    %c0_114 = arith.constant 0 : index
    %c0_115 = arith.constant 0 : index
    %249 = vector.load %arg19[%c5_113, %c0_114, %c0_115] : memref<8x8x128xf32, #tpu.memory_space<vmem>>, vector<1x8x128xf32>
    %250 = vector.shape_cast %249 : vector<1x8x128xf32> to vector<8x128xf32>
    %c0_116 = arith.constant 0 : index
    %c0_117 = arith.constant 0 : index
    %251 = vector.load %arg3[%c0_116, %c0_117] : memref<32x128xf32, #tpu.memory_space<vmem>>, vector<32x128xf32>
    %cst_118 = arith.constant dense<0.000000e+00> : vector<8x128xf32>
    %252 = tpu.matmul %227, %251, %cst_118 {dimension_numbers = #tpu.dot_dimension_numbers<[1], [0], [0], [1], [0, 0, 1, 1], [], []>} : vector<8x32xf32>, vector<32x128xf32>, vector<8x128xf32> -> vector<8x128xf32>
    %253 = arith.addf %250, %252 : vector<8x128xf32>
    %c2_119 = arith.constant 2 : index
    %c0_120 = arith.constant 0 : index
    %c0_121 = arith.constant 0 : index
    %254 = vector.load %arg20[%c2_119, %c0_120, %c0_121] : memref<8x8x128xf32, #tpu.memory_space<vmem>>, vector<1x8x128xf32>
    %255 = vector.shape_cast %254 : vector<1x8x128xf32> to vector<8x128xf32>
    %c0_122 = arith.constant 0 : index
    %c0_123 = arith.constant 0 : index
    %256 = vector.load %arg4[%c0_122, %c0_123] : memref<32x128xf32, #tpu.memory_space<vmem>>, vector<32x128xf32>
    %cst_124 = arith.constant dense<0.000000e+00> : vector<8x128xf32>
    %257 = tpu.matmul %242, %256, %cst_124 {dimension_numbers = #tpu.dot_dimension_numbers<[1], [0], [0], [1], [0, 0, 1, 1], [], []>} : vector<8x32xf32>, vector<32x128xf32>, vector<8x128xf32> -> vector<8x128xf32>
    %258 = arith.addf %255, %257 : vector<8x128xf32>
    %259 = arith.negf %253 : vector<8x128xf32>
    %260 = math.exp %259 : vector<8x128xf32>
    %cst_125 = arith.constant 1.000000e+00 : f32
    %261 = vector.broadcast %cst_125 : f32 to vector<8x128xf32>
    %262 = arith.addf %261, %260 : vector<8x128xf32>
    %263 = arith.divf %261, %262 : vector<8x128xf32>
    %264 = vector.extract_strided_slice %253 {offsets = [0, 64], sizes = [8, 32], strides = [1, 1]} : vector<8x128xf32> to vector<8x32xf32>
    %265 = math.tanh %264 : vector<8x32xf32>
    %266 = vector.extract_strided_slice %263 {offsets = [0, 32], sizes = [8, 32], strides = [1, 1]} : vector<8x128xf32> to vector<8x32xf32>
    %267 = arith.mulf %266, %224 : vector<8x32xf32>
    %268 = vector.extract_strided_slice %263 {offsets = [0, 0], sizes = [8, 32], strides = [1, 1]} : vector<8x128xf32> to vector<8x32xf32>
    %269 = arith.mulf %268, %265 : vector<8x32xf32>
    %270 = arith.addf %267, %269 : vector<8x32xf32>
    %271 = vector.extract_strided_slice %263 {offsets = [0, 96], sizes = [8, 32], strides = [1, 1]} : vector<8x128xf32> to vector<8x32xf32>
    %272 = math.tanh %270 : vector<8x32xf32>
    %273 = arith.mulf %271, %272 : vector<8x32xf32>
    %274 = arith.negf %258 : vector<8x128xf32>
    %275 = math.exp %274 : vector<8x128xf32>
    %cst_126 = arith.constant 1.000000e+00 : f32
    %276 = vector.broadcast %cst_126 : f32 to vector<8x128xf32>
    %277 = arith.addf %276, %275 : vector<8x128xf32>
    %278 = arith.divf %276, %277 : vector<8x128xf32>
    %279 = vector.extract_strided_slice %258 {offsets = [0, 64], sizes = [8, 32], strides = [1, 1]} : vector<8x128xf32> to vector<8x32xf32>
    %280 = math.tanh %279 : vector<8x32xf32>
    %281 = vector.extract_strided_slice %278 {offsets = [0, 32], sizes = [8, 32], strides = [1, 1]} : vector<8x128xf32> to vector<8x32xf32>
    %282 = arith.mulf %281, %239 : vector<8x32xf32>
    %283 = vector.extract_strided_slice %278 {offsets = [0, 0], sizes = [8, 32], strides = [1, 1]} : vector<8x128xf32> to vector<8x32xf32>
    %284 = arith.mulf %283, %280 : vector<8x32xf32>
    %285 = arith.addf %282, %284 : vector<8x32xf32>
    %286 = vector.extract_strided_slice %278 {offsets = [0, 96], sizes = [8, 32], strides = [1, 1]} : vector<8x128xf32> to vector<8x32xf32>
    %287 = math.tanh %285 : vector<8x32xf32>
    %288 = arith.mulf %286, %287 : vector<8x32xf32>
    %c5_127 = arith.constant 5 : index
    %c0_128 = arith.constant 0 : index
    %c0_129 = arith.constant 0 : index
    %289 = vector.load %arg21[%c5_127, %c0_128, %c0_129] : memref<8x8x64xf32, #tpu.memory_space<vmem>>, vector<1x8x32xf32>
    %290 = vector.shape_cast %289 : vector<1x8x32xf32> to vector<8x32xf32>
    %291 = vector.shape_cast %273 : vector<8x32xf32> to vector<1x8x32xf32>
    tpu.vector_store %arg21[%c5_127, %c0_128, %c0_129], %291 {strides = array<i32>} : memref<8x8x64xf32, #tpu.memory_space<vmem>>, vector<1x8x32xf32>,
    %c2_130 = arith.constant 2 : index
    %c0_131 = arith.constant 0 : index
    %c32_132 = arith.constant 32 : index
    %292 = vector.load %arg21[%c2_130, %c0_131, %c32_132] : memref<8x8x64xf32, #tpu.memory_space<vmem>>, vector<1x8x32xf32>
    %293 = vector.shape_cast %292 : vector<1x8x32xf32> to vector<8x32xf32>
    %294 = vector.shape_cast %288 : vector<8x32xf32> to vector<1x8x32xf32>
    tpu.vector_store %arg21[%c2_130, %c0_131, %c32_132], %294 {strides = array<i32>} : memref<8x8x64xf32, #tpu.memory_space<vmem>>, vector<1x8x32xf32>,
    %c6_133 = arith.constant 6 : index
    %c0_134 = arith.constant 0 : index
    %c0_135 = arith.constant 0 : index
    %295 = vector.load %arg19[%c6_133, %c0_134, %c0_135] : memref<8x8x128xf32, #tpu.memory_space<vmem>>, vector<1x8x128xf32>
    %296 = vector.shape_cast %295 : vector<1x8x128xf32> to vector<8x128xf32>
    %c0_136 = arith.constant 0 : index
    %c0_137 = arith.constant 0 : index
    %297 = vector.load %arg3[%c0_136, %c0_137] : memref<32x128xf32, #tpu.memory_space<vmem>>, vector<32x128xf32>
    %cst_138 = arith.constant dense<0.000000e+00> : vector<8x128xf32>
    %298 = tpu.matmul %273, %297, %cst_138 {dimension_numbers = #tpu.dot_dimension_numbers<[1], [0], [0], [1], [0, 0, 1, 1], [], []>} : vector<8x32xf32>, vector<32x128xf32>, vector<8x128xf32> -> vector<8x128xf32>
    %299 = arith.addf %296, %298 : vector<8x128xf32>
    %c1_139 = arith.constant 1 : index
    %c0_140 = arith.constant 0 : index
    %c0_141 = arith.constant 0 : index
    %300 = vector.load %arg20[%c1_139, %c0_140, %c0_141] : memref<8x8x128xf32, #tpu.memory_space<vmem>>, vector<1x8x128xf32>
    %301 = vector.shape_cast %300 : vector<1x8x128xf32> to vector<8x128xf32>
    %c0_142 = arith.constant 0 : index
    %c0_143 = arith.constant 0 : index
    %302 = vector.load %arg4[%c0_142, %c0_143] : memref<32x128xf32, #tpu.memory_space<vmem>>, vector<32x128xf32>
    %cst_144 = arith.constant dense<0.000000e+00> : vector<8x128xf32>
    %303 = tpu.matmul %288, %302, %cst_144 {dimension_numbers = #tpu.dot_dimension_numbers<[1], [0], [0], [1], [0, 0, 1, 1], [], []>} : vector<8x32xf32>, vector<32x128xf32>, vector<8x128xf32> -> vector<8x128xf32>
    %304 = arith.addf %301, %303 : vector<8x128xf32>
    %305 = arith.negf %299 : vector<8x128xf32>
    %306 = math.exp %305 : vector<8x128xf32>
    %cst_145 = arith.constant 1.000000e+00 : f32
    %307 = vector.broadcast %cst_145 : f32 to vector<8x128xf32>
    %308 = arith.addf %307, %306 : vector<8x128xf32>
    %309 = arith.divf %307, %308 : vector<8x128xf32>
    %310 = vector.extract_strided_slice %299 {offsets = [0, 64], sizes = [8, 32], strides = [1, 1]} : vector<8x128xf32> to vector<8x32xf32>
    %311 = math.tanh %310 : vector<8x32xf32>
    %312 = vector.extract_strided_slice %309 {offsets = [0, 32], sizes = [8, 32], strides = [1, 1]} : vector<8x128xf32> to vector<8x32xf32>
    %313 = arith.mulf %312, %270 : vector<8x32xf32>
    %314 = vector.extract_strided_slice %309 {offsets = [0, 0], sizes = [8, 32], strides = [1, 1]} : vector<8x128xf32> to vector<8x32xf32>
    %315 = arith.mulf %314, %311 : vector<8x32xf32>
    %316 = arith.addf %313, %315 : vector<8x32xf32>
    %317 = vector.extract_strided_slice %309 {offsets = [0, 96], sizes = [8, 32], strides = [1, 1]} : vector<8x128xf32> to vector<8x32xf32>
    %318 = math.tanh %316 : vector<8x32xf32>
    %319 = arith.mulf %317, %318 : vector<8x32xf32>
    %320 = arith.negf %304 : vector<8x128xf32>
    %321 = math.exp %320 : vector<8x128xf32>
    %cst_146 = arith.constant 1.000000e+00 : f32
    %322 = vector.broadcast %cst_146 : f32 to vector<8x128xf32>
    %323 = arith.addf %322, %321 : vector<8x128xf32>
    %324 = arith.divf %322, %323 : vector<8x128xf32>
    %325 = vector.extract_strided_slice %304 {offsets = [0, 64], sizes = [8, 32], strides = [1, 1]} : vector<8x128xf32> to vector<8x32xf32>
    %326 = math.tanh %325 : vector<8x32xf32>
    %327 = vector.extract_strided_slice %324 {offsets = [0, 32], sizes = [8, 32], strides = [1, 1]} : vector<8x128xf32> to vector<8x32xf32>
    %328 = arith.mulf %327, %285 : vector<8x32xf32>
    %329 = vector.extract_strided_slice %324 {offsets = [0, 0], sizes = [8, 32], strides = [1, 1]} : vector<8x128xf32> to vector<8x32xf32>
    %330 = arith.mulf %329, %326 : vector<8x32xf32>
    %331 = arith.addf %328, %330 : vector<8x32xf32>
    %332 = vector.extract_strided_slice %324 {offsets = [0, 96], sizes = [8, 32], strides = [1, 1]} : vector<8x128xf32> to vector<8x32xf32>
    %333 = math.tanh %331 : vector<8x32xf32>
    %334 = arith.mulf %332, %333 : vector<8x32xf32>
    %c6_147 = arith.constant 6 : index
    %c0_148 = arith.constant 0 : index
    %c0_149 = arith.constant 0 : index
    %335 = vector.load %arg21[%c6_147, %c0_148, %c0_149] : memref<8x8x64xf32, #tpu.memory_space<vmem>>, vector<1x8x32xf32>
    %336 = vector.shape_cast %335 : vector<1x8x32xf32> to vector<8x32xf32>
    %337 = vector.shape_cast %319 : vector<8x32xf32> to vector<1x8x32xf32>
    tpu.vector_store %arg21[%c6_147, %c0_148, %c0_149], %337 {strides = array<i32>} : memref<8x8x64xf32, #tpu.memory_space<vmem>>, vector<1x8x32xf32>,
    %c1_150 = arith.constant 1 : index
    %c0_151 = arith.constant 0 : index
    %c32_152 = arith.constant 32 : index
    %338 = vector.load %arg21[%c1_150, %c0_151, %c32_152] : memref<8x8x64xf32, #tpu.memory_space<vmem>>, vector<1x8x32xf32>
    %339 = vector.shape_cast %338 : vector<1x8x32xf32> to vector<8x32xf32>
    %340 = vector.shape_cast %334 : vector<8x32xf32> to vector<1x8x32xf32>
    tpu.vector_store %arg21[%c1_150, %c0_151, %c32_152], %340 {strides = array<i32>} : memref<8x8x64xf32, #tpu.memory_space<vmem>>, vector<1x8x32xf32>,
    %c7_153 = arith.constant 7 : index
    %c0_154 = arith.constant 0 : index
    %c0_155 = arith.constant 0 : index
    %341 = vector.load %arg19[%c7_153, %c0_154, %c0_155] : memref<8x8x128xf32, #tpu.memory_space<vmem>>, vector<1x8x128xf32>
    %342 = vector.shape_cast %341 : vector<1x8x128xf32> to vector<8x128xf32>
    %c0_156 = arith.constant 0 : index
    %c0_157 = arith.constant 0 : index
    %343 = vector.load %arg3[%c0_156, %c0_157] : memref<32x128xf32, #tpu.memory_space<vmem>>, vector<32x128xf32>
    %cst_158 = arith.constant dense<0.000000e+00> : vector<8x128xf32>
    %344 = tpu.matmul %319, %343, %cst_158 {dimension_numbers = #tpu.dot_dimension_numbers<[1], [0], [0], [1], [0, 0, 1, 1], [], []>} : vector<8x32xf32>, vector<32x128xf32>, vector<8x128xf32> -> vector<8x128xf32>
    %345 = arith.addf %342, %344 : vector<8x128xf32>
    %c0_159 = arith.constant 0 : index
    %c0_160 = arith.constant 0 : index
    %c0_161 = arith.constant 0 : index
    %346 = vector.load %arg20[%c0_159, %c0_160, %c0_161] : memref<8x8x128xf32, #tpu.memory_space<vmem>>, vector<1x8x128xf32>
    %347 = vector.shape_cast %346 : vector<1x8x128xf32> to vector<8x128xf32>
    %c0_162 = arith.constant 0 : index
    %c0_163 = arith.constant 0 : index
    %348 = vector.load %arg4[%c0_162, %c0_163] : memref<32x128xf32, #tpu.memory_space<vmem>>, vector<32x128xf32>
    %cst_164 = arith.constant dense<0.000000e+00> : vector<8x128xf32>
    %349 = tpu.matmul %334, %348, %cst_164 {dimension_numbers = #tpu.dot_dimension_numbers<[1], [0], [0], [1], [0, 0, 1, 1], [], []>} : vector<8x32xf32>, vector<32x128xf32>, vector<8x128xf32> -> vector<8x128xf32>
    %350 = arith.addf %347, %349 : vector<8x128xf32>
    %351 = arith.negf %345 : vector<8x128xf32>
    %352 = math.exp %351 : vector<8x128xf32>
    %cst_165 = arith.constant 1.000000e+00 : f32
    %353 = vector.broadcast %cst_165 : f32 to vector<8x128xf32>
    %354 = arith.addf %353, %352 : vector<8x128xf32>
    %355 = arith.divf %353, %354 : vector<8x128xf32>
    %356 = vector.extract_strided_slice %345 {offsets = [0, 64], sizes = [8, 32], strides = [1, 1]} : vector<8x128xf32> to vector<8x32xf32>
    %357 = math.tanh %356 : vector<8x32xf32>
    %358 = vector.extract_strided_slice %355 {offsets = [0, 32], sizes = [8, 32], strides = [1, 1]} : vector<8x128xf32> to vector<8x32xf32>
    %359 = arith.mulf %358, %316 : vector<8x32xf32>
    %360 = vector.extract_strided_slice %355 {offsets = [0, 0], sizes = [8, 32], strides = [1, 1]} : vector<8x128xf32> to vector<8x32xf32>
    %361 = arith.mulf %360, %357 : vector<8x32xf32>
    %362 = arith.addf %359, %361 : vector<8x32xf32>
    %363 = vector.extract_strided_slice %355 {offsets = [0, 96], sizes = [8, 32], strides = [1, 1]} : vector<8x128xf32> to vector<8x32xf32>
    %364 = math.tanh %362 : vector<8x32xf32>
    %365 = arith.mulf %363, %364 : vector<8x32xf32>
    %366 = arith.negf %350 : vector<8x128xf32>
    %367 = math.exp %366 : vector<8x128xf32>
    %cst_166 = arith.constant 1.000000e+00 : f32
    %368 = vector.broadcast %cst_166 : f32 to vector<8x128xf32>
    %369 = arith.addf %368, %367 : vector<8x128xf32>
    %370 = arith.divf %368, %369 : vector<8x128xf32>
    %371 = vector.extract_strided_slice %350 {offsets = [0, 64], sizes = [8, 32], strides = [1, 1]} : vector<8x128xf32> to vector<8x32xf32>
    %372 = math.tanh %371 : vector<8x32xf32>
    %373 = vector.extract_strided_slice %370 {offsets = [0, 32], sizes = [8, 32], strides = [1, 1]} : vector<8x128xf32> to vector<8x32xf32>
    %374 = arith.mulf %373, %331 : vector<8x32xf32>
    %375 = vector.extract_strided_slice %370 {offsets = [0, 0], sizes = [8, 32], strides = [1, 1]} : vector<8x128xf32> to vector<8x32xf32>
    %376 = arith.mulf %375, %372 : vector<8x32xf32>
    %377 = arith.addf %374, %376 : vector<8x32xf32>
    %378 = vector.extract_strided_slice %370 {offsets = [0, 96], sizes = [8, 32], strides = [1, 1]} : vector<8x128xf32> to vector<8x32xf32>
    %379 = math.tanh %377 : vector<8x32xf32>
    %380 = arith.mulf %378, %379 : vector<8x32xf32>
    %c7_167 = arith.constant 7 : index
    %c0_168 = arith.constant 0 : index
    %c0_169 = arith.constant 0 : index
    %381 = vector.load %arg21[%c7_167, %c0_168, %c0_169] : memref<8x8x64xf32, #tpu.memory_space<vmem>>, vector<1x8x32xf32>
    %382 = vector.shape_cast %381 : vector<1x8x32xf32> to vector<8x32xf32>
    %383 = vector.shape_cast %365 : vector<8x32xf32> to vector<1x8x32xf32>
    tpu.vector_store %arg21[%c7_167, %c0_168, %c0_169], %383 {strides = array<i32>} : memref<8x8x64xf32, #tpu.memory_space<vmem>>, vector<1x8x32xf32>,
    %c0_170 = arith.constant 0 : index
    %c0_171 = arith.constant 0 : index
    %c32_172 = arith.constant 32 : index
    %384 = vector.load %arg21[%c0_170, %c0_171, %c32_172] : memref<8x8x64xf32, #tpu.memory_space<vmem>>, vector<1x8x32xf32>
    %385 = vector.shape_cast %384 : vector<1x8x32xf32> to vector<8x32xf32>
    %386 = vector.shape_cast %380 : vector<8x32xf32> to vector<1x8x32xf32>
    tpu.vector_store %arg21[%c0_170, %c0_171, %c32_172], %386 {strides = array<i32>} : memref<8x8x64xf32, #tpu.memory_space<vmem>>, vector<1x8x32xf32>,
    %c0_173 = arith.constant 0 : index
    %c0_174 = arith.constant 0 : index
    %c0_175 = arith.constant 0 : index
    %387 = vector.load %arg21[%c0_173, %c0_174, %c0_175] : memref<8x8x64xf32, #tpu.memory_space<vmem>>, vector<8x8x64xf32>
    %388 = vector.shape_cast %387 : vector<8x8x64xf32> to vector<64x64xf32>
    %c0_176 = arith.constant 0 : index
    %c0_177 = arith.constant 0 : index
    %389 = vector.load %arg7[%c0_176, %c0_177] : memref<64x128xf32, #tpu.memory_space<vmem>>, vector<64x128xf32>
    %cst_178 = arith.constant dense<0.000000e+00> : vector<64x128xf32>
    %390 = tpu.matmul %388, %389, %cst_178 {dimension_numbers = #tpu.dot_dimension_numbers<[1], [0], [0], [1], [0, 0, 1, 1], [], []>} : vector<64x64xf32>, vector<64x128xf32>, vector<64x128xf32> -> vector<64x128xf32>
    %c0_179 = arith.constant 0 : index
    %c0_180 = arith.constant 0 : index
    %391 = vector.load %arg11[%c0_179, %c0_180] : memref<1x128xf32, #tpu.memory_space<vmem>>, vector<1x128xf32>
    %392 = vector.broadcast %391 : vector<1x128xf32> to vector<64x128xf32>
    %393 = arith.addf %390, %392 : vector<64x128xf32>
    %394 = vector.shape_cast %393 : vector<64x128xf32> to vector<8x8x128xf32>
    %c0_181 = arith.constant 0 : index
    %c0_182 = arith.constant 0 : index
    %c0_183 = arith.constant 0 : index
    %395 = vector.load %arg19[%c0_181, %c0_182, %c0_183] : memref<8x8x128xf32, #tpu.memory_space<vmem>>, vector<8x8x128xf32>
    tpu.vector_store %arg19[%c0_181, %c0_182, %c0_183], %394 {strides = array<i32>} : memref<8x8x128xf32, #tpu.memory_space<vmem>>, vector<8x8x128xf32>,
    %c0_184 = arith.constant 0 : index
    %c0_185 = arith.constant 0 : index
    %c0_186 = arith.constant 0 : index
    %396 = vector.load %arg21[%c0_184, %c0_185, %c0_186] : memref<8x8x64xf32, #tpu.memory_space<vmem>>, vector<8x8x64xf32>
    %397 = vector.shape_cast %396 : vector<8x8x64xf32> to vector<64x64xf32>
    %c0_187 = arith.constant 0 : index
    %c0_188 = arith.constant 0 : index
    %398 = vector.load %arg8[%c0_187, %c0_188] : memref<64x128xf32, #tpu.memory_space<vmem>>, vector<64x128xf32>
    %cst_189 = arith.constant dense<0.000000e+00> : vector<64x128xf32>
    %399 = tpu.matmul %397, %398, %cst_189 {dimension_numbers = #tpu.dot_dimension_numbers<[1], [0], [0], [1], [0, 0, 1, 1], [], []>} : vector<64x64xf32>, vector<64x128xf32>, vector<64x128xf32> -> vector<64x128xf32>
    %c0_190 = arith.constant 0 : index
    %c0_191 = arith.constant 0 : index
    %400 = vector.load %arg12[%c0_190, %c0_191] : memref<1x128xf32, #tpu.memory_space<vmem>>, vector<1x128xf32>
    %401 = vector.broadcast %400 : vector<1x128xf32> to vector<64x128xf32>
    %402 = arith.addf %399, %401 : vector<64x128xf32>
    %403 = vector.shape_cast %402 : vector<64x128xf32> to vector<8x8x128xf32>
    %c0_192 = arith.constant 0 : index
    %c0_193 = arith.constant 0 : index
    %c0_194 = arith.constant 0 : index
    %404 = vector.load %arg20[%c0_192, %c0_193, %c0_194] : memref<8x8x128xf32, #tpu.memory_space<vmem>>, vector<8x8x128xf32>
    tpu.vector_store %arg20[%c0_192, %c0_193, %c0_194], %403 {strides = array<i32>} : memref<8x8x128xf32, #tpu.memory_space<vmem>>, vector<8x8x128xf32>,
    %cst_195 = arith.constant 0.000000e+00 : f32
    %405 = vector.broadcast %cst_195 : f32 to vector<8x32xf32>
    %c0_196 = arith.constant 0 : index
    %c0_197 = arith.constant 0 : index
    %c0_198 = arith.constant 0 : index
    %406 = vector.load %arg19[%c0_196, %c0_197, %c0_198] : memref<8x8x128xf32, #tpu.memory_space<vmem>>, vector<1x8x128xf32>
    %407 = vector.shape_cast %406 : vector<1x8x128xf32> to vector<8x128xf32>
    %c0_199 = arith.constant 0 : index
    %c0_200 = arith.constant 0 : index
    %408 = vector.load %arg9[%c0_199, %c0_200] : memref<32x128xf32, #tpu.memory_space<vmem>>, vector<32x128xf32>
    %cst_201 = arith.constant dense<0.000000e+00> : vector<8x128xf32>
    %409 = tpu.matmul %405, %408, %cst_201 {dimension_numbers = #tpu.dot_dimension_numbers<[1], [0], [0], [1], [0, 0, 1, 1], [], []>} : vector<8x32xf32>, vector<32x128xf32>, vector<8x128xf32> -> vector<8x128xf32>
    %410 = arith.addf %407, %409 : vector<8x128xf32>
    %c7_202 = arith.constant 7 : index
    %c0_203 = arith.constant 0 : index
    %c0_204 = arith.constant 0 : index
    %411 = vector.load %arg20[%c7_202, %c0_203, %c0_204] : memref<8x8x128xf32, #tpu.memory_space<vmem>>, vector<1x8x128xf32>
    %412 = vector.shape_cast %411 : vector<1x8x128xf32> to vector<8x128xf32>
    %c0_205 = arith.constant 0 : index
    %c0_206 = arith.constant 0 : index
    %413 = vector.load %arg10[%c0_205, %c0_206] : memref<32x128xf32, #tpu.memory_space<vmem>>, vector<32x128xf32>
    %cst_207 = arith.constant dense<0.000000e+00> : vector<8x128xf32>
    %414 = tpu.matmul %405, %413, %cst_207 {dimension_numbers = #tpu.dot_dimension_numbers<[1], [0], [0], [1], [0, 0, 1, 1], [], []>} : vector<8x32xf32>, vector<32x128xf32>, vector<8x128xf32> -> vector<8x128xf32>
    %415 = arith.addf %412, %414 : vector<8x128xf32>
    %416 = arith.negf %410 : vector<8x128xf32>
    %417 = math.exp %416 : vector<8x128xf32>
    %cst_208 = arith.constant 1.000000e+00 : f32
    %418 = vector.broadcast %cst_208 : f32 to vector<8x128xf32>
    %419 = arith.addf %418, %417 : vector<8x128xf32>
    %420 = arith.divf %418, %419 : vector<8x128xf32>
    %421 = vector.extract_strided_slice %410 {offsets = [0, 64], sizes = [8, 32], strides = [1, 1]} : vector<8x128xf32> to vector<8x32xf32>
    %422 = math.tanh %421 : vector<8x32xf32>
    %423 = vector.extract_strided_slice %420 {offsets = [0, 32], sizes = [8, 32], strides = [1, 1]} : vector<8x128xf32> to vector<8x32xf32>
    %424 = arith.mulf %423, %405 : vector<8x32xf32>
    %425 = vector.extract_strided_slice %420 {offsets = [0, 0], sizes = [8, 32], strides = [1, 1]} : vector<8x128xf32> to vector<8x32xf32>
    %426 = arith.mulf %425, %422 : vector<8x32xf32>
    %427 = arith.addf %424, %426 : vector<8x32xf32>
    %428 = vector.extract_strided_slice %420 {offsets = [0, 96], sizes = [8, 32], strides = [1, 1]} : vector<8x128xf32> to vector<8x32xf32>
    %429 = math.tanh %427 : vector<8x32xf32>
    %430 = arith.mulf %428, %429 : vector<8x32xf32>
    %431 = arith.negf %415 : vector<8x128xf32>
    %432 = math.exp %431 : vector<8x128xf32>
    %cst_209 = arith.constant 1.000000e+00 : f32
    %433 = vector.broadcast %cst_209 : f32 to vector<8x128xf32>
    %434 = arith.addf %433, %432 : vector<8x128xf32>
    %435 = arith.divf %433, %434 : vector<8x128xf32>
    %436 = vector.extract_strided_slice %415 {offsets = [0, 64], sizes = [8, 32], strides = [1, 1]} : vector<8x128xf32> to vector<8x32xf32>
    %437 = math.tanh %436 : vector<8x32xf32>
    %438 = vector.extract_strided_slice %435 {offsets = [0, 32], sizes = [8, 32], strides = [1, 1]} : vector<8x128xf32> to vector<8x32xf32>
    %439 = arith.mulf %438, %405 : vector<8x32xf32>
    %440 = vector.extract_strided_slice %435 {offsets = [0, 0], sizes = [8, 32], strides = [1, 1]} : vector<8x128xf32> to vector<8x32xf32>
    %441 = arith.mulf %440, %437 : vector<8x32xf32>
    %442 = arith.addf %439, %441 : vector<8x32xf32>
    %443 = vector.extract_strided_slice %435 {offsets = [0, 96], sizes = [8, 32], strides = [1, 1]} : vector<8x128xf32> to vector<8x32xf32>
    %444 = math.tanh %442 : vector<8x32xf32>
    %445 = arith.mulf %443, %444 : vector<8x32xf32>
    %c1_210 = arith.constant 1 : index
    %c0_211 = arith.constant 0 : index
    %c0_212 = arith.constant 0 : index
    %446 = vector.load %arg19[%c1_210, %c0_211, %c0_212] : memref<8x8x128xf32, #tpu.memory_space<vmem>>, vector<1x8x128xf32>
    %447 = vector.shape_cast %446 : vector<1x8x128xf32> to vector<8x128xf32>
    %c0_213 = arith.constant 0 : index
    %c0_214 = arith.constant 0 : index
    %448 = vector.load %arg9[%c0_213, %c0_214] : memref<32x128xf32, #tpu.memory_space<vmem>>, vector<32x128xf32>
    %cst_215 = arith.constant dense<0.000000e+00> : vector<8x128xf32>
    %449 = tpu.matmul %430, %448, %cst_215 {dimension_numbers = #tpu.dot_dimension_numbers<[1], [0], [0], [1], [0, 0, 1, 1], [], []>} : vector<8x32xf32>, vector<32x128xf32>, vector<8x128xf32> -> vector<8x128xf32>
    %450 = arith.addf %447, %449 : vector<8x128xf32>
    %c6_216 = arith.constant 6 : index
    %c0_217 = arith.constant 0 : index
    %c0_218 = arith.constant 0 : index
    %451 = vector.load %arg20[%c6_216, %c0_217, %c0_218] : memref<8x8x128xf32, #tpu.memory_space<vmem>>, vector<1x8x128xf32>
    %452 = vector.shape_cast %451 : vector<1x8x128xf32> to vector<8x128xf32>
    %c0_219 = arith.constant 0 : index
    %c0_220 = arith.constant 0 : index
    %453 = vector.load %arg10[%c0_219, %c0_220] : memref<32x128xf32, #tpu.memory_space<vmem>>, vector<32x128xf32>
    %cst_221 = arith.constant dense<0.000000e+00> : vector<8x128xf32>
    %454 = tpu.matmul %445, %453, %cst_221 {dimension_numbers = #tpu.dot_dimension_numbers<[1], [0], [0], [1], [0, 0, 1, 1], [], []>} : vector<8x32xf32>, vector<32x128xf32>, vector<8x128xf32> -> vector<8x128xf32>
    %455 = arith.addf %452, %454 : vector<8x128xf32>
    %456 = arith.negf %450 : vector<8x128xf32>
    %457 = math.exp %456 : vector<8x128xf32>
    %cst_222 = arith.constant 1.000000e+00 : f32
    %458 = vector.broadcast %cst_222 : f32 to vector<8x128xf32>
    %459 = arith.addf %458, %457 : vector<8x128xf32>
    %460 = arith.divf %458, %459 : vector<8x128xf32>
    %461 = vector.extract_strided_slice %450 {offsets = [0, 64], sizes = [8, 32], strides = [1, 1]} : vector<8x128xf32> to vector<8x32xf32>
    %462 = math.tanh %461 : vector<8x32xf32>
    %463 = vector.extract_strided_slice %460 {offsets = [0, 32], sizes = [8, 32], strides = [1, 1]} : vector<8x128xf32> to vector<8x32xf32>
    %464 = arith.mulf %463, %427 : vector<8x32xf32>
    %465 = vector.extract_strided_slice %460 {offsets = [0, 0], sizes = [8, 32], strides = [1, 1]} : vector<8x128xf32> to vector<8x32xf32>
    %466 = arith.mulf %465, %462 : vector<8x32xf32>
    %467 = arith.addf %464, %466 : vector<8x32xf32>
    %468 = vector.extract_strided_slice %460 {offsets = [0, 96], sizes = [8, 32], strides = [1, 1]} : vector<8x128xf32> to vector<8x32xf32>
    %469 = math.tanh %467 : vector<8x32xf32>
    %470 = arith.mulf %468, %469 : vector<8x32xf32>
    %471 = arith.negf %455 : vector<8x128xf32>
    %472 = math.exp %471 : vector<8x128xf32>
    %cst_223 = arith.constant 1.000000e+00 : f32
    %473 = vector.broadcast %cst_223 : f32 to vector<8x128xf32>
    %474 = arith.addf %473, %472 : vector<8x128xf32>
    %475 = arith.divf %473, %474 : vector<8x128xf32>
    %476 = vector.extract_strided_slice %455 {offsets = [0, 64], sizes = [8, 32], strides = [1, 1]} : vector<8x128xf32> to vector<8x32xf32>
    %477 = math.tanh %476 : vector<8x32xf32>
    %478 = vector.extract_strided_slice %475 {offsets = [0, 32], sizes = [8, 32], strides = [1, 1]} : vector<8x128xf32> to vector<8x32xf32>
    %479 = arith.mulf %478, %442 : vector<8x32xf32>
    %480 = vector.extract_strided_slice %475 {offsets = [0, 0], sizes = [8, 32], strides = [1, 1]} : vector<8x128xf32> to vector<8x32xf32>
    %481 = arith.mulf %480, %477 : vector<8x32xf32>
    %482 = arith.addf %479, %481 : vector<8x32xf32>
    %483 = vector.extract_strided_slice %475 {offsets = [0, 96], sizes = [8, 32], strides = [1, 1]} : vector<8x128xf32> to vector<8x32xf32>
    %484 = math.tanh %482 : vector<8x32xf32>
    %485 = arith.mulf %483, %484 : vector<8x32xf32>
    %c2_224 = arith.constant 2 : index
    %c0_225 = arith.constant 0 : index
    %c0_226 = arith.constant 0 : index
    %486 = vector.load %arg19[%c2_224, %c0_225, %c0_226] : memref<8x8x128xf32, #tpu.memory_space<vmem>>, vector<1x8x128xf32>
    %487 = vector.shape_cast %486 : vector<1x8x128xf32> to vector<8x128xf32>
    %c0_227 = arith.constant 0 : index
    %c0_228 = arith.constant 0 : index
    %488 = vector.load %arg9[%c0_227, %c0_228] : memref<32x128xf32, #tpu.memory_space<vmem>>, vector<32x128xf32>
    %cst_229 = arith.constant dense<0.000000e+00> : vector<8x128xf32>
    %489 = tpu.matmul %470, %488, %cst_229 {dimension_numbers = #tpu.dot_dimension_numbers<[1], [0], [0], [1], [0, 0, 1, 1], [], []>} : vector<8x32xf32>, vector<32x128xf32>, vector<8x128xf32> -> vector<8x128xf32>
    %490 = arith.addf %487, %489 : vector<8x128xf32>
    %c5_230 = arith.constant 5 : index
    %c0_231 = arith.constant 0 : index
    %c0_232 = arith.constant 0 : index
    %491 = vector.load %arg20[%c5_230, %c0_231, %c0_232] : memref<8x8x128xf32, #tpu.memory_space<vmem>>, vector<1x8x128xf32>
    %492 = vector.shape_cast %491 : vector<1x8x128xf32> to vector<8x128xf32>
    %c0_233 = arith.constant 0 : index
    %c0_234 = arith.constant 0 : index
    %493 = vector.load %arg10[%c0_233, %c0_234] : memref<32x128xf32, #tpu.memory_space<vmem>>, vector<32x128xf32>
    %cst_235 = arith.constant dense<0.000000e+00> : vector<8x128xf32>
    %494 = tpu.matmul %485, %493, %cst_235 {dimension_numbers = #tpu.dot_dimension_numbers<[1], [0], [0], [1], [0, 0, 1, 1], [], []>} : vector<8x32xf32>, vector<32x128xf32>, vector<8x128xf32> -> vector<8x128xf32>
    %495 = arith.addf %492, %494 : vector<8x128xf32>
    %496 = arith.negf %490 : vector<8x128xf32>
    %497 = math.exp %496 : vector<8x128xf32>
    %cst_236 = arith.constant 1.000000e+00 : f32
    %498 = vector.broadcast %cst_236 : f32 to vector<8x128xf32>
    %499 = arith.addf %498, %497 : vector<8x128xf32>
    %500 = arith.divf %498, %499 : vector<8x128xf32>
    %501 = vector.extract_strided_slice %490 {offsets = [0, 64], sizes = [8, 32], strides = [1, 1]} : vector<8x128xf32> to vector<8x32xf32>
    %502 = math.tanh %501 : vector<8x32xf32>
    %503 = vector.extract_strided_slice %500 {offsets = [0, 32], sizes = [8, 32], strides = [1, 1]} : vector<8x128xf32> to vector<8x32xf32>
    %504 = arith.mulf %503, %467 : vector<8x32xf32>
    %505 = vector.extract_strided_slice %500 {offsets = [0, 0], sizes = [8, 32], strides = [1, 1]} : vector<8x128xf32> to vector<8x32xf32>
    %506 = arith.mulf %505, %502 : vector<8x32xf32>
    %507 = arith.addf %504, %506 : vector<8x32xf32>
    %508 = vector.extract_strided_slice %500 {offsets = [0, 96], sizes = [8, 32], strides = [1, 1]} : vector<8x128xf32> to vector<8x32xf32>
    %509 = math.tanh %507 : vector<8x32xf32>
    %510 = arith.mulf %508, %509 : vector<8x32xf32>
    %511 = arith.negf %495 : vector<8x128xf32>
    %512 = math.exp %511 : vector<8x128xf32>
    %cst_237 = arith.constant 1.000000e+00 : f32
    %513 = vector.broadcast %cst_237 : f32 to vector<8x128xf32>
    %514 = arith.addf %513, %512 : vector<8x128xf32>
    %515 = arith.divf %513, %514 : vector<8x128xf32>
    %516 = vector.extract_strided_slice %495 {offsets = [0, 64], sizes = [8, 32], strides = [1, 1]} : vector<8x128xf32> to vector<8x32xf32>
    %517 = math.tanh %516 : vector<8x32xf32>
    %518 = vector.extract_strided_slice %515 {offsets = [0, 32], sizes = [8, 32], strides = [1, 1]} : vector<8x128xf32> to vector<8x32xf32>
    %519 = arith.mulf %518, %482 : vector<8x32xf32>
    %520 = vector.extract_strided_slice %515 {offsets = [0, 0], sizes = [8, 32], strides = [1, 1]} : vector<8x128xf32> to vector<8x32xf32>
    %521 = arith.mulf %520, %517 : vector<8x32xf32>
    %522 = arith.addf %519, %521 : vector<8x32xf32>
    %523 = vector.extract_strided_slice %515 {offsets = [0, 96], sizes = [8, 32], strides = [1, 1]} : vector<8x128xf32> to vector<8x32xf32>
    %524 = math.tanh %522 : vector<8x32xf32>
    %525 = arith.mulf %523, %524 : vector<8x32xf32>
    %c3_238 = arith.constant 3 : index
    %c0_239 = arith.constant 0 : index
    %c0_240 = arith.constant 0 : index
    %526 = vector.load %arg19[%c3_238, %c0_239, %c0_240] : memref<8x8x128xf32, #tpu.memory_space<vmem>>, vector<1x8x128xf32>
    %527 = vector.shape_cast %526 : vector<1x8x128xf32> to vector<8x128xf32>
    %c0_241 = arith.constant 0 : index
    %c0_242 = arith.constant 0 : index
    %528 = vector.load %arg9[%c0_241, %c0_242] : memref<32x128xf32, #tpu.memory_space<vmem>>, vector<32x128xf32>
    %cst_243 = arith.constant dense<0.000000e+00> : vector<8x128xf32>
    %529 = tpu.matmul %510, %528, %cst_243 {dimension_numbers = #tpu.dot_dimension_numbers<[1], [0], [0], [1], [0, 0, 1, 1], [], []>} : vector<8x32xf32>, vector<32x128xf32>, vector<8x128xf32> -> vector<8x128xf32>
    %530 = arith.addf %527, %529 : vector<8x128xf32>
    %c4_244 = arith.constant 4 : index
    %c0_245 = arith.constant 0 : index
    %c0_246 = arith.constant 0 : index
    %531 = vector.load %arg20[%c4_244, %c0_245, %c0_246] : memref<8x8x128xf32, #tpu.memory_space<vmem>>, vector<1x8x128xf32>
    %532 = vector.shape_cast %531 : vector<1x8x128xf32> to vector<8x128xf32>
    %c0_247 = arith.constant 0 : index
    %c0_248 = arith.constant 0 : index
    %533 = vector.load %arg10[%c0_247, %c0_248] : memref<32x128xf32, #tpu.memory_space<vmem>>, vector<32x128xf32>
    %cst_249 = arith.constant dense<0.000000e+00> : vector<8x128xf32>
    %534 = tpu.matmul %525, %533, %cst_249 {dimension_numbers = #tpu.dot_dimension_numbers<[1], [0], [0], [1], [0, 0, 1, 1], [], []>} : vector<8x32xf32>, vector<32x128xf32>, vector<8x128xf32> -> vector<8x128xf32>
    %535 = arith.addf %532, %534 : vector<8x128xf32>
    %536 = arith.negf %530 : vector<8x128xf32>
    %537 = math.exp %536 : vector<8x128xf32>
    %cst_250 = arith.constant 1.000000e+00 : f32
    %538 = vector.broadcast %cst_250 : f32 to vector<8x128xf32>
    %539 = arith.addf %538, %537 : vector<8x128xf32>
    %540 = arith.divf %538, %539 : vector<8x128xf32>
    %541 = vector.extract_strided_slice %530 {offsets = [0, 64], sizes = [8, 32], strides = [1, 1]} : vector<8x128xf32> to vector<8x32xf32>
    %542 = math.tanh %541 : vector<8x32xf32>
    %543 = vector.extract_strided_slice %540 {offsets = [0, 32], sizes = [8, 32], strides = [1, 1]} : vector<8x128xf32> to vector<8x32xf32>
    %544 = arith.mulf %543, %507 : vector<8x32xf32>
    %545 = vector.extract_strided_slice %540 {offsets = [0, 0], sizes = [8, 32], strides = [1, 1]} : vector<8x128xf32> to vector<8x32xf32>
    %546 = arith.mulf %545, %542 : vector<8x32xf32>
    %547 = arith.addf %544, %546 : vector<8x32xf32>
    %548 = vector.extract_strided_slice %540 {offsets = [0, 96], sizes = [8, 32], strides = [1, 1]} : vector<8x128xf32> to vector<8x32xf32>
    %549 = math.tanh %547 : vector<8x32xf32>
    %550 = arith.mulf %548, %549 : vector<8x32xf32>
    %551 = arith.negf %535 : vector<8x128xf32>
    %552 = math.exp %551 : vector<8x128xf32>
    %cst_251 = arith.constant 1.000000e+00 : f32
    %553 = vector.broadcast %cst_251 : f32 to vector<8x128xf32>
    %554 = arith.addf %553, %552 : vector<8x128xf32>
    %555 = arith.divf %553, %554 : vector<8x128xf32>
    %556 = vector.extract_strided_slice %535 {offsets = [0, 64], sizes = [8, 32], strides = [1, 1]} : vector<8x128xf32> to vector<8x32xf32>
    %557 = math.tanh %556 : vector<8x32xf32>
    %558 = vector.extract_strided_slice %555 {offsets = [0, 32], sizes = [8, 32], strides = [1, 1]} : vector<8x128xf32> to vector<8x32xf32>
    %559 = arith.mulf %558, %522 : vector<8x32xf32>
    %560 = vector.extract_strided_slice %555 {offsets = [0, 0], sizes = [8, 32], strides = [1, 1]} : vector<8x128xf32> to vector<8x32xf32>
    %561 = arith.mulf %560, %557 : vector<8x32xf32>
    %562 = arith.addf %559, %561 : vector<8x32xf32>
    %563 = vector.extract_strided_slice %555 {offsets = [0, 96], sizes = [8, 32], strides = [1, 1]} : vector<8x128xf32> to vector<8x32xf32>
    %564 = math.tanh %562 : vector<8x32xf32>
    %565 = arith.mulf %563, %564 : vector<8x32xf32>
    %c4_252 = arith.constant 4 : index
    %c0_253 = arith.constant 0 : index
    %c0_254 = arith.constant 0 : index
    %566 = vector.load %arg19[%c4_252, %c0_253, %c0_254] : memref<8x8x128xf32, #tpu.memory_space<vmem>>, vector<1x8x128xf32>
    %567 = vector.shape_cast %566 : vector<1x8x128xf32> to vector<8x128xf32>
    %c0_255 = arith.constant 0 : index
    %c0_256 = arith.constant 0 : index
    %568 = vector.load %arg9[%c0_255, %c0_256] : memref<32x128xf32, #tpu.memory_space<vmem>>, vector<32x128xf32>
    %cst_257 = arith.constant dense<0.000000e+00> : vector<8x128xf32>
    %569 = tpu.matmul %550, %568, %cst_257 {dimension_numbers = #tpu.dot_dimension_numbers<[1], [0], [0], [1], [0, 0, 1, 1], [], []>} : vector<8x32xf32>, vector<32x128xf32>, vector<8x128xf32> -> vector<8x128xf32>
    %570 = arith.addf %567, %569 : vector<8x128xf32>
    %c3_258 = arith.constant 3 : index
    %c0_259 = arith.constant 0 : index
    %c0_260 = arith.constant 0 : index
    %571 = vector.load %arg20[%c3_258, %c0_259, %c0_260] : memref<8x8x128xf32, #tpu.memory_space<vmem>>, vector<1x8x128xf32>
    %572 = vector.shape_cast %571 : vector<1x8x128xf32> to vector<8x128xf32>
    %c0_261 = arith.constant 0 : index
    %c0_262 = arith.constant 0 : index
    %573 = vector.load %arg10[%c0_261, %c0_262] : memref<32x128xf32, #tpu.memory_space<vmem>>, vector<32x128xf32>
    %cst_263 = arith.constant dense<0.000000e+00> : vector<8x128xf32>
    %574 = tpu.matmul %565, %573, %cst_263 {dimension_numbers = #tpu.dot_dimension_numbers<[1], [0], [0], [1], [0, 0, 1, 1], [], []>} : vector<8x32xf32>, vector<32x128xf32>, vector<8x128xf32> -> vector<8x128xf32>
    %575 = arith.addf %572, %574 : vector<8x128xf32>
    %576 = arith.negf %570 : vector<8x128xf32>
    %577 = math.exp %576 : vector<8x128xf32>
    %cst_264 = arith.constant 1.000000e+00 : f32
    %578 = vector.broadcast %cst_264 : f32 to vector<8x128xf32>
    %579 = arith.addf %578, %577 : vector<8x128xf32>
    %580 = arith.divf %578, %579 : vector<8x128xf32>
    %581 = vector.extract_strided_slice %570 {offsets = [0, 64], sizes = [8, 32], strides = [1, 1]} : vector<8x128xf32> to vector<8x32xf32>
    %582 = math.tanh %581 : vector<8x32xf32>
    %583 = vector.extract_strided_slice %580 {offsets = [0, 32], sizes = [8, 32], strides = [1, 1]} : vector<8x128xf32> to vector<8x32xf32>
    %584 = arith.mulf %583, %547 : vector<8x32xf32>
    %585 = vector.extract_strided_slice %580 {offsets = [0, 0], sizes = [8, 32], strides = [1, 1]} : vector<8x128xf32> to vector<8x32xf32>
    %586 = arith.mulf %585, %582 : vector<8x32xf32>
    %587 = arith.addf %584, %586 : vector<8x32xf32>
    %588 = vector.extract_strided_slice %580 {offsets = [0, 96], sizes = [8, 32], strides = [1, 1]} : vector<8x128xf32> to vector<8x32xf32>
    %589 = math.tanh %587 : vector<8x32xf32>
    %590 = arith.mulf %588, %589 : vector<8x32xf32>
    %591 = arith.negf %575 : vector<8x128xf32>
    %592 = math.exp %591 : vector<8x128xf32>
    %cst_265 = arith.constant 1.000000e+00 : f32
    %593 = vector.broadcast %cst_265 : f32 to vector<8x128xf32>
    %594 = arith.addf %593, %592 : vector<8x128xf32>
    %595 = arith.divf %593, %594 : vector<8x128xf32>
    %596 = vector.extract_strided_slice %575 {offsets = [0, 64], sizes = [8, 32], strides = [1, 1]} : vector<8x128xf32> to vector<8x32xf32>
    %597 = math.tanh %596 : vector<8x32xf32>
    %598 = vector.extract_strided_slice %595 {offsets = [0, 32], sizes = [8, 32], strides = [1, 1]} : vector<8x128xf32> to vector<8x32xf32>
    %599 = arith.mulf %598, %562 : vector<8x32xf32>
    %600 = vector.extract_strided_slice %595 {offsets = [0, 0], sizes = [8, 32], strides = [1, 1]} : vector<8x128xf32> to vector<8x32xf32>
    %601 = arith.mulf %600, %597 : vector<8x32xf32>
    %602 = arith.addf %599, %601 : vector<8x32xf32>
    %603 = vector.extract_strided_slice %595 {offsets = [0, 96], sizes = [8, 32], strides = [1, 1]} : vector<8x128xf32> to vector<8x32xf32>
    %604 = math.tanh %602 : vector<8x32xf32>
    %605 = arith.mulf %603, %604 : vector<8x32xf32>
    %c5_266 = arith.constant 5 : index
    %c0_267 = arith.constant 0 : index
    %c0_268 = arith.constant 0 : index
    %606 = vector.load %arg19[%c5_266, %c0_267, %c0_268] : memref<8x8x128xf32, #tpu.memory_space<vmem>>, vector<1x8x128xf32>
    %607 = vector.shape_cast %606 : vector<1x8x128xf32> to vector<8x128xf32>
    %c0_269 = arith.constant 0 : index
    %c0_270 = arith.constant 0 : index
    %608 = vector.load %arg9[%c0_269, %c0_270] : memref<32x128xf32, #tpu.memory_space<vmem>>, vector<32x128xf32>
    %cst_271 = arith.constant dense<0.000000e+00> : vector<8x128xf32>
    %609 = tpu.matmul %590, %608, %cst_271 {dimension_numbers = #tpu.dot_dimension_numbers<[1], [0], [0], [1], [0, 0, 1, 1], [], []>} : vector<8x32xf32>, vector<32x128xf32>, vector<8x128xf32> -> vector<8x128xf32>
    %610 = arith.addf %607, %609 : vector<8x128xf32>
    %c2_272 = arith.constant 2 : index
    %c0_273 = arith.constant 0 : index
    %c0_274 = arith.constant 0 : index
    %611 = vector.load %arg20[%c2_272, %c0_273, %c0_274] : memref<8x8x128xf32, #tpu.memory_space<vmem>>, vector<1x8x128xf32>
    %612 = vector.shape_cast %611 : vector<1x8x128xf32> to vector<8x128xf32>
    %c0_275 = arith.constant 0 : index
    %c0_276 = arith.constant 0 : index
    %613 = vector.load %arg10[%c0_275, %c0_276] : memref<32x128xf32, #tpu.memory_space<vmem>>, vector<32x128xf32>
    %cst_277 = arith.constant dense<0.000000e+00> : vector<8x128xf32>
    %614 = tpu.matmul %605, %613, %cst_277 {dimension_numbers = #tpu.dot_dimension_numbers<[1], [0], [0], [1], [0, 0, 1, 1], [], []>} : vector<8x32xf32>, vector<32x128xf32>, vector<8x128xf32> -> vector<8x128xf32>
    %615 = arith.addf %612, %614 : vector<8x128xf32>
    %616 = arith.negf %610 : vector<8x128xf32>
    %617 = math.exp %616 : vector<8x128xf32>
    %cst_278 = arith.constant 1.000000e+00 : f32
    %618 = vector.broadcast %cst_278 : f32 to vector<8x128xf32>
    %619 = arith.addf %618, %617 : vector<8x128xf32>
    %620 = arith.divf %618, %619 : vector<8x128xf32>
    %621 = vector.extract_strided_slice %610 {offsets = [0, 64], sizes = [8, 32], strides = [1, 1]} : vector<8x128xf32> to vector<8x32xf32>
    %622 = math.tanh %621 : vector<8x32xf32>
    %623 = vector.extract_strided_slice %620 {offsets = [0, 32], sizes = [8, 32], strides = [1, 1]} : vector<8x128xf32> to vector<8x32xf32>
    %624 = arith.mulf %623, %587 : vector<8x32xf32>
    %625 = vector.extract_strided_slice %620 {offsets = [0, 0], sizes = [8, 32], strides = [1, 1]} : vector<8x128xf32> to vector<8x32xf32>
    %626 = arith.mulf %625, %622 : vector<8x32xf32>
    %627 = arith.addf %624, %626 : vector<8x32xf32>
    %628 = vector.extract_strided_slice %620 {offsets = [0, 96], sizes = [8, 32], strides = [1, 1]} : vector<8x128xf32> to vector<8x32xf32>
    %629 = math.tanh %627 : vector<8x32xf32>
    %630 = arith.mulf %628, %629 : vector<8x32xf32>
    %631 = arith.negf %615 : vector<8x128xf32>
    %632 = math.exp %631 : vector<8x128xf32>
    %cst_279 = arith.constant 1.000000e+00 : f32
    %633 = vector.broadcast %cst_279 : f32 to vector<8x128xf32>
    %634 = arith.addf %633, %632 : vector<8x128xf32>
    %635 = arith.divf %633, %634 : vector<8x128xf32>
    %636 = vector.extract_strided_slice %615 {offsets = [0, 64], sizes = [8, 32], strides = [1, 1]} : vector<8x128xf32> to vector<8x32xf32>
    %637 = math.tanh %636 : vector<8x32xf32>
    %638 = vector.extract_strided_slice %635 {offsets = [0, 32], sizes = [8, 32], strides = [1, 1]} : vector<8x128xf32> to vector<8x32xf32>
    %639 = arith.mulf %638, %602 : vector<8x32xf32>
    %640 = vector.extract_strided_slice %635 {offsets = [0, 0], sizes = [8, 32], strides = [1, 1]} : vector<8x128xf32> to vector<8x32xf32>
    %641 = arith.mulf %640, %637 : vector<8x32xf32>
    %642 = arith.addf %639, %641 : vector<8x32xf32>
    %643 = vector.extract_strided_slice %635 {offsets = [0, 96], sizes = [8, 32], strides = [1, 1]} : vector<8x128xf32> to vector<8x32xf32>
    %644 = math.tanh %642 : vector<8x32xf32>
    %645 = arith.mulf %643, %644 : vector<8x32xf32>
    %c6_280 = arith.constant 6 : index
    %c0_281 = arith.constant 0 : index
    %c0_282 = arith.constant 0 : index
    %646 = vector.load %arg19[%c6_280, %c0_281, %c0_282] : memref<8x8x128xf32, #tpu.memory_space<vmem>>, vector<1x8x128xf32>
    %647 = vector.shape_cast %646 : vector<1x8x128xf32> to vector<8x128xf32>
    %c0_283 = arith.constant 0 : index
    %c0_284 = arith.constant 0 : index
    %648 = vector.load %arg9[%c0_283, %c0_284] : memref<32x128xf32, #tpu.memory_space<vmem>>, vector<32x128xf32>
    %cst_285 = arith.constant dense<0.000000e+00> : vector<8x128xf32>
    %649 = tpu.matmul %630, %648, %cst_285 {dimension_numbers = #tpu.dot_dimension_numbers<[1], [0], [0], [1], [0, 0, 1, 1], [], []>} : vector<8x32xf32>, vector<32x128xf32>, vector<8x128xf32> -> vector<8x128xf32>
    %650 = arith.addf %647, %649 : vector<8x128xf32>
    %c1_286 = arith.constant 1 : index
    %c0_287 = arith.constant 0 : index
    %c0_288 = arith.constant 0 : index
    %651 = vector.load %arg20[%c1_286, %c0_287, %c0_288] : memref<8x8x128xf32, #tpu.memory_space<vmem>>, vector<1x8x128xf32>
    %652 = vector.shape_cast %651 : vector<1x8x128xf32> to vector<8x128xf32>
    %c0_289 = arith.constant 0 : index
    %c0_290 = arith.constant 0 : index
    %653 = vector.load %arg10[%c0_289, %c0_290] : memref<32x128xf32, #tpu.memory_space<vmem>>, vector<32x128xf32>
    %cst_291 = arith.constant dense<0.000000e+00> : vector<8x128xf32>
    %654 = tpu.matmul %645, %653, %cst_291 {dimension_numbers = #tpu.dot_dimension_numbers<[1], [0], [0], [1], [0, 0, 1, 1], [], []>} : vector<8x32xf32>, vector<32x128xf32>, vector<8x128xf32> -> vector<8x128xf32>
    %655 = arith.addf %652, %654 : vector<8x128xf32>
    %656 = arith.negf %650 : vector<8x128xf32>
    %657 = math.exp %656 : vector<8x128xf32>
    %cst_292 = arith.constant 1.000000e+00 : f32
    %658 = vector.broadcast %cst_292 : f32 to vector<8x128xf32>
    %659 = arith.addf %658, %657 : vector<8x128xf32>
    %660 = arith.divf %658, %659 : vector<8x128xf32>
    %661 = vector.extract_strided_slice %650 {offsets = [0, 64], sizes = [8, 32], strides = [1, 1]} : vector<8x128xf32> to vector<8x32xf32>
    %662 = math.tanh %661 : vector<8x32xf32>
    %663 = vector.extract_strided_slice %660 {offsets = [0, 32], sizes = [8, 32], strides = [1, 1]} : vector<8x128xf32> to vector<8x32xf32>
    %664 = arith.mulf %663, %627 : vector<8x32xf32>
    %665 = vector.extract_strided_slice %660 {offsets = [0, 0], sizes = [8, 32], strides = [1, 1]} : vector<8x128xf32> to vector<8x32xf32>
    %666 = arith.mulf %665, %662 : vector<8x32xf32>
    %667 = arith.addf %664, %666 : vector<8x32xf32>
    %668 = vector.extract_strided_slice %660 {offsets = [0, 96], sizes = [8, 32], strides = [1, 1]} : vector<8x128xf32> to vector<8x32xf32>
    %669 = math.tanh %667 : vector<8x32xf32>
    %670 = arith.mulf %668, %669 : vector<8x32xf32>
    %671 = arith.negf %655 : vector<8x128xf32>
    %672 = math.exp %671 : vector<8x128xf32>
    %cst_293 = arith.constant 1.000000e+00 : f32
    %673 = vector.broadcast %cst_293 : f32 to vector<8x128xf32>
    %674 = arith.addf %673, %672 : vector<8x128xf32>
    %675 = arith.divf %673, %674 : vector<8x128xf32>
    %676 = vector.extract_strided_slice %655 {offsets = [0, 64], sizes = [8, 32], strides = [1, 1]} : vector<8x128xf32> to vector<8x32xf32>
    %677 = math.tanh %676 : vector<8x32xf32>
    %678 = vector.extract_strided_slice %675 {offsets = [0, 32], sizes = [8, 32], strides = [1, 1]} : vector<8x128xf32> to vector<8x32xf32>
    %679 = arith.mulf %678, %642 : vector<8x32xf32>
    %680 = vector.extract_strided_slice %675 {offsets = [0, 0], sizes = [8, 32], strides = [1, 1]} : vector<8x128xf32> to vector<8x32xf32>
    %681 = arith.mulf %680, %677 : vector<8x32xf32>
    %682 = arith.addf %679, %681 : vector<8x32xf32>
    %683 = vector.extract_strided_slice %675 {offsets = [0, 96], sizes = [8, 32], strides = [1, 1]} : vector<8x128xf32> to vector<8x32xf32>
    %684 = math.tanh %682 : vector<8x32xf32>
    %685 = arith.mulf %683, %684 : vector<8x32xf32>
    %c7_294 = arith.constant 7 : index
    %c0_295 = arith.constant 0 : index
    %c0_296 = arith.constant 0 : index
    %686 = vector.load %arg19[%c7_294, %c0_295, %c0_296] : memref<8x8x128xf32, #tpu.memory_space<vmem>>, vector<1x8x128xf32>
    %687 = vector.shape_cast %686 : vector<1x8x128xf32> to vector<8x128xf32>
    %c0_297 = arith.constant 0 : index
    %c0_298 = arith.constant 0 : index
    %688 = vector.load %arg9[%c0_297, %c0_298] : memref<32x128xf32, #tpu.memory_space<vmem>>, vector<32x128xf32>
    %cst_299 = arith.constant dense<0.000000e+00> : vector<8x128xf32>
    %689 = tpu.matmul %670, %688, %cst_299 {dimension_numbers = #tpu.dot_dimension_numbers<[1], [0], [0], [1], [0, 0, 1, 1], [], []>} : vector<8x32xf32>, vector<32x128xf32>, vector<8x128xf32> -> vector<8x128xf32>
    %690 = arith.addf %687, %689 : vector<8x128xf32>
    %c0_300 = arith.constant 0 : index
    %c0_301 = arith.constant 0 : index
    %c0_302 = arith.constant 0 : index
    %691 = vector.load %arg20[%c0_300, %c0_301, %c0_302] : memref<8x8x128xf32, #tpu.memory_space<vmem>>, vector<1x8x128xf32>
    %692 = vector.shape_cast %691 : vector<1x8x128xf32> to vector<8x128xf32>
    %c0_303 = arith.constant 0 : index
    %c0_304 = arith.constant 0 : index
    %693 = vector.load %arg10[%c0_303, %c0_304] : memref<32x128xf32, #tpu.memory_space<vmem>>, vector<32x128xf32>
    %cst_305 = arith.constant dense<0.000000e+00> : vector<8x128xf32>
    %694 = tpu.matmul %685, %693, %cst_305 {dimension_numbers = #tpu.dot_dimension_numbers<[1], [0], [0], [1], [0, 0, 1, 1], [], []>} : vector<8x32xf32>, vector<32x128xf32>, vector<8x128xf32> -> vector<8x128xf32>
    %695 = arith.addf %692, %694 : vector<8x128xf32>
    %696 = arith.negf %690 : vector<8x128xf32>
    %697 = math.exp %696 : vector<8x128xf32>
    %cst_306 = arith.constant 1.000000e+00 : f32
    %698 = vector.broadcast %cst_306 : f32 to vector<8x128xf32>
    %699 = arith.addf %698, %697 : vector<8x128xf32>
    %700 = arith.divf %698, %699 : vector<8x128xf32>
    %701 = vector.extract_strided_slice %690 {offsets = [0, 64], sizes = [8, 32], strides = [1, 1]} : vector<8x128xf32> to vector<8x32xf32>
    %702 = math.tanh %701 : vector<8x32xf32>
    %703 = vector.extract_strided_slice %700 {offsets = [0, 32], sizes = [8, 32], strides = [1, 1]} : vector<8x128xf32> to vector<8x32xf32>
    %704 = arith.mulf %703, %667 : vector<8x32xf32>
    %705 = vector.extract_strided_slice %700 {offsets = [0, 0], sizes = [8, 32], strides = [1, 1]} : vector<8x128xf32> to vector<8x32xf32>
    %706 = arith.mulf %705, %702 : vector<8x32xf32>
    %707 = arith.addf %704, %706 : vector<8x32xf32>
    %708 = vector.extract_strided_slice %700 {offsets = [0, 96], sizes = [8, 32], strides = [1, 1]} : vector<8x128xf32> to vector<8x32xf32>
    %709 = math.tanh %707 : vector<8x32xf32>
    %710 = arith.mulf %708, %709 : vector<8x32xf32>
    %711 = arith.negf %695 : vector<8x128xf32>
    %712 = math.exp %711 : vector<8x128xf32>
    %cst_307 = arith.constant 1.000000e+00 : f32
    %713 = vector.broadcast %cst_307 : f32 to vector<8x128xf32>
    %714 = arith.addf %713, %712 : vector<8x128xf32>
    %715 = arith.divf %713, %714 : vector<8x128xf32>
    %716 = vector.extract_strided_slice %695 {offsets = [0, 64], sizes = [8, 32], strides = [1, 1]} : vector<8x128xf32> to vector<8x32xf32>
    %717 = math.tanh %716 : vector<8x32xf32>
    %718 = vector.extract_strided_slice %715 {offsets = [0, 32], sizes = [8, 32], strides = [1, 1]} : vector<8x128xf32> to vector<8x32xf32>
    %719 = arith.mulf %718, %682 : vector<8x32xf32>
    %720 = vector.extract_strided_slice %715 {offsets = [0, 0], sizes = [8, 32], strides = [1, 1]} : vector<8x128xf32> to vector<8x32xf32>
    %721 = arith.mulf %720, %717 : vector<8x32xf32>
    %722 = arith.addf %719, %721 : vector<8x32xf32>
    %723 = vector.extract_strided_slice %715 {offsets = [0, 96], sizes = [8, 32], strides = [1, 1]} : vector<8x128xf32> to vector<8x32xf32>
    %724 = math.tanh %722 : vector<8x32xf32>
    %725 = arith.mulf %723, %724 : vector<8x32xf32>
    %c0_308 = arith.constant 0 : index
    %c0_309 = arith.constant 0 : index
    %726 = vector.load %arg13[%c0_308, %c0_309] : memref<32x32xf32, #tpu.memory_space<vmem>>, vector<32x32xf32>
    %cst_310 = arith.constant dense<0.000000e+00> : vector<8x32xf32>
    %727 = tpu.matmul %710, %726, %cst_310 {dimension_numbers = #tpu.dot_dimension_numbers<[1], [0], [0], [1], [0, 0, 1, 1], [], []>} : vector<8x32xf32>, vector<32x32xf32>, vector<8x32xf32> -> vector<8x32xf32>
    %c0_311 = arith.constant 0 : index
    %c0_312 = arith.constant 0 : index
    %728 = vector.load %arg14[%c0_311, %c0_312] : memref<32x32xf32, #tpu.memory_space<vmem>>, vector<32x32xf32>
    %cst_313 = arith.constant dense<0.000000e+00> : vector<8x32xf32>
    %729 = tpu.matmul %725, %728, %cst_313 {dimension_numbers = #tpu.dot_dimension_numbers<[1], [0], [0], [1], [0, 0, 1, 1], [], []>} : vector<8x32xf32>, vector<32x32xf32>, vector<8x32xf32> -> vector<8x32xf32>
    %730 = arith.addf %727, %729 : vector<8x32xf32>
    %c0_314 = arith.constant 0 : index
    %c0_315 = arith.constant 0 : index
    %731 = vector.load %arg15[%c0_314, %c0_315] : memref<1x32xf32, #tpu.memory_space<vmem>>, vector<1x32xf32>
    %732 = vector.broadcast %731 : vector<1x32xf32> to vector<8x32xf32>
    %733 = arith.addf %730, %732 : vector<8x32xf32>
    %cst_316 = arith.constant 0.000000e+00 : f32
    %734 = vector.broadcast %cst_316 : f32 to vector<8x32xf32>
    %735 = arith.maximumf %733, %734 : vector<8x32xf32>
    %c0_317 = arith.constant 0 : index
    %c0_318 = arith.constant 0 : index
    %736 = vector.load %arg16[%c0_317, %c0_318] : memref<32x4xf32, #tpu.memory_space<vmem>>, vector<32x4xf32>
    %cst_319 = arith.constant dense<0.000000e+00> : vector<8x4xf32>
    %737 = tpu.matmul %735, %736, %cst_319 {dimension_numbers = #tpu.dot_dimension_numbers<[1], [0], [0], [1], [0, 0, 1, 1], [], []>} : vector<8x32xf32>, vector<32x4xf32>, vector<8x4xf32> -> vector<8x4xf32>
    %c0_320 = arith.constant 0 : index
    %c0_321 = arith.constant 0 : index
    %738 = vector.load %arg17[%c0_320, %c0_321] : memref<1x4xf32, #tpu.memory_space<vmem>>, vector<1x4xf32>
    %739 = vector.broadcast %738 : vector<1x4xf32> to vector<8x4xf32>
    %740 = arith.addf %737, %739 : vector<8x4xf32>
    %c0_322 = arith.constant 0 : index
    %c0_323 = arith.constant 0 : index
    %741 = vector.load %arg18[%c0_322, %c0_323] : memref<8x4xf32, #tpu.memory_space<vmem>>, vector<8x4xf32>
    tpu.vector_store %arg18[%c0_322, %c0_323], %740 {strides = array<i32>} : memref<8x4xf32, #tpu.memory_space<vmem>>, vector<8x4xf32>,
    return
  }
}

</mosaic_0001>

<llo_original>
// kernel: classification_model_forward_prepared.1
$region0: #{classification_model_forward_prepared.1}
  #allocation0 [shape = 'u32[]', space=smem, size = 0x4, offset = 0x4, fixed_abs, tag = 'smem constant byte address 0x4 - core index']
  #allocation1 [shape = 'u32[144,128]{1,0:T(1,128)}', space=vmem, size = 0x12000, scoped, tag = 'internal scratch']
  #allocation2 [shape = 'f32[8,8,128]{2,1,0:T(8,128)}', space=vmem, size = 0x8000, scoped, tag = 'scratch operand']
  #allocation3 [shape = 'f32[8,8,128]{2,1,0:T(8,128)}', space=vmem, size = 0x8000, scoped, tag = 'scratch operand']
  #allocation4 [shape = 'f32[8,8,64]{2,1,0:T(8,128)}', space=vmem, size = 0x8000, scoped, tag = 'scratch operand']
  %s0 = inlined_call_operand.vmem [shape: f32[8,8,16], index: 0, kind: input, shape index: {}]
  %s1 = inlined_call_operand.hbm [shape: f32[16,128], index: 1, kind: input, shape index: {}]
  %s2 = inlined_call_operand.hbm [shape: f32[16,128], index: 2, kind: input, shape index: {}]
  %s3 = inlined_call_operand.hbm [shape: f32[32,128], index: 3, kind: input, shape index: {}]
  %s4 = inlined_call_operand.vmem [shape: f32[32,128], index: 4, kind: input, shape index: {}]
  %s5 = inlined_call_operand.hbm [shape: f32[1,128], index: 5, kind: input, shape index: {}]
  %s6 = inlined_call_operand.hbm [shape: f32[1,128], index: 6, kind: input, shape index: {}]
  %s7 = inlined_call_operand.vmem [shape: f32[64,128], index: 7, kind: input, shape index: {}]
  %s8 = inlined_call_operand.vmem [shape: f32[64,128], index: 8, kind: input, shape index: {}]
  %s9 = inlined_call_operand.hbm [shape: f32[32,128], index: 9, kind: input, shape index: {}]
  %s10 = inlined_call_operand.hbm [shape: f32[32,128], index: 10, kind: input, shape index: {}]
  %s11 = inlined_call_operand.hbm [shape: f32[1,128], index: 11, kind: input, shape index: {}]
  %s12 = inlined_call_operand.hbm [shape: f32[1,128], index: 12, kind: input, shape index: {}]
  %s13 = inlined_call_operand.hbm [shape: f32[32,32], index: 13, kind: input, shape index: {}]
  %s14 = inlined_call_operand.hbm [shape: f32[32,32], index: 14, kind: input, shape index: {}]
  %s15 = inlined_call_operand.hbm [shape: f32[1,32], index: 15, kind: input, shape index: {}]
  %s16 = inlined_call_operand.vmem [shape: f32[32,4], index: 16, kind: input, shape index: {}]
  %s17 = inlined_call_operand.hbm [shape: f32[1,4], index: 17, kind: input, shape index: {}]
  %s18 = inlined_call_operand.vmem [shape: f32[8,4], index: 18, kind: output, shape index: {}]
  %s19 = sld [smem:[#allocation0]]
  $region134: #{classification_model_forward_prepared.1} parent=0
    _
  %s21 = ssub.s32 1, %s19
  %s22 = scalar_select 0, %s21, %s19
  $region1: #{classification_model_forward_prepared.1} parent=0
    #allocation5 [shape = 'u8[8192]{0}', space=vmem, size = 0x2000, scoped, tag = 'input window, operand 1, single buffered']
    #allocation6 [shape = 's32[1]{0}', space=sflag, size = 0x4, scoped, tag = 'scoped memory for classification_model_forward_prepared.1']
    #allocation7 [shape = 'u8[8192]{0}', space=vmem, size = 0x2000, scoped, tag = 'input window, operand 2, single buffered']
    #allocation8 [shape = 's32[1]{0}', space=sflag, size = 0x4, scoped, tag = 'scoped memory for classification_model_forward_prepared.1']
    #allocation9 [shape = 'u8[16384]{0}', space=vmem, size = 0x4000, scoped, tag = 'input window, operand 3, single buffered']
    #allocation10 [shape = 'u8[512]{0}', space=vmem, size = 0x400, scoped, tag = 'input window, operand 5, single buffered']
    #allocation11 [shape = 's32[1]{0}', space=sflag, size = 0x4, scoped, tag = 'scoped memory for classification_model_forward_prepared.1']
    #allocation12 [shape = 'u8[512]{0}', space=vmem, size = 0x400, scoped, tag = 'input window, operand 6, single buffered']
    #allocation13 [shape = 'u8[16384]{0}', space=vmem, size = 0x4000, scoped, tag = 'input window, operand 9, single buffered']
    #allocation14 [shape = 's32[1]{0}', space=sflag, size = 0x4, scoped, tag = 'scoped memory for classification_model_forward_prepared.1']
    #allocation15 [shape = 'u8[16384]{0}', space=vmem, size = 0x4000, scoped, tag = 'input window, operand 10, single buffered']
    #allocation16 [shape = 'u8[512]{0}', space=vmem, size = 0x400, scoped, tag = 'input window, operand 11, single buffered']
    #allocation17 [shape = 's32[1]{0}', space=sflag, size = 0x4, scoped, tag = 'scoped memory for classification_model_forward_prepared.1']
    #allocation18 [shape = 'u8[512]{0}', space=vmem, size = 0x400, scoped, tag = 'input window, operand 12, single buffered']
    #allocation19 [shape = 'u8[16384]{0}', space=vmem, size = 0x4000, scoped, tag = 'input window, operand 13, single buffered']
    #allocation20 [shape = 's32[1]{0}', space=sflag, size = 0x4, scoped, tag = 'scoped memory for classification_model_forward_prepared.1']
    #allocation21 [shape = 'u8[16384]{0}', space=vmem, size = 0x4000, scoped, tag = 'input window, operand 14, single buffered']
    #allocation22 [shape = 'u8[512]{0}', space=vmem, size = 0x400, scoped, tag = 'input window, operand 15, single buffered']
    #allocation23 [shape = 's32[1]{0}', space=sflag, size = 0x4, scoped, tag = 'scoped memory for classification_model_forward_prepared.1']
    #allocation24 [shape = 'u8[512]{0}', space=vmem, size = 0x400, scoped, tag = 'input window, operand 17, single buffered']
    %23 = vsyncpa [#allocation6], 0
    %24 = vsyncpa [#allocation8], 0
    %25 = vsyncpa [#allocation11], 0
    %26 = vsyncpa [#allocation14], 0
    %27 = vsyncpa [#allocation17], 0
    %28 = vsyncpa [#allocation20], 0
    %29 = vsyncpa [#allocation23], 0
    // Predicated region
    $region2: #{classification_model_forward_prepared.1} parent=1 // pred_check
      _
    $region3: #{classification_model_forward_prepared.1} parent=1 // pred_check_branch
      %31 = sbr.rel (0) target = $region5
    $region4: #{classification_model_forward_prepared.1} parent=1 // pred_region
      _
    $region5: #{classification_model_forward_prepared.1} parent=1 // pred_fallthru
      _
    // Predicated region
    $region6: #{classification_model_forward_prepared.1} parent=1 // pred_check
      _
    $region7: #{classification_model_forward_prepared.1} parent=1 // pred_check_branch
      %33 = sbr.rel (0) target = $region9
    $region8: #{classification_model_forward_prepared.1} parent=1 // pred_region
      %s35 = ssub.s32 256, 256
      %36 = vsyncadd [#allocation6], %s35
      %s37 = sshll.u32 [#allocation5], 4
      %s38 = int_to_ptr.vmem [resolvable:$true] %s37
      %43 = dma.hbm_to_vmem [thread:$0]  %s1, 256, %s38, [#allocation6], 128, 128, 8
    $region9: #{classification_model_forward_prepared.1} parent=1 // pred_fallthru
      _
    // Predicated region
    $region10: #{classification_model_forward_prepared.1} parent=1 // pred_check
      _
    $region11: #{classification_model_forward_prepared.1} parent=1 // pred_check_branch
      %45 = sbr.rel (0) target = $region13
    $region12: #{classification_model_forward_prepared.1} parent=1 // pred_region
      %s47 = ssub.s32 256, 256
      %48 = vsyncadd [#allocation8], %s47
      %s49 = sshll.u32 [#allocation7], 4
      %s50 = int_to_ptr.vmem [resolvable:$true] %s49
      %55 = dma.hbm_to_vmem [thread:$0]  %s2, 256, %s50, [#allocation8], 128, 128, 8
    $region13: #{classification_model_forward_prepared.1} parent=1 // pred_fallthru
      _
    // Predicated region
    $region14: #{classification_model_forward_prepared.1} parent=1 // pred_check
      _
    $region15: #{classification_model_forward_prepared.1} parent=1 // pred_check_branch
      %57 = sbr.rel (0) target = $region17
    $region16: #{classification_model_forward_prepared.1} parent=1 // pred_region
      %s59 = ssub.s32 512, 512
      %60 = vsyncadd [#allocation8], %s59
      %s61 = sshll.u32 [#allocation9], 4
      %s62 = int_to_ptr.vmem [resolvable:$true] %s61
      %67 = dma.hbm_to_vmem [thread:$0]  %s3, 512, %s62, [#allocation8], 128, 128, 8
    $region17: #{classification_model_forward_prepared.1} parent=1 // pred_fallthru
      _
    // Predicated region
    $region18: #{classification_model_forward_prepared.1} parent=1 // pred_check
      _
    $region19: #{classification_model_forward_prepared.1} parent=1 // pred_check_branch
      %69 = sbr.rel (0) target = $region21
    $region20: #{classification_model_forward_prepared.1} parent=1 // pred_region
      _
    $region21: #{classification_model_forward_prepared.1} parent=1 // pred_fallthru
      _
    // Predicated region
    $region22: #{classification_model_forward_prepared.1} parent=1 // pred_check
      _
    $region23: #{classification_model_forward_prepared.1} parent=1 // pred_check_branch
      %71 = sbr.rel (0) target = $region25
    $region24: #{classification_model_forward_prepared.1} parent=1 // pred_region
      %s73 = ssub.s32 16, 16
      %74 = vsyncadd [#allocation11], %s73
      %s76 = sshll.u32 [#allocation10], 4
      %s77 = int_to_ptr.vmem [resolvable:$true] %s76
      %79 = dma.hbm_to_vmem [thread:$0]  %s5, 16, %s77, [#allocation11]
    $region25: #{classification_model_forward_prepared.1} parent=1 // pred_fallthru
      _
    // Predicated region
    $region26: #{classification_model_forward_prepared.1} parent=1 // pred_check
      _
    $region27: #{classification_model_forward_prepared.1} parent=1 // pred_check_branch
      %81 = sbr.rel (0) target = $region29
    $region28: #{classification_model_forward_prepared.1} parent=1 // pred_region
      %s83 = ssub.s32 16, 16
      %84 = vsyncadd [#allocation11], %s83
      %s86 = sshll.u32 [#allocation12], 4
      %s87 = int_to_ptr.vmem [resolvable:$true] %s86
      %89 = dma.hbm_to_vmem [thread:$0]  %s6, 16, %s87, [#allocation11]
    $region29: #{classification_model_forward_prepared.1} parent=1 // pred_fallthru
      _
    // Predicated region
    $region30: #{classification_model_forward_prepared.1} parent=1 // pred_check
      _
    $region31: #{classification_model_forward_prepared.1} parent=1 // pred_check_branch
      %91 = sbr.rel (0) target = $region33
    $region32: #{classification_model_forward_prepared.1} parent=1 // pred_region
      _
    $region33: #{classification_model_forward_prepared.1} parent=1 // pred_fallthru
      _
    // Predicated region
    $region34: #{classification_model_forward_prepared.1} parent=1 // pred_check
      _
    $region35: #{classification_model_forward_prepared.1} parent=1 // pred_check_branch
      %93 = sbr.rel (0) target = $region37
    $region36: #{classification_model_forward_prepared.1} parent=1 // pred_region
      _
    $region37: #{classification_model_forward_prepared.1} parent=1 // pred_fallthru
      _
    // Predicated region
    $region38: #{classification_model_forward_prepared.1} parent=1 // pred_check
      _
    $region39: #{classification_model_forward_prepared.1} parent=1 // pred_check_branch
      %95 = sbr.rel (0) target = $region41
    $region40: #{classification_model_forward_prepared.1} parent=1 // pred_region
      %s97 = ssub.s32 512, 512
      %98 = vsyncadd [#allocation14], %s97
      %s99 = sshll.u32 [#allocation13], 4
      %s100 = int_to_ptr.vmem [resolvable:$true] %s99
      %105 = dma.hbm_to_vmem [thread:$0]  %s9, 512, %s100, [#allocation14], 128, 128, 8
    $region41: #{classification_model_forward_prepared.1} parent=1 // pred_fallthru
      _
    // Predicated region
    $region42: #{classification_model_forward_prepared.1} parent=1 // pred_check
      _
    $region43: #{classification_model_forward_prepared.1} parent=1 // pred_check_branch
      %107 = sbr.rel (0) target = $region45
    $region44: #{classification_model_forward_prepared.1} parent=1 // pred_region
      %s109 = ssub.s32 512, 512
      %110 = vsyncadd [#allocation14], %s109
      %s111 = sshll.u32 [#allocation15], 4
      %s112 = int_to_ptr.vmem [resolvable:$true] %s111
      %117 = dma.hbm_to_vmem [thread:$0]  %s10, 512, %s112, [#allocation14], 128, 128, 8
    $region45: #{classification_model_forward_prepared.1} parent=1 // pred_fallthru
      _
    // Predicated region
    $region46: #{classification_model_forward_prepared.1} parent=1 // pred_check
      _
    $region47: #{classification_model_forward_prepared.1} parent=1 // pred_check_branch
      %119 = sbr.rel (0) target = $region49
    $region48: #{classification_model_forward_prepared.1} parent=1 // pred_region
      %s121 = ssub.s32 16, 16
      %122 = vsyncadd [#allocation17], %s121
      %s124 = sshll.u32 [#allocation16], 4
      %s125 = int_to_ptr.vmem [resolvable:$true] %s124
      %127 = dma.hbm_to_vmem [thread:$0]  %s11, 16, %s125, [#allocation17]
    $region49: #{classification_model_forward_prepared.1} parent=1 // pred_fallthru
      _
    // Predicated region
    $region50: #{classification_model_forward_prepared.1} parent=1 // pred_check
      _
    $region51: #{classification_model_forward_prepared.1} parent=1 // pred_check_branch
      %129 = sbr.rel (0) target = $region53
    $region52: #{classification_model_forward_prepared.1} parent=1 // pred_region
      %s131 = ssub.s32 16, 16
      %132 = vsyncadd [#allocation17], %s131
      %s134 = sshll.u32 [#allocation18], 4
      %s135 = int_to_ptr.vmem [resolvable:$true] %s134
      %137 = dma.hbm_to_vmem [thread:$0]  %s12, 16, %s135, [#allocation17]
    $region53: #{classification_model_forward_prepared.1} parent=1 // pred_fallthru
      _
    // Predicated region
    $region54: #{classification_model_forward_prepared.1} parent=1 // pred_check
      _
    $region55: #{classification_model_forward_prepared.1} parent=1 // pred_check_branch
      %139 = sbr.rel (0) target = $region57
    $region56: #{classification_model_forward_prepared.1} parent=1 // pred_region
      %s141 = ssub.s32 512, 512
      %142 = vsyncadd [#allocation20], %s141
      %s143 = sshll.u32 [#allocation19], 4
      %s144 = int_to_ptr.vmem [resolvable:$true] %s143
      %149 = dma.hbm_to_vmem [thread:$0]  %s13, 512, %s144, [#allocation20], 128, 128, 8
    $region57: #{classification_model_forward_prepared.1} parent=1 // pred_fallthru
      _
    // Predicated region
    $region58: #{classification_model_forward_prepared.1} parent=1 // pred_check
      _
    $region59: #{classification_model_forward_prepared.1} parent=1 // pred_check_branch
      %151 = sbr.rel (0) target = $region61
    $region60: #{classification_model_forward_prepared.1} parent=1 // pred_region
      %s153 = ssub.s32 512, 512
      %154 = vsyncadd [#allocation20], %s153
      %s155 = sshll.u32 [#allocation21], 4
      %s156 = int_to_ptr.vmem [resolvable:$true] %s155
      %161 = dma.hbm_to_vmem [thread:$0]  %s14, 512, %s156, [#allocation20], 128, 128, 8
    $region61: #{classification_model_forward_prepared.1} parent=1 // pred_fallthru
      _
    // Predicated region
    $region62: #{classification_model_forward_prepared.1} parent=1 // pred_check
      _
    $region63: #{classification_model_forward_prepared.1} parent=1 // pred_check_branch
      %163 = sbr.rel (0) target = $region65
    $region64: #{classification_model_forward_prepared.1} parent=1 // pred_region
      %s165 = ssub.s32 16, 16
      %166 = vsyncadd [#allocation23], %s165
      %s168 = sshll.u32 [#allocation22], 4
      %s169 = int_to_ptr.vmem [resolvable:$true] %s168
      %171 = dma.hbm_to_vmem [thread:$0]  %s15, 16, %s169, [#allocation23]
    $region65: #{classification_model_forward_prepared.1} parent=1 // pred_fallthru
      _
    // Predicated region
    $region66: #{classification_model_forward_prepared.1} parent=1 // pred_check
      _
    $region67: #{classification_model_forward_prepared.1} parent=1 // pred_check_branch
      %173 = sbr.rel (0) target = $region69
    $region68: #{classification_model_forward_prepared.1} parent=1 // pred_region
      _
    $region69: #{classification_model_forward_prepared.1} parent=1 // pred_fallthru
      _
    // Predicated region
    $region70: #{classification_model_forward_prepared.1} parent=1 // pred_check
      _
    $region71: #{classification_model_forward_prepared.1} parent=1 // pred_check_branch
      %175 = sbr.rel (0) target = $region73
    $region72: #{classification_model_forward_prepared.1} parent=1 // pred_region
      %s177 = ssub.s32 16, 16
      %178 = vsyncadd [#allocation23], %s177
      %s180 = sshll.u32 [#allocation24], 4
      %s181 = int_to_ptr.vmem [resolvable:$true] %s180
      %183 = dma.hbm_to_vmem [thread:$0]  %s17, 16, %s181, [#allocation23]
    $region73: #{classification_model_forward_prepared.1} parent=1 // pred_fallthru
      _
    // Predicated region
    $region74: #{classification_model_forward_prepared.1} parent=1 // pred_check
      _
    $region75: #{classification_model_forward_prepared.1} parent=1 // pred_check_branch
      %185 = sbr.rel (0) target = $region77
    $region76: #{classification_model_forward_prepared.1} parent=1 // pred_region
      %186 = dma.done [#allocation6], 256
    $region77: #{classification_model_forward_prepared.1} parent=1 // pred_fallthru
      _
    // Predicated region
    $region78: #{classification_model_forward_prepared.1} parent=1 // pred_check
      _
    $region79: #{classification_model_forward_prepared.1} parent=1 // pred_check_branch
      %188 = sbr.rel (0) target = $region81
    $region80: #{classification_model_forward_prepared.1} parent=1 // pred_region
      %189 = dma.done [#allocation8], 256
    $region81: #{classification_model_forward_prepared.1} parent=1 // pred_fallthru
      _
    // Predicated region
    $region82: #{classification_model_forward_prepared.1} parent=1 // pred_check
      _
    $region83: #{classification_model_forward_prepared.1} parent=1 // pred_check_branch
      %191 = sbr.rel (0) target = $region85
    $region84: #{classification_model_forward_prepared.1} parent=1 // pred_region
      %192 = dma.done [#allocation8], 512
    $region85: #{classification_model_forward_prepared.1} parent=1 // pred_fallthru
      _
    // Predicated region
    $region86: #{classification_model_forward_prepared.1} parent=1 // pred_check
      _
    $region87: #{classification_model_forward_prepared.1} parent=1 // pred_check_branch
      %194 = sbr.rel (0) target = $region89
    $region88: #{classification_model_forward_prepared.1} parent=1 // pred_region
      %195 = dma.done [#allocation11], 16
    $region89: #{classification_model_forward_prepared.1} parent=1 // pred_fallthru
      _
    // Predicated region
    $region90: #{classification_model_forward_prepared.1} parent=1 // pred_check
      _
    $region91: #{classification_model_forward_prepared.1} parent=1 // pred_check_branch
      %197 = sbr.rel (0) target = $region93
    $region92: #{classification_model_forward_prepared.1} parent=1 // pred_region
      %198 = dma.done [#allocation11], 16
    $region93: #{classification_model_forward_prepared.1} parent=1 // pred_fallthru
      _
    // Predicated region
    $region94: #{classification_model_forward_prepared.1} parent=1 // pred_check
      _
    $region95: #{classification_model_forward_prepared.1} parent=1 // pred_check_branch
      %200 = sbr.rel (0) target = $region97
    $region96: #{classification_model_forward_prepared.1} parent=1 // pred_region
      %201 = dma.done [#allocation14], 512
    $region97: #{classification_model_forward_prepared.1} parent=1 // pred_fallthru
      _
    // Predicated region
    $region98: #{classification_model_forward_prepared.1} parent=1 // pred_check
      _
    $region99: #{classification_model_forward_prepared.1} parent=1 // pred_check_branch
      %203 = sbr.rel (0) target = $region101
    $region100: #{classification_model_forward_prepared.1} parent=1 // pred_region
      %204 = dma.done [#allocation14], 512
    $region101: #{classification_model_forward_prepared.1} parent=1 // pred_fallthru
      _
    // Predicated region
    $region102: #{classification_model_forward_prepared.1} parent=1 // pred_check
      _
    $region103: #{classification_model_forward_prepared.1} parent=1 // pred_check_branch
      %206 = sbr.rel (0) target = $region105
    $region104: #{classification_model_forward_prepared.1} parent=1 // pred_region
      %207 = dma.done [#allocation17], 16
    $region105: #{classification_model_forward_prepared.1} parent=1 // pred_fallthru
      _
    // Predicated region
    $region106: #{classification_model_forward_prepared.1} parent=1 // pred_check
      _
    $region107: #{classification_model_forward_prepared.1} parent=1 // pred_check_branch
      %209 = sbr.rel (0) target = $region109
    $region108: #{classification_model_forward_prepared.1} parent=1 // pred_region
      %210 = dma.done [#allocation17], 16
    $region109: #{classification_model_forward_prepared.1} parent=1 // pred_fallthru
      _
    // Predicated region
    $region110: #{classification_model_forward_prepared.1} parent=1 // pred_check
      _
    $region111: #{classification_model_forward_prepared.1} parent=1 // pred_check_branch
      %212 = sbr.rel (0) target = $region113
    $region112: #{classification_model_forward_prepared.1} parent=1 // pred_region
      %213 = dma.done [#allocation20], 512
    $region113: #{classification_model_forward_prepared.1} parent=1 // pred_fallthru
      _
    // Predicated region
    $region114: #{classification_model_forward_prepared.1} parent=1 // pred_check
      _
    $region115: #{classification_model_forward_prepared.1} parent=1 // pred_check_branch
      %215 = sbr.rel (0) target = $region117
    $region116: #{classification_model_forward_prepared.1} parent=1 // pred_region
      %216 = dma.done [#allocation20], 512
    $region117: #{classification_model_forward_prepared.1} parent=1 // pred_fallthru
      _
    // Predicated region
    $region118: #{classification_model_forward_prepared.1} parent=1 // pred_check
      _
    $region119: #{classification_model_forward_prepared.1} parent=1 // pred_check_branch
      %218 = sbr.rel (0) target = $region121
    $region120: #{classification_model_forward_prepared.1} parent=1 // pred_region
      %219 = dma.done [#allocation23], 16
    $region121: #{classification_model_forward_prepared.1} parent=1 // pred_fallthru
      _
    // Predicated region
    $region122: #{classification_model_forward_prepared.1} parent=1 // pred_check
      _
    $region123: #{classification_model_forward_prepared.1} parent=1 // pred_check_branch
      %221 = sbr.rel (0) target = $region125
    $region124: #{classification_model_forward_prepared.1} parent=1 // pred_region
      %222 = dma.done [#allocation23], 16
    $region125: #{classification_model_forward_prepared.1} parent=1 // pred_fallthru
      _
    %v223 = vld [vmem:[%s0] sm:$0xff]
    %v224 = vld [vmem:[%s0 + $0x8] sm:$0xff]
    %v225 = vld [vmem:[%s0 + $0x10] sm:$0xff]
    %v226 = vld [vmem:[%s0 + $0x18] sm:$0xff]
    %v227 = vld [vmem:[%s0 + $0x20] sm:$0xff]
    %v228 = vld [vmem:[%s0 + $0x28] sm:$0xff]
    %v229 = vld [vmem:[%s0 + $0x30] sm:$0xff]
    %v230 = vld [vmem:[%s0 + $0x38] sm:$0xff]
    %v231 = vld [vmem:[#allocation5] sm:$0xff]
    %v232 = vld [vmem:[#allocation5 + $0x8] sm:$0xff]
    %v233 = vld [vmem:[#allocation10] sm:$0x1]
    %v235 = vlaneseq
    %v236 = vshrl.u32 %v235, 7
    %v237 = vsub.s32 0, %v236
    %v238 = vrot.slane %v233, %v237
    %vm240 = vcmask 130048
    %v242 = vsel %vm240, %v223, 0
    %v245 = vsel %vm240, %v224, 0
    %v248 = vsel %vm240, %v225, 0
    %v251 = vsel %vm240, %v226, 0
    %v254 = vsel %vm240, %v227, 0
    %v257 = vsel %vm240, %v228, 0
    %v260 = vsel %vm240, %v229, 0
    %v263 = vsel %vm240, %v230, 0
    %265 = vmatprep.subr.mxu0 0.0
    %266 = vmatpush1.msra.mxu0 0.0
    %267 = vmatprep.subr.mxu0 0.0
    %268 = vmatpush1.msra.mxu0 0.0
    %269 = vmatprep.subr.mxu0 0.0
    %270 = vmatpush1.msra.mxu0 0.0
    %271 = vmatprep.subr.mxu0 0.0
    %272 = vmatpush1.msra.mxu0 0.0
    %273 = vmatprep.subr.mxu0 0.0
    %274 = vmatpush1.msra.mxu0 0.0
    %275 = vmatprep.subr.mxu0 0.0
    %276 = vmatpush1.msra.mxu0 0.0
    %277 = vmatprep.subr.mxu0 0.0
    %278 = vmatpush1.msra.mxu0 0.0
    %279 = vmatprep.subr.mxu0 0.0
    %280 = vmatpush1.msra.mxu0 0.0
    %281 = vmatprep.subr.mxu0 0.0
    %282 = vmatpush1.msra.mxu0 0.0
    %283 = vmatprep.subr.mxu0 0.0
    %284 = vmatpush1.msra.mxu0 0.0
    %285 = vmatprep.subr.mxu0 0.0
    %286 = vmatpush1.msra.mxu0 0.0
    %287 = vmatprep.subr.mxu0 0.0
    %288 = vmatpush1.msra.mxu0 0.0
    %289 = vmatprep.subr.mxu0 0.0
    %290 = vmatpush1.msra.mxu0 0.0
    %291 = vmatprep.subr.mxu0 0.0
    %292 = vmatpush1.msra.mxu0 0.0
    %293 = vmatprep.subr.mxu0 0.0
    %294 = vmatpush1.msra.mxu0 %v232
    %295 = vmatprep.subr.mxu0 0.0
    %296 = vmatpush1.msra.mxu0 %v231
    %297 = vmatprep.subr.mxu0 0.0
    %298 = vmatpush2.msra.mxu0 0.0
    %299 = vmatprep.subr.mxu0 0.0
    %300 = vmatpush2.msra.mxu0 0.0
    %301 = vmatprep.subr.mxu0 0.0
    %302 = vmatpush2.msra.mxu0 0.0
    %303 = vmatprep.subr.mxu0 0.0
    %304 = vmatpush2.msra.mxu0 0.0
    %305 = vmatprep.subr.mxu0 0.0
    %306 = vmatpush2.msra.mxu0 0.0
    %307 = vmatprep.subr.mxu0 0.0
    %308 = vmatpush2.msra.mxu0 0.0
    %309 = vmatprep.subr.mxu0 0.0
    %310 = vmatpush2.msra.mxu0 0.0
    %311 = vmatprep.subr.mxu0 0.0
    %312 = vmatpush2.msra.mxu0 0.0
    %313 = vmatprep.subr.mxu0 0.0
    %314 = vmatpush2.msra.mxu0 0.0
    %315 = vmatprep.subr.mxu0 0.0
    %316 = vmatpush2.msra.mxu0 0.0
    %317 = vmatprep.subr.mxu0 0.0
    %318 = vmatpush2.msra.mxu0 0.0
    %319 = vmatprep.subr.mxu0 0.0
    %320 = vmatpush2.msra.mxu0 0.0
    %321 = vmatprep.subr.mxu0 0.0
    %322 = vmatpush2.msra.mxu0 0.0
    %323 = vmatprep.subr.mxu0 0.0
    %324 = vmatpush2.msra.mxu0 0.0
    %325 = vmatprep.subr.mxu0 0.0
    %326 = vmatpush2.msra.mxu0 0.0
    %327 = vmatprep.subr.mxu0 0.0
    %328 = vmatpush2.msra.mxu0 0.0
    %329 = vmatprep.mubr.f32.mxu0 0.0
    %330 = vmatmul.mubr.f32.gmra.mxu0 %v242
    %v331 = vpop.f32.mrf.mxu0
    %v332 = vadd.f32 %v238, %v331
    %v333 = vpop.f32.mrf.mxu0
    %334 = vmatprep.mubr.f32.mxu0 0.0
    %335 = vmatmul.mubr.f32.gmra.mxu0 %v245
    %v336 = vpop.f32.mrf.mxu0
    %v337 = vadd.f32 %v238, %v336
    %v338 = vpop.f32.mrf.mxu0
    %339 = vmatprep.mubr.f32.mxu0 0.0
    %340 = vmatmul.mubr.f32.gmra.mxu0 %v248
    %v341 = vpop.f32.mrf.mxu0
    %v342 = vadd.f32 %v238, %v341
    %v343 = vpop.f32.mrf.mxu0
    %344 = vmatprep.mubr.f32.mxu0 0.0
    %345 = vmatmul.mubr.f32.gmra.mxu0 %v251
    %v346 = vpop.f32.mrf.mxu0
    %v347 = vadd.f32 %v238, %v346
    %v348 = vpop.f32.mrf.mxu0
    %349 = vmatprep.mubr.f32.mxu0 0.0
    %350 = vmatmul.mubr.f32.gmra.mxu0 %v254
    %v351 = vpop.f32.mrf.mxu0
    %v352 = vadd.f32 %v238, %v351
    %v353 = vpop.f32.mrf.mxu0
    %354 = vmatprep.mubr.f32.mxu0 0.0
    %355 = vmatmul.mubr.f32.gmra.mxu0 %v257
    %v356 = vpop.f32.mrf.mxu0
    %v357 = vadd.f32 %v238, %v356
    %v358 = vpop.f32.mrf.mxu0
    %359 = vmatprep.mubr.f32.mxu0 0.0
    %360 = vmatmul.mubr.f32.gmra.mxu0 %v260
    %v361 = vpop.f32.mrf.mxu0
    %v362 = vadd.f32 %v238, %v361
    %v363 = vpop.f32.mrf.mxu0
    %364 = vmatprep.mubr.f32.mxu0 0.0
    %365 = vmatmul.mubr.f32.gmra.mxu0 %v263
    %v366 = vpop.f32.mrf.mxu0
    %v367 = vadd.f32 %v238, %v366
    %v368 = vpop.f32.mrf.mxu0
    %369 = vdwg.mxu0
    %370 = vst [vmem:[#allocation2] sm:$0xff] %v332
    %371 = vst [vmem:[#allocation2 + $0x8] sm:$0xff] %v337
    %372 = vst [vmem:[#allocation2 + $0x10] sm:$0xff] %v342
    %373 = vst [vmem:[#allocation2 + $0x18] sm:$0xff] %v347
    %374 = vst [vmem:[#allocation2 + $0x20] sm:$0xff] %v352
    %375 = vst [vmem:[#allocation2 + $0x28] sm:$0xff] %v357
    %376 = vst [vmem:[#allocation2 + $0x30] sm:$0xff] %v362
    %377 = vst [vmem:[#allocation2 + $0x38] sm:$0xff] %v367
    %v378 = vld [vmem:[%s0] sm:$0xff]
    %v379 = vld [vmem:[%s0 + $0x8] sm:$0xff]
    %v380 = vld [vmem:[%s0 + $0x10] sm:$0xff]
    %v381 = vld [vmem:[%s0 + $0x18] sm:$0xff]
    %v382 = vld [vmem:[%s0 + $0x20] sm:$0xff]
    %v383 = vld [vmem:[%s0 + $0x28] sm:$0xff]
    %v384 = vld [vmem:[%s0 + $0x30] sm:$0xff]
    %v385 = vld [vmem:[%s0 + $0x38] sm:$0xff]
    %v386 = vld [vmem:[#allocation7] sm:$0xff]
    %v387 = vld [vmem:[#allocation7 + $0x8] sm:$0xff]
    %v388 = vld [vmem:[#allocation12] sm:$0x1]
    %v390 = vlaneseq
    %v391 = vshrl.u32 %v390, 7
    %v392 = vsub.s32 0, %v391
    %v393 = vrot.slane %v388, %v392
    %v396 = vsel %vm240, %v378, 0
    %v399 = vsel %vm240, %v379, 0
    %v402 = vsel %vm240, %v380, 0
    %v405 = vsel %vm240, %v381, 0
    %v408 = vsel %vm240, %v382, 0
    %v411 = vsel %vm240, %v383, 0
    %v414 = vsel %vm240, %v384, 0
    %v417 = vsel %vm240, %v385, 0
    %419 = vmatprep.subr.mxu0 0.0
    %420 = vmatpush1.msra.mxu0 0.0
    %421 = vmatprep.subr.mxu0 0.0
    %422 = vmatpush1.msra.mxu0 0.0
    %423 = vmatprep.subr.mxu0 0.0
    %424 = vmatpush1.msra.mxu0 0.0
    %425 = vmatprep.subr.mxu0 0.0
    %426 = vmatpush1.msra.mxu0 0.0
    %427 = vmatprep.subr.mxu0 0.0
    %428 = vmatpush1.msra.mxu0 0.0
    %429 = vmatprep.subr.mxu0 0.0
    %430 = vmatpush1.msra.mxu0 0.0
    %431 = vmatprep.subr.mxu0 0.0
    %432 = vmatpush1.msra.mxu0 0.0
    %433 = vmatprep.subr.mxu0 0.0
    %434 = vmatpush1.msra.mxu0 0.0
    %435 = vmatprep.subr.mxu0 0.0
    %436 = vmatpush1.msra.mxu0 0.0
    %437 = vmatprep.subr.mxu0 0.0
    %438 = vmatpush1.msra.mxu0 0.0
    %439 = vmatprep.subr.mxu0 0.0
    %440 = vmatpush1.msra.mxu0 0.0
    %441 = vmatprep.subr.mxu0 0.0
    %442 = vmatpush1.msra.mxu0 0.0
    %443 = vmatprep.subr.mxu0 0.0
    %444 = vmatpush1.msra.mxu0 0.0
    %445 = vmatprep.subr.mxu0 0.0
    %446 = vmatpush1.msra.mxu0 0.0
    %447 = vmatprep.subr.mxu0 0.0
    %448 = vmatpush1.msra.mxu0 %v387
    %449 = vmatprep.subr.mxu0 0.0
    %450 = vmatpush1.msra.mxu0 %v386
    %451 = vmatprep.subr.mxu0 0.0
    %452 = vmatpush2.msra.mxu0 0.0
    %453 = vmatprep.subr.mxu0 0.0
    %454 = vmatpush2.msra.mxu0 0.0
    %455 = vmatprep.subr.mxu0 0.0
    %456 = vmatpush2.msra.mxu0 0.0
    %457 = vmatprep.subr.mxu0 0.0
    %458 = vmatpush2.msra.mxu0 0.0
    %459 = vmatprep.subr.mxu0 0.0
    %460 = vmatpush2.msra.mxu0 0.0
    %461 = vmatprep.subr.mxu0 0.0
    %462 = vmatpush2.msra.mxu0 0.0
    %463 = vmatprep.subr.mxu0 0.0
    %464 = vmatpush2.msra.mxu0 0.0
    %465 = vmatprep.subr.mxu0 0.0
    %466 = vmatpush2.msra.mxu0 0.0
    %467 = vmatprep.subr.mxu0 0.0
    %468 = vmatpush2.msra.mxu0 0.0
    %469 = vmatprep.subr.mxu0 0.0
    %470 = vmatpush2.msra.mxu0 0.0
    %471 = vmatprep.subr.mxu0 0.0
    %472 = vmatpush2.msra.mxu0 0.0
    %473 = vmatprep.subr.mxu0 0.0
    %474 = vmatpush2.msra.mxu0 0.0
    %475 = vmatprep.subr.mxu0 0.0
    %476 = vmatpush2.msra.mxu0 0.0
    %477 = vmatprep.subr.mxu0 0.0
    %478 = vmatpush2.msra.mxu0 0.0
    %479 = vmatprep.subr.mxu0 0.0
    %480 = vmatpush2.msra.mxu0 0.0
    %481 = vmatprep.subr.mxu0 0.0
    %482 = vmatpush2.msra.mxu0 0.0
    %483 = vmatprep.mubr.f32.mxu0 0.0
    %484 = vmatmul.mubr.f32.gmra.mxu0 %v396
    %v485 = vpop.f32.mrf.mxu0
    %v486 = vadd.f32 %v393, %v485
    %v487 = vpop.f32.mrf.mxu0
    %488 = vmatprep.mubr.f32.mxu0 0.0
    %489 = vmatmul.mubr.f32.gmra.mxu0 %v399
    %v490 = vpop.f32.mrf.mxu0
    %v491 = vadd.f32 %v393, %v490
    %v492 = vpop.f32.mrf.mxu0
    %493 = vmatprep.mubr.f32.mxu0 0.0
    %494 = vmatmul.mubr.f32.gmra.mxu0 %v402
    %v495 = vpop.f32.mrf.mxu0
    %v496 = vadd.f32 %v393, %v495
    %v497 = vpop.f32.mrf.mxu0
    %498 = vmatprep.mubr.f32.mxu0 0.0
    %499 = vmatmul.mubr.f32.gmra.mxu0 %v405
    %v500 = vpop.f32.mrf.mxu0
    %v501 = vadd.f32 %v393, %v500
    %v502 = vpop.f32.mrf.mxu0
    %503 = vmatprep.mubr.f32.mxu0 0.0
    %504 = vmatmul.mubr.f32.gmra.mxu0 %v408
    %v505 = vpop.f32.mrf.mxu0
    %v506 = vadd.f32 %v393, %v505
    %v507 = vpop.f32.mrf.mxu0
    %508 = vmatprep.mubr.f32.mxu0 0.0
    %509 = vmatmul.mubr.f32.gmra.mxu0 %v411
    %v510 = vpop.f32.mrf.mxu0
    %v511 = vadd.f32 %v393, %v510
    %v512 = vpop.f32.mrf.mxu0
    %513 = vmatprep.mubr.f32.mxu0 0.0
    %514 = vmatmul.mubr.f32.gmra.mxu0 %v414
    %v515 = vpop.f32.mrf.mxu0
    %v516 = vadd.f32 %v393, %v515
    %v517 = vpop.f32.mrf.mxu0
    %518 = vmatprep.mubr.f32.mxu0 0.0
    %519 = vmatmul.mubr.f32.gmra.mxu0 %v417
    %v520 = vpop.f32.mrf.mxu0
    %v521 = vadd.f32 %v393, %v520
    %v522 = vpop.f32.mrf.mxu0
    %523 = vdwg.mxu0
    %524 = vst [vmem:[#allocation3] sm:$0xff] %v486
    %525 = vst [vmem:[#allocation3 + $0x8] sm:$0xff] %v491
    %526 = vst [vmem:[#allocation3 + $0x10] sm:$0xff] %v496
    %527 = vst [vmem:[#allocation3 + $0x18] sm:$0xff] %v501
    %528 = vst [vmem:[#allocation3 + $0x20] sm:$0xff] %v506
    %529 = vst [vmem:[#allocation3 + $0x28] sm:$0xff] %v511
    %530 = vst [vmem:[#allocation3 + $0x30] sm:$0xff] %v516
    %531 = vst [vmem:[#allocation3 + $0x38] sm:$0xff] %v521
    %v532 = vld [vmem:[#allocation2] sm:$0xff]
    %v533 = vld [vmem:[#allocation9] sm:$0xff]
    %v534 = vld [vmem:[#allocation9 + $0x8] sm:$0xff]
    %v535 = vld [vmem:[#allocation9 + $0x10] sm:$0xff]
    %v536 = vld [vmem:[#allocation9 + $0x18] sm:$0xff]
    %vm537 = vcmask 261120
    %v539 = vsel %vm537, 0.0, 0
    %541 = vmatprep.subr.mxu0 0.0
    %542 = vmatpush1.msra.mxu0 0.0
    %543 = vmatprep.subr.mxu0 0.0
    %544 = vmatpush1.msra.mxu0 0.0
    %545 = vmatprep.subr.mxu0 0.0
    %546 = vmatpush1.msra.mxu0 0.0
    %547 = vmatprep.subr.mxu0 0.0
    %548 = vmatpush1.msra.mxu0 0.0
    %549 = vmatprep.subr.mxu0 0.0
    %550 = vmatpush1.msra.mxu0 0.0
    %551 = vmatprep.subr.mxu0 0.0
    %552 = vmatpush1.msra.mxu0 0.0
    %553 = vmatprep.subr.mxu0 0.0
    %554 = vmatpush1.msra.mxu0 0.0
    %555 = vmatprep.subr.mxu0 0.0
    %556 = vmatpush1.msra.mxu0 0.0
    %557 = vmatprep.subr.mxu0 0.0
    %558 = vmatpush1.msra.mxu0 0.0
    %559 = vmatprep.subr.mxu0 0.0
    %560 = vmatpush1.msra.mxu0 0.0
    %561 = vmatprep.subr.mxu0 0.0
    %562 = vmatpush1.msra.mxu0 0.0
    %563 = vmatprep.subr.mxu0 0.0
    %564 = vmatpush1.msra.mxu0 0.0
    %565 = vmatprep.subr.mxu0 0.0
    %566 = vmatpush1.msra.mxu0 %v536
    %567 = vmatprep.subr.mxu0 0.0
    %568 = vmatpush1.msra.mxu0 %v535
    %569 = vmatprep.subr.mxu0 0.0
    %570 = vmatpush1.msra.mxu0 %v534
    %571 = vmatprep.subr.mxu0 0.0
    %572 = vmatpush1.msra.mxu0 %v533
    %573 = vmatprep.subr.mxu0 0.0
    %574 = vmatpush2.msra.mxu0 0.0
    %575 = vmatprep.subr.mxu0 0.0
    %576 = vmatpush2.msra.mxu0 0.0
    %577 = vmatprep.subr.mxu0 0.0
    %578 = vmatpush2.msra.mxu0 0.0
    %579 = vmatprep.subr.mxu0 0.0
    %580 = vmatpush2.msra.mxu0 0.0
    %581 = vmatprep.subr.mxu0 0.0
    %582 = vmatpush2.msra.mxu0 0.0
    %583 = vmatprep.subr.mxu0 0.0
    %584 = vmatpush2.msra.mxu0 0.0
    %585 = vmatprep.subr.mxu0 0.0
    %586 = vmatpush2.msra.mxu0 0.0
    %587 = vmatprep.subr.mxu0 0.0
    %588 = vmatpush2.msra.mxu0 0.0
    %589 = vmatprep.subr.mxu0 0.0
    %590 = vmatpush2.msra.mxu0 0.0
    %591 = vmatprep.subr.mxu0 0.0
    %592 = vmatpush2.msra.mxu0 0.0
    %593 = vmatprep.subr.mxu0 0.0
    %594 = vmatpush2.msra.mxu0 0.0
    %595 = vmatprep.subr.mxu0 0.0
    %596 = vmatpush2.msra.mxu0 0.0
    %597 = vmatprep.subr.mxu0 0.0
    %598 = vmatpush2.msra.mxu0 0.0
    %599 = vmatprep.subr.mxu0 0.0
    %600 = vmatpush2.msra.mxu0 0.0
    %601 = vmatprep.subr.mxu0 0.0
    %602 = vmatpush2.msra.mxu0 0.0
    %603 = vmatprep.subr.mxu0 0.0
    %604 = vmatpush2.msra.mxu0 0.0
    %605 = vmatprep.mubr.f32.mxu0 0.0
    %606 = vmatmul.mubr.f32.gmra.mxu0 %v539
    %v607 = vpop.f32.mrf.mxu0
    %v608 = vadd.f32 0.0, %v607
    %v609 = vpop.f32.mrf.mxu0
    %610 = vdwg.mxu0
    %v611 = vadd.f32 %v532, %v608
    %s612 = scalar_lea.vmem [#allocation3], 56
    %v613 = vld [vmem:[%s612] sm:$0xff]
    %v614 = vld [vmem:[%s4] sm:$0xff]
    %v615 = vld [vmem:[%s4 + $0x8] sm:$0xff]
    %v616 = vld [vmem:[%s4 + $0x10] sm:$0xff]
    %v617 = vld [vmem:[%s4 + $0x18] sm:$0xff]
    %618 = vmatprep.subr.mxu0 0.0
    %619 = vmatpush1.msra.mxu0 0.0
    %620 = vmatprep.subr.mxu0 0.0
    %621 = vmatpush1.msra.mxu0 0.0
    %622 = vmatprep.subr.mxu0 0.0
    %623 = vmatpush1.msra.mxu0 0.0
    %624 = vmatprep.subr.mxu0 0.0
    %625 = vmatpush1.msra.mxu0 0.0
    %626 = vmatprep.subr.mxu0 0.0
    %627 = vmatpush1.msra.mxu0 0.0
    %628 = vmatprep.subr.mxu0 0.0
    %629 = vmatpush1.msra.mxu0 0.0
    %630 = vmatprep.subr.mxu0 0.0
    %631 = vmatpush1.msra.mxu0 0.0
    %632 = vmatprep.subr.mxu0 0.0
    %633 = vmatpush1.msra.mxu0 0.0
    %634 = vmatprep.subr.mxu0 0.0
    %635 = vmatpush1.msra.mxu0 0.0
    %636 = vmatprep.subr.mxu0 0.0
    %637 = vmatpush1.msra.mxu0 0.0
    %638 = vmatprep.subr.mxu0 0.0
    %639 = vmatpush1.msra.mxu0 0.0
    %640 = vmatprep.subr.mxu0 0.0
    %641 = vmatpush1.msra.mxu0 0.0
    %642 = vmatprep.subr.mxu0 0.0
    %643 = vmatpush1.msra.mxu0 %v617
    %644 = vmatprep.subr.mxu0 0.0
    %645 = vmatpush1.msra.mxu0 %v616
    %646 = vmatprep.subr.mxu0 0.0
    %647 = vmatpush1.msra.mxu0 %v615
    %648 = vmatprep.subr.mxu0 0.0
    %649 = vmatpush1.msra.mxu0 %v614
    %650 = vmatprep.subr.mxu0 0.0
    %651 = vmatpush2.msra.mxu0 0.0
    %652 = vmatprep.subr.mxu0 0.0
    %653 = vmatpush2.msra.mxu0 0.0
    %654 = vmatprep.subr.mxu0 0.0
    %655 = vmatpush2.msra.mxu0 0.0
    %656 = vmatprep.subr.mxu0 0.0
    %657 = vmatpush2.msra.mxu0 0.0
    %658 = vmatprep.subr.mxu0 0.0
    %659 = vmatpush2.msra.mxu0 0.0
    %660 = vmatprep.subr.mxu0 0.0
    %661 = vmatpush2.msra.mxu0 0.0
    %662 = vmatprep.subr.mxu0 0.0
    %663 = vmatpush2.msra.mxu0 0.0
    %664 = vmatprep.subr.mxu0 0.0
    %665 = vmatpush2.msra.mxu0 0.0
    %666 = vmatprep.subr.mxu0 0.0
    %667 = vmatpush2.msra.mxu0 0.0
    %668 = vmatprep.subr.mxu0 0.0
    %669 = vmatpush2.msra.mxu0 0.0
    %670 = vmatprep.subr.mxu0 0.0
    %671 = vmatpush2.msra.mxu0 0.0
    %672 = vmatprep.subr.mxu0 0.0
    %673 = vmatpush2.msra.mxu0 0.0
    %674 = vmatprep.subr.mxu0 0.0
    %675 = vmatpush2.msra.mxu0 0.0
    %676 = vmatprep.subr.mxu0 0.0
    %677 = vmatpush2.msra.mxu0 0.0
    %678 = vmatprep.subr.mxu0 0.0
    %679 = vmatpush2.msra.mxu0 0.0
    %680 = vmatprep.subr.mxu0 0.0
    %681 = vmatpush2.msra.mxu0 0.0
    %682 = vmatprep.mubr.f32.mxu0 0.0
    %683 = vmatmul.mubr.f32.gmra.mxu0 %v539
    %v684 = vpop.f32.mrf.mxu0
    %v685 = vadd.f32 0.0, %v684
    %v686 = vpop.f32.mrf.mxu0
    %687 = vdwg.mxu0
    %v688 = vadd.f32 %v613, %v685
    %v689 = vxor.u32 %v611, 2147483648
    %v690 = vmul.f32 %v689, 1.442695
    %v691 = vpow.pop %v690
    %v692 = vadd.f32 %v691, 1.0
    %v693 = vrcp.pop %v692
    %v694 = vmul.f32 1.0, %v693
    %v695 = vtanh.pop %v611
    %v696 = vmul.f32 %v694, 0.0
    %698 = vrot.lane.b32.xlu0 %v695, 64
    %v699 = vpop.permute.xlu0 %698
    %v701 = vmul.f32 %v694, %v699
    %703 = vrot.lane.b32.xlu0 %v701, 32
    %v704 = vpop.permute.xlu0 %703
    %v706 = vadd.f32 %v696, %v704
    %v707 = vtanh.pop %v706
    %709 = vrot.lane.b32.xlu0 %v707, 64
    %v710 = vpop.permute.xlu0 %709
    %v712 = vmul.f32 %v694, %v710
    %v713 = vxor.u32 %v688, 2147483648
    %v714 = vmul.f32 %v713, 1.442695
    %v715 = vpow.pop %v714
    %v716 = vadd.f32 %v715, 1.0
    %v717 = vrcp.pop %v716
    %v718 = vmul.f32 1.0, %v717
    %v719 = vtanh.pop %v688
    %v720 = vmul.f32 %v718, 0.0
    %722 = vrot.lane.b32.xlu0 %v719, 64
    %v723 = vpop.permute.xlu0 %722
    %v725 = vmul.f32 %v718, %v723
    %727 = vrot.lane.b32.xlu0 %v725, 32
    %v728 = vpop.permute.xlu0 %727
    %v730 = vadd.f32 %v720, %v728
    %v731 = vtanh.pop %v730
    %733 = vrot.lane.b32.xlu0 %v731, 64
    %v734 = vpop.permute.xlu0 %733
    %v736 = vmul.f32 %v718, %v734
    %738 = vrot.lane.b32.xlu0 %v712, 32
    %v739 = vpop.permute.xlu0 %738
    %741 = vst.msk [vmem:[#allocation4] sm:$0xff] %vm537, %v739
    %743 = vrot.lane.b32.xlu0 %v736, 64
    %v744 = vpop.permute.xlu0 %743
    %s746 = scalar_lea.vmem [#allocation4], 56
    %vm747 = vcmask 523520
    %748 = vst.msk [vmem:[%s746] sm:$0xff] %vm747, %v744
    %s749 = scalar_lea.vmem [#allocation2], 8
    %v750 = vld [vmem:[%s749] sm:$0xff]
    %v751 = vld [vmem:[#allocation9] sm:$0xff]
    %v752 = vld [vmem:[#allocation9 + $0x8] sm:$0xff]
    %v753 = vld [vmem:[#allocation9 + $0x10] sm:$0xff]
    %v754 = vld [vmem:[#allocation9 + $0x18] sm:$0xff]
    %v755 = vsel %vm537, %v739, 0
    %757 = vmatprep.subr.mxu0 0.0
    %758 = vmatpush1.msra.mxu0 0.0
    %759 = vmatprep.subr.mxu0 0.0
    %760 = vmatpush1.msra.mxu0 0.0
    %761 = vmatprep.subr.mxu0 0.0
    %762 = vmatpush1.msra.mxu0 0.0
    %763 = vmatprep.subr.mxu0 0.0
    %764 = vmatpush1.msra.mxu0 0.0
    %765 = vmatprep.subr.mxu0 0.0
    %766 = vmatpush1.msra.mxu0 0.0
    %767 = vmatprep.subr.mxu0 0.0
    %768 = vmatpush1.msra.mxu0 0.0
    %769 = vmatprep.subr.mxu0 0.0
    %770 = vmatpush1.msra.mxu0 0.0
    %771 = vmatprep.subr.mxu0 0.0
    %772 = vmatpush1.msra.mxu0 0.0
    %773 = vmatprep.subr.mxu0 0.0
    %774 = vmatpush1.msra.mxu0 0.0
    %775 = vmatprep.subr.mxu0 0.0
    %776 = vmatpush1.msra.mxu0 0.0
    %777 = vmatprep.subr.mxu0 0.0
    %778 = vmatpush1.msra.mxu0 0.0
    %779 = vmatprep.subr.mxu0 0.0
    %780 = vmatpush1.msra.mxu0 0.0
    %781 = vmatprep.subr.mxu0 0.0
    %782 = vmatpush1.msra.mxu0 %v754
    %783 = vmatprep.subr.mxu0 0.0
    %784 = vmatpush1.msra.mxu0 %v753
    %785 = vmatprep.subr.mxu0 0.0
    %786 = vmatpush1.msra.mxu0 %v752
    %787 = vmatprep.subr.mxu0 0.0
    %788 = vmatpush1.msra.mxu0 %v751
    %789 = vmatprep.subr.mxu0 0.0
    %790 = vmatpush2.msra.mxu0 0.0
    %791 = vmatprep.subr.mxu0 0.0
    %792 = vmatpush2.msra.mxu0 0.0
    %793 = vmatprep.subr.mxu0 0.0
    %794 = vmatpush2.msra.mxu0 0.0
    %795 = vmatprep.subr.mxu0 0.0
    %796 = vmatpush2.msra.mxu0 0.0
    %797 = vmatprep.subr.mxu0 0.0
    %798 = vmatpush2.msra.mxu0 0.0
    %799 = vmatprep.subr.mxu0 0.0
    %800 = vmatpush2.msra.mxu0 0.0
    %801 = vmatprep.subr.mxu0 0.0
    %802 = vmatpush2.msra.mxu0 0.0
    %803 = vmatprep.subr.mxu0 0.0
    %804 = vmatpush2.msra.mxu0 0.0
    %805 = vmatprep.subr.mxu0 0.0
    %806 = vmatpush2.msra.mxu0 0.0
    %807 = vmatprep.subr.mxu0 0.0
    %808 = vmatpush2.msra.mxu0 0.0
    %809 = vmatprep.subr.mxu0 0.0
    %810 = vmatpush2.msra.mxu0 0.0
    %811 = vmatprep.subr.mxu0 0.0
    %812 = vmatpush2.msra.mxu0 0.0
    %813 = vmatprep.subr.mxu0 0.0
    %814 = vmatpush2.msra.mxu0 0.0
    %815 = vmatprep.subr.mxu0 0.0
    %816 = vmatpush2.msra.mxu0 0.0
    %817 = vmatprep.subr.mxu0 0.0
    %818 = vmatpush2.msra.mxu0 0.0
    %819 = vmatprep.subr.mxu0 0.0
    %820 = vmatpush2.msra.mxu0 0.0
    %821 = vmatprep.mubr.f32.mxu0 0.0
    %822 = vmatmul.mubr.f32.gmra.mxu0 %v755
    %v823 = vpop.f32.mrf.mxu0
    %v824 = vadd.f32 0.0, %v823
    %v825 = vpop.f32.mrf.mxu0
    %826 = vdwg.mxu0
    %v827 = vadd.f32 %v750, %v824
    %s828 = scalar_lea.vmem [#allocation3], 48
    %v829 = vld [vmem:[%s828] sm:$0xff]
    %v830 = vld [vmem:[%s4] sm:$0xff]
    %v831 = vld [vmem:[%s4 + $0x8] sm:$0xff]
    %v832 = vld [vmem:[%s4 + $0x10] sm:$0xff]
    %v833 = vld [vmem:[%s4 + $0x18] sm:$0xff]
    %834 = vrot.lane.b32.xlu0 %v736, 32
    %v835 = vpop.permute.xlu0 %834
    %v836 = vsel %vm537, %v835, 0
    %838 = vmatprep.subr.mxu0 0.0
    %839 = vmatpush1.msra.mxu0 0.0
    %840 = vmatprep.subr.mxu0 0.0
    %841 = vmatpush1.msra.mxu0 0.0
    %842 = vmatprep.subr.mxu0 0.0
    %843 = vmatpush1.msra.mxu0 0.0
    %844 = vmatprep.subr.mxu0 0.0
    %845 = vmatpush1.msra.mxu0 0.0
    %846 = vmatprep.subr.mxu0 0.0
    %847 = vmatpush1.msra.mxu0 0.0
    %848 = vmatprep.subr.mxu0 0.0
    %849 = vmatpush1.msra.mxu0 0.0
    %850 = vmatprep.subr.mxu0 0.0
    %851 = vmatpush1.msra.mxu0 0.0
    %852 = vmatprep.subr.mxu0 0.0
    %853 = vmatpush1.msra.mxu0 0.0
    %854 = vmatprep.subr.mxu0 0.0
    %855 = vmatpush1.msra.mxu0 0.0
    %856 = vmatprep.subr.mxu0 0.0
    %857 = vmatpush1.msra.mxu0 0.0
    %858 = vmatprep.subr.mxu0 0.0
    %859 = vmatpush1.msra.mxu0 0.0
    %860 = vmatprep.subr.mxu0 0.0
    %861 = vmatpush1.msra.mxu0 0.0
    %862 = vmatprep.subr.mxu0 0.0
    %863 = vmatpush1.msra.mxu0 %v833
    %864 = vmatprep.subr.mxu0 0.0
    %865 = vmatpush1.msra.mxu0 %v832
    %866 = vmatprep.subr.mxu0 0.0
    %867 = vmatpush1.msra.mxu0 %v831
    %868 = vmatprep.subr.mxu0 0.0
    %869 = vmatpush1.msra.mxu0 %v830
    %870 = vmatprep.subr.mxu0 0.0
    %871 = vmatpush2.msra.mxu0 0.0
    %872 = vmatprep.subr.mxu0 0.0
    %873 = vmatpush2.msra.mxu0 0.0
    %874 = vmatprep.subr.mxu0 0.0
    %875 = vmatpush2.msra.mxu0 0.0
    %876 = vmatprep.subr.mxu0 0.0
    %877 = vmatpush2.msra.mxu0 0.0
    %878 = vmatprep.subr.mxu0 0.0
    %879 = vmatpush2.msra.mxu0 0.0
    %880 = vmatprep.subr.mxu0 0.0
    %881 = vmatpush2.msra.mxu0 0.0
    %882 = vmatprep.subr.mxu0 0.0
    %883 = vmatpush2.msra.mxu0 0.0
    %884 = vmatprep.subr.mxu0 0.0
    %885 = vmatpush2.msra.mxu0 0.0
    %886 = vmatprep.subr.mxu0 0.0
    %887 = vmatpush2.msra.mxu0 0.0
    %888 = vmatprep.subr.mxu0 0.0
    %889 = vmatpush2.msra.mxu0 0.0
    %890 = vmatprep.subr.mxu0 0.0
    %891 = vmatpush2.msra.mxu0 0.0
    %892 = vmatprep.subr.mxu0 0.0
    %893 = vmatpush2.msra.mxu0 0.0
    %894 = vmatprep.subr.mxu0 0.0
    %895 = vmatpush2.msra.mxu0 0.0
    %896 = vmatprep.subr.mxu0 0.0
    %897 = vmatpush2.msra.mxu0 0.0
    %898 = vmatprep.subr.mxu0 0.0
    %899 = vmatpush2.msra.mxu0 0.0
    %900 = vmatprep.subr.mxu0 0.0
    %901 = vmatpush2.msra.mxu0 0.0
    %902 = vmatprep.mubr.f32.mxu0 0.0
    %903 = vmatmul.mubr.f32.gmra.mxu0 %v836
    %v904 = vpop.f32.mrf.mxu0
    %v905 = vadd.f32 0.0, %v904
    %v906 = vpop.f32.mrf.mxu0
    %907 = vdwg.mxu0
    %v908 = vadd.f32 %v829, %v905
    %v909 = vxor.u32 %v827, 2147483648
    %v910 = vmul.f32 %v909, 1.442695
    %v911 = vpow.pop %v910
    %v912 = vadd.f32 %v911, 1.0
    %v913 = vrcp.pop %v912
    %v914 = vmul.f32 1.0, %v913
    %v915 = vtanh.pop %v827
    %v916 = vmul.f32 %v914, %v706
    %918 = vrot.lane.b32.xlu0 %v915, 64
    %v919 = vpop.permute.xlu0 %918
    %v921 = vmul.f32 %v914, %v919
    %923 = vrot.lane.b32.xlu0 %v921, 32
    %v924 = vpop.permute.xlu0 %923
    %v926 = vadd.f32 %v916, %v924
    %v927 = vtanh.pop %v926
    %929 = vrot.lane.b32.xlu0 %v927, 64
    %v930 = vpop.permute.xlu0 %929
    %v932 = vmul.f32 %v914, %v930
    %v933 = vxor.u32 %v908, 2147483648
    %v934 = vmul.f32 %v933, 1.442695
    %v935 = vpow.pop %v934
    %v936 = vadd.f32 %v935, 1.0
    %v937 = vrcp.pop %v936
    %v938 = vmul.f32 1.0, %v937
    %v939 = vtanh.pop %v908
    %v940 = vmul.f32 %v938, %v730
    %942 = vrot.lane.b32.xlu0 %v939, 64
    %v943 = vpop.permute.xlu0 %942
    %v945 = vmul.f32 %v938, %v943
    %947 = vrot.lane.b32.xlu0 %v945, 32
    %v948 = vpop.permute.xlu0 %947
    %v950 = vadd.f32 %v940, %v948
    %v951 = vtanh.pop %v950
    %953 = vrot.lane.b32.xlu0 %v951, 64
    %v954 = vpop.permute.xlu0 %953
    %v956 = vmul.f32 %v938, %v954
    %958 = vrot.lane.b32.xlu0 %v932, 32
    %v959 = vpop.permute.xlu0 %958
    %s961 = scalar_lea.vmem [#allocation4], 8
    %962 = vst.msk [vmem:[%s961] sm:$0xff] %vm537, %v959
    %964 = vrot.lane.b32.xlu0 %v956, 64
    %v965 = vpop.permute.xlu0 %964
    %s967 = scalar_lea.vmem [#allocation4], 48
    %968 = vst.msk [vmem:[%s967] sm:$0xff] %vm747, %v965
    %s969 = scalar_lea.vmem [#allocation2], 16
    %v970 = vld [vmem:[%s969] sm:$0xff]
    %v971 = vld [vmem:[#allocation9] sm:$0xff]
    %v972 = vld [vmem:[#allocation9 + $0x8] sm:$0xff]
    %v973 = vld [vmem:[#allocation9 + $0x10] sm:$0xff]
    %v974 = vld [vmem:[#allocation9 + $0x18] sm:$0xff]
    %v975 = vsel %vm537, %v959, 0
    %977 = vmatprep.subr.mxu0 0.0
    %978 = vmatpush1.msra.mxu0 0.0
    %979 = vmatprep.subr.mxu0 0.0
    %980 = vmatpush1.msra.mxu0 0.0
    %981 = vmatprep.subr.mxu0 0.0
    %982 = vmatpush1.msra.mxu0 0.0
    %983 = vmatprep.subr.mxu0 0.0
    %984 = vmatpush1.msra.mxu0 0.0
    %985 = vmatprep.subr.mxu0 0.0
    %986 = vmatpush1.msra.mxu0 0.0
    %987 = vmatprep.subr.mxu0 0.0
    %988 = vmatpush1.msra.mxu0 0.0
    %989 = vmatprep.subr.mxu0 0.0
    %990 = vmatpush1.msra.mxu0 0.0
    %991 = vmatprep.subr.mxu0 0.0
    %992 = vmatpush1.msra.mxu0 0.0
    %993 = vmatprep.subr.mxu0 0.0
    %994 = vmatpush1.msra.mxu0 0.0
    %995 = vmatprep.subr.mxu0 0.0
    %996 = vmatpush1.msra.mxu0 0.0
    %997 = vmatprep.subr.mxu0 0.0
    %998 = vmatpush1.msra.mxu0 0.0
    %999 = vmatprep.subr.mxu0 0.0
    %1000 = vmatpush1.msra.mxu0 0.0
    %1001 = vmatprep.subr.mxu0 0.0
    %1002 = vmatpush1.msra.mxu0 %v974
    %1003 = vmatprep.subr.mxu0 0.0
    %1004 = vmatpush1.msra.mxu0 %v973
    %1005 = vmatprep.subr.mxu0 0.0
    %1006 = vmatpush1.msra.mxu0 %v972
    %1007 = vmatprep.subr.mxu0 0.0
    %1008 = vmatpush1.msra.mxu0 %v971
    %1009 = vmatprep.subr.mxu0 0.0
    %1010 = vmatpush2.msra.mxu0 0.0
    %1011 = vmatprep.subr.mxu0 0.0
    %1012 = vmatpush2.msra.mxu0 0.0
    %1013 = vmatprep.subr.mxu0 0.0
    %1014 = vmatpush2.msra.mxu0 0.0
    %1015 = vmatprep.subr.mxu0 0.0
    %1016 = vmatpush2.msra.mxu0 0.0
    %1017 = vmatprep.subr.mxu0 0.0
    %1018 = vmatpush2.msra.mxu0 0.0
    %1019 = vmatprep.subr.mxu0 0.0
    %1020 = vmatpush2.msra.mxu0 0.0
    %1021 = vmatprep.subr.mxu0 0.0
    %1022 = vmatpush2.msra.mxu0 0.0
    %1023 = vmatprep.subr.mxu0 0.0
    %1024 = vmatpush2.msra.mxu0 0.0
    %1025 = vmatprep.subr.mxu0 0.0
    %1026 = vmatpush2.msra.mxu0 0.0
    %1027 = vmatprep.subr.mxu0 0.0
    %1028 = vmatpush2.msra.mxu0 0.0
    %1029 = vmatprep.subr.mxu0 0.0
    %1030 = vmatpush2.msra.mxu0 0.0
    %1031 = vmatprep.subr.mxu0 0.0
    %1032 = vmatpush2.msra.mxu0 0.0
    %1033 = vmatprep.subr.mxu0 0.0
    %1034 = vmatpush2.msra.mxu0 0.0
    %1035 = vmatprep.subr.mxu0 0.0
    %1036 = vmatpush2.msra.mxu0 0.0
    %1037 = vmatprep.subr.mxu0 0.0
    %1038 = vmatpush2.msra.mxu0 0.0
    %1039 = vmatprep.subr.mxu0 0.0
    %1040 = vmatpush2.msra.mxu0 0.0
    %1041 = vmatprep.mubr.f32.mxu0 0.0
    %1042 = vmatmul.mubr.f32.gmra.mxu0 %v975
    %v1043 = vpop.f32.mrf.mxu0
    %v1044 = vadd.f32 0.0, %v1043
    %v1045 = vpop.f32.mrf.mxu0
    %1046 = vdwg.mxu0
    %v1047 = vadd.f32 %v970, %v1044
    %s1048 = scalar_lea.vmem [#allocation3], 40
    %v1049 = vld [vmem:[%s1048] sm:$0xff]
    %v1050 = vld [vmem:[%s4] sm:$0xff]
    %v1051 = vld [vmem:[%s4 + $0x8] sm:$0xff]
    %v1052 = vld [vmem:[%s4 + $0x10] sm:$0xff]
    %v1053 = vld [vmem:[%s4 + $0x18] sm:$0xff]
    %1054 = vrot.lane.b32.xlu0 %v956, 32
    %v1055 = vpop.permute.xlu0 %1054
    %v1056 = vsel %vm537, %v1055, 0
    %1058 = vmatprep.subr.mxu0 0.0
    %1059 = vmatpush1.msra.mxu0 0.0
    %1060 = vmatprep.subr.mxu0 0.0
    %1061 = vmatpush1.msra.mxu0 0.0
    %1062 = vmatprep.subr.mxu0 0.0
    %1063 = vmatpush1.msra.mxu0 0.0
    %1064 = vmatprep.subr.mxu0 0.0
    %1065 = vmatpush1.msra.mxu0 0.0
    %1066 = vmatprep.subr.mxu0 0.0
    %1067 = vmatpush1.msra.mxu0 0.0
    %1068 = vmatprep.subr.mxu0 0.0
    %1069 = vmatpush1.msra.mxu0 0.0
    %1070 = vmatprep.subr.mxu0 0.0
    %1071 = vmatpush1.msra.mxu0 0.0
    %1072 = vmatprep.subr.mxu0 0.0
    %1073 = vmatpush1.msra.mxu0 0.0
    %1074 = vmatprep.subr.mxu0 0.0
    %1075 = vmatpush1.msra.mxu0 0.0
    %1076 = vmatprep.subr.mxu0 0.0
    %1077 = vmatpush1.msra.mxu0 0.0
    %1078 = vmatprep.subr.mxu0 0.0
    %1079 = vmatpush1.msra.mxu0 0.0
    %1080 = vmatprep.subr.mxu0 0.0
    %1081 = vmatpush1.msra.mxu0 0.0
    %1082 = vmatprep.subr.mxu0 0.0
    %1083 = vmatpush1.msra.mxu0 %v1053
    %1084 = vmatprep.subr.mxu0 0.0
    %1085 = vmatpush1.msra.mxu0 %v1052
    %1086 = vmatprep.subr.mxu0 0.0
    %1087 = vmatpush1.msra.mxu0 %v1051
    %1088 = vmatprep.subr.mxu0 0.0
    %1089 = vmatpush1.msra.mxu0 %v1050
    %1090 = vmatprep.subr.mxu0 0.0
    %1091 = vmatpush2.msra.mxu0 0.0
    %1092 = vmatprep.subr.mxu0 0.0
    %1093 = vmatpush2.msra.mxu0 0.0
    %1094 = vmatprep.subr.mxu0 0.0
    %1095 = vmatpush2.msra.mxu0 0.0
    %1096 = vmatprep.subr.mxu0 0.0
    %1097 = vmatpush2.msra.mxu0 0.0
    %1098 = vmatprep.subr.mxu0 0.0
    %1099 = vmatpush2.msra.mxu0 0.0
    %1100 = vmatprep.subr.mxu0 0.0
    %1101 = vmatpush2.msra.mxu0 0.0
    %1102 = vmatprep.subr.mxu0 0.0
    %1103 = vmatpush2.msra.mxu0 0.0
    %1104 = vmatprep.subr.mxu0 0.0
    %1105 = vmatpush2.msra.mxu0 0.0
    %1106 = vmatprep.subr.mxu0 0.0
    %1107 = vmatpush2.msra.mxu0 0.0
    %1108 = vmatprep.subr.mxu0 0.0
    %1109 = vmatpush2.msra.mxu0 0.0
    %1110 = vmatprep.subr.mxu0 0.0
    %1111 = vmatpush2.msra.mxu0 0.0
    %1112 = vmatprep.subr.mxu0 0.0
    %1113 = vmatpush2.msra.mxu0 0.0
    %1114 = vmatprep.subr.mxu0 0.0
    %1115 = vmatpush2.msra.mxu0 0.0
    %1116 = vmatprep.subr.mxu0 0.0
    %1117 = vmatpush2.msra.mxu0 0.0
    %1118 = vmatprep.subr.mxu0 0.0
    %1119 = vmatpush2.msra.mxu0 0.0
    %1120 = vmatprep.subr.mxu0 0.0
    %1121 = vmatpush2.msra.mxu0 0.0
    %1122 = vmatprep.mubr.f32.mxu0 0.0
    %1123 = vmatmul.mubr.f32.gmra.mxu0 %v1056
    %v1124 = vpop.f32.mrf.mxu0
    %v1125 = vadd.f32 0.0, %v1124
    %v1126 = vpop.f32.mrf.mxu0
    %1127 = vdwg.mxu0
    %v1128 = vadd.f32 %v1049, %v1125
    %v1129 = vxor.u32 %v1047, 2147483648
    %v1130 = vmul.f32 %v1129, 1.442695
    %v1131 = vpow.pop %v1130
    %v1132 = vadd.f32 %v1131, 1.0
    %v1133 = vrcp.pop %v1132
    %v1134 = vmul.f32 1.0, %v1133
    %v1135 = vtanh.pop %v1047
    %v1136 = vmul.f32 %v1134, %v926
    %1138 = vrot.lane.b32.xlu0 %v1135, 64
    %v1139 = vpop.permute.xlu0 %1138
    %v1141 = vmul.f32 %v1134, %v1139
    %1143 = vrot.lane.b32.xlu0 %v1141, 32
    %v1144 = vpop.permute.xlu0 %1143
    %v1146 = vadd.f32 %v1136, %v1144
    %v1147 = vtanh.pop %v1146
    %1149 = vrot.lane.b32.xlu0 %v1147, 64
    %v1150 = vpop.permute.xlu0 %1149
    %v1152 = vmul.f32 %v1134, %v1150
    %v1153 = vxor.u32 %v1128, 2147483648
    %v1154 = vmul.f32 %v1153, 1.442695
    %v1155 = vpow.pop %v1154
    %v1156 = vadd.f32 %v1155, 1.0
    %v1157 = vrcp.pop %v1156
    %v1158 = vmul.f32 1.0, %v1157
    %v1159 = vtanh.pop %v1128
    %v1160 = vmul.f32 %v1158, %v950
    %1162 = vrot.lane.b32.xlu0 %v1159, 64
    %v1163 = vpop.permute.xlu0 %1162
    %v1165 = vmul.f32 %v1158, %v1163
    %1167 = vrot.lane.b32.xlu0 %v1165, 32
    %v1168 = vpop.permute.xlu0 %1167
    %v1170 = vadd.f32 %v1160, %v1168
    %v1171 = vtanh.pop %v1170
    %1173 = vrot.lane.b32.xlu0 %v1171, 64
    %v1174 = vpop.permute.xlu0 %1173
    %v1176 = vmul.f32 %v1158, %v1174
    %1178 = vrot.lane.b32.xlu0 %v1152, 32
    %v1179 = vpop.permute.xlu0 %1178
    %s1181 = scalar_lea.vmem [#allocation4], 16
    %1182 = vst.msk [vmem:[%s1181] sm:$0xff] %vm537, %v1179
    %1184 = vrot.lane.b32.xlu0 %v1176, 64
    %v1185 = vpop.permute.xlu0 %1184
    %s1187 = scalar_lea.vmem [#allocation4], 40
    %1188 = vst.msk [vmem:[%s1187] sm:$0xff] %vm747, %v1185
    %s1189 = scalar_lea.vmem [#allocation2], 24
    %v1190 = vld [vmem:[%s1189] sm:$0xff]
    %v1191 = vld [vmem:[#allocation9] sm:$0xff]
    %v1192 = vld [vmem:[#allocation9 + $0x8] sm:$0xff]
    %v1193 = vld [vmem:[#allocation9 + $0x10] sm:$0xff]
    %v1194 = vld [vmem:[#allocation9 + $0x18] sm:$0xff]
    %v1195 = vsel %vm537, %v1179, 0
    %1197 = vmatprep.subr.mxu0 0.0
    %1198 = vmatpush1.msra.mxu0 0.0
    %1199 = vmatprep.subr.mxu0 0.0
    %1200 = vmatpush1.msra.mxu0 0.0
    %1201 = vmatprep.subr.mxu0 0.0
    %1202 = vmatpush1.msra.mxu0 0.0
    %1203 = vmatprep.subr.mxu0 0.0
    %1204 = vmatpush1.msra.mxu0 0.0
    %1205 = vmatprep.subr.mxu0 0.0
    %1206 = vmatpush1.msra.mxu0 0.0
    %1207 = vmatprep.subr.mxu0 0.0
    %1208 = vmatpush1.msra.mxu0 0.0
    %1209 = vmatprep.subr.mxu0 0.0
    %1210 = vmatpush1.msra.mxu0 0.0
    %1211 = vmatprep.subr.mxu0 0.0
    %1212 = vmatpush1.msra.mxu0 0.0
    %1213 = vmatprep.subr.mxu0 0.0
    %1214 = vmatpush1.msra.mxu0 0.0
    %1215 = vmatprep.subr.mxu0 0.0
    %1216 = vmatpush1.msra.mxu0 0.0
    %1217 = vmatprep.subr.mxu0 0.0
    %1218 = vmatpush1.msra.mxu0 0.0
    %1219 = vmatprep.subr.mxu0 0.0
    %1220 = vmatpush1.msra.mxu0 0.0
    %1221 = vmatprep.subr.mxu0 0.0
    %1222 = vmatpush1.msra.mxu0 %v1194
    %1223 = vmatprep.subr.mxu0 0.0
    %1224 = vmatpush1.msra.mxu0 %v1193
    %1225 = vmatprep.subr.mxu0 0.0
    %1226 = vmatpush1.msra.mxu0 %v1192
    %1227 = vmatprep.subr.mxu0 0.0
    %1228 = vmatpush1.msra.mxu0 %v1191
    %1229 = vmatprep.subr.mxu0 0.0
    %1230 = vmatpush2.msra.mxu0 0.0
    %1231 = vmatprep.subr.mxu0 0.0
    %1232 = vmatpush2.msra.mxu0 0.0
    %1233 = vmatprep.subr.mxu0 0.0
    %1234 = vmatpush2.msra.mxu0 0.0
    %1235 = vmatprep.subr.mxu0 0.0
    %1236 = vmatpush2.msra.mxu0 0.0
    %1237 = vmatprep.subr.mxu0 0.0
    %1238 = vmatpush2.msra.mxu0 0.0
    %1239 = vmatprep.subr.mxu0 0.0
    %1240 = vmatpush2.msra.mxu0 0.0
    %1241 = vmatprep.subr.mxu0 0.0
    %1242 = vmatpush2.msra.mxu0 0.0
    %1243 = vmatprep.subr.mxu0 0.0
    %1244 = vmatpush2.msra.mxu0 0.0
    %1245 = vmatprep.subr.mxu0 0.0
    %1246 = vmatpush2.msra.mxu0 0.0
    %1247 = vmatprep.subr.mxu0 0.0
    %1248 = vmatpush2.msra.mxu0 0.0
    %1249 = vmatprep.subr.mxu0 0.0
    %1250 = vmatpush2.msra.mxu0 0.0
    %1251 = vmatprep.subr.mxu0 0.0
    %1252 = vmatpush2.msra.mxu0 0.0
    %1253 = vmatprep.subr.mxu0 0.0
    %1254 = vmatpush2.msra.mxu0 0.0
    %1255 = vmatprep.subr.mxu0 0.0
    %1256 = vmatpush2.msra.mxu0 0.0
    %1257 = vmatprep.subr.mxu0 0.0
    %1258 = vmatpush2.msra.mxu0 0.0
    %1259 = vmatprep.subr.mxu0 0.0
    %1260 = vmatpush2.msra.mxu0 0.0
    %1261 = vmatprep.mubr.f32.mxu0 0.0
    %1262 = vmatmul.mubr.f32.gmra.mxu0 %v1195
    %v1263 = vpop.f32.mrf.mxu0
    %v1264 = vadd.f32 0.0, %v1263
    %v1265 = vpop.f32.mrf.mxu0
    %1266 = vdwg.mxu0
    %v1267 = vadd.f32 %v1190, %v1264
    %s1268 = scalar_lea.vmem [#allocation3], 32
    %v1269 = vld [vmem:[%s1268] sm:$0xff]
    %v1270 = vld [vmem:[%s4] sm:$0xff]
    %v1271 = vld [vmem:[%s4 + $0x8] sm:$0xff]
    %v1272 = vld [vmem:[%s4 + $0x10] sm:$0xff]
    %v1273 = vld [vmem:[%s4 + $0x18] sm:$0xff]
    %1274 = vrot.lane.b32.xlu0 %v1176, 32
    %v1275 = vpop.permute.xlu0 %1274
    %v1276 = vsel %vm537, %v1275, 0
    %1278 = vmatprep.subr.mxu0 0.0
    %1279 = vmatpush1.msra.mxu0 0.0
    %1280 = vmatprep.subr.mxu0 0.0
    %1281 = vmatpush1.msra.mxu0 0.0
    %1282 = vmatprep.subr.mxu0 0.0
    %1283 = vmatpush1.msra.mxu0 0.0
    %1284 = vmatprep.subr.mxu0 0.0
    %1285 = vmatpush1.msra.mxu0 0.0
    %1286 = vmatprep.subr.mxu0 0.0
    %1287 = vmatpush1.msra.mxu0 0.0
    %1288 = vmatprep.subr.mxu0 0.0
    %1289 = vmatpush1.msra.mxu0 0.0
    %1290 = vmatprep.subr.mxu0 0.0
    %1291 = vmatpush1.msra.mxu0 0.0
    %1292 = vmatprep.subr.mxu0 0.0
    %1293 = vmatpush1.msra.mxu0 0.0
    %1294 = vmatprep.subr.mxu0 0.0
    %1295 = vmatpush1.msra.mxu0 0.0
    %1296 = vmatprep.subr.mxu0 0.0
    %1297 = vmatpush1.msra.mxu0 0.0
    %1298 = vmatprep.subr.mxu0 0.0
    %1299 = vmatpush1.msra.mxu0 0.0
    %1300 = vmatprep.subr.mxu0 0.0
    %1301 = vmatpush1.msra.mxu0 0.0
    %1302 = vmatprep.subr.mxu0 0.0
    %1303 = vmatpush1.msra.mxu0 %v1273
    %1304 = vmatprep.subr.mxu0 0.0
    %1305 = vmatpush1.msra.mxu0 %v1272
    %1306 = vmatprep.subr.mxu0 0.0
    %1307 = vmatpush1.msra.mxu0 %v1271
    %1308 = vmatprep.subr.mxu0 0.0
    %1309 = vmatpush1.msra.mxu0 %v1270
    %1310 = vmatprep.subr.mxu0 0.0
    %1311 = vmatpush2.msra.mxu0 0.0
    %1312 = vmatprep.subr.mxu0 0.0
    %1313 = vmatpush2.msra.mxu0 0.0
    %1314 = vmatprep.subr.mxu0 0.0
    %1315 = vmatpush2.msra.mxu0 0.0
    %1316 = vmatprep.subr.mxu0 0.0
    %1317 = vmatpush2.msra.mxu0 0.0
    %1318 = vmatprep.subr.mxu0 0.0
    %1319 = vmatpush2.msra.mxu0 0.0
    %1320 = vmatprep.subr.mxu0 0.0
    %1321 = vmatpush2.msra.mxu0 0.0
    %1322 = vmatprep.subr.mxu0 0.0
    %1323 = vmatpush2.msra.mxu0 0.0
    %1324 = vmatprep.subr.mxu0 0.0
    %1325 = vmatpush2.msra.mxu0 0.0
    %1326 = vmatprep.subr.mxu0 0.0
    %1327 = vmatpush2.msra.mxu0 0.0
    %1328 = vmatprep.subr.mxu0 0.0
    %1329 = vmatpush2.msra.mxu0 0.0
    %1330 = vmatprep.subr.mxu0 0.0
    %1331 = vmatpush2.msra.mxu0 0.0
    %1332 = vmatprep.subr.mxu0 0.0
    %1333 = vmatpush2.msra.mxu0 0.0
    %1334 = vmatprep.subr.mxu0 0.0
    %1335 = vmatpush2.msra.mxu0 0.0
    %1336 = vmatprep.subr.mxu0 0.0
    %1337 = vmatpush2.msra.mxu0 0.0
    %1338 = vmatprep.subr.mxu0 0.0
    %1339 = vmatpush2.msra.mxu0 0.0
    %1340 = vmatprep.subr.mxu0 0.0
    %1341 = vmatpush2.msra.mxu0 0.0
    %1342 = vmatprep.mubr.f32.mxu0 0.0
    %1343 = vmatmul.mubr.f32.gmra.mxu0 %v1276
    %v1344 = vpop.f32.mrf.mxu0
    %v1345 = vadd.f32 0.0, %v1344
    %v1346 = vpop.f32.mrf.mxu0
    %1347 = vdwg.mxu0
    %v1348 = vadd.f32 %v1269, %v1345
    %v1349 = vxor.u32 %v1267, 2147483648
    %v1350 = vmul.f32 %v1349, 1.442695
    %v1351 = vpow.pop %v1350
    %v1352 = vadd.f32 %v1351, 1.0
    %v1353 = vrcp.pop %v1352
    %v1354 = vmul.f32 1.0, %v1353
    %v1355 = vtanh.pop %v1267
    %v1356 = vmul.f32 %v1354, %v1146
    %1358 = vrot.lane.b32.xlu0 %v1355, 64
    %v1359 = vpop.permute.xlu0 %1358
    %v1361 = vmul.f32 %v1354, %v1359
    %1363 = vrot.lane.b32.xlu0 %v1361, 32
    %v1364 = vpop.permute.xlu0 %1363
    %v1366 = vadd.f32 %v1356, %v1364
    %v1367 = vtanh.pop %v1366
    %1369 = vrot.lane.b32.xlu0 %v1367, 64
    %v1370 = vpop.permute.xlu0 %1369
    %v1372 = vmul.f32 %v1354, %v1370
    %v1373 = vxor.u32 %v1348, 2147483648
    %v1374 = vmul.f32 %v1373, 1.442695
    %v1375 = vpow.pop %v1374
    %v1376 = vadd.f32 %v1375, 1.0
    %v1377 = vrcp.pop %v1376
    %v1378 = vmul.f32 1.0, %v1377
    %v1379 = vtanh.pop %v1348
    %v1380 = vmul.f32 %v1378, %v1170
    %1382 = vrot.lane.b32.xlu0 %v1379, 64
    %v1383 = vpop.permute.xlu0 %1382
    %v1385 = vmul.f32 %v1378, %v1383
    %1387 = vrot.lane.b32.xlu0 %v1385, 32
    %v1388 = vpop.permute.xlu0 %1387
    %v1390 = vadd.f32 %v1380, %v1388
    %v1391 = vtanh.pop %v1390
    %1393 = vrot.lane.b32.xlu0 %v1391, 64
    %v1394 = vpop.permute.xlu0 %1393
    %v1396 = vmul.f32 %v1378, %v1394
    %1398 = vrot.lane.b32.xlu0 %v1372, 32
    %v1399 = vpop.permute.xlu0 %1398
    %s1401 = scalar_lea.vmem [#allocation4], 24
    %1402 = vst.msk [vmem:[%s1401] sm:$0xff] %vm537, %v1399
    %1404 = vrot.lane.b32.xlu0 %v1396, 64
    %v1405 = vpop.permute.xlu0 %1404
    %s1407 = scalar_lea.vmem [#allocation4], 32
    %1408 = vst.msk [vmem:[%s1407] sm:$0xff] %vm747, %v1405
    %s1409 = scalar_lea.vmem [#allocation2], 32
    %v1410 = vld [vmem:[%s1409] sm:$0xff]
    %v1411 = vld [vmem:[#allocation9] sm:$0xff]
    %v1412 = vld [vmem:[#allocation9 + $0x8] sm:$0xff]
    %v1413 = vld [vmem:[#allocation9 + $0x10] sm:$0xff]
    %v1414 = vld [vmem:[#allocation9 + $0x18] sm:$0xff]
    %v1415 = vsel %vm537, %v1399, 0
    %1417 = vmatprep.subr.mxu0 0.0
    %1418 = vmatpush1.msra.mxu0 0.0
    %1419 = vmatprep.subr.mxu0 0.0
    %1420 = vmatpush1.msra.mxu0 0.0
    %1421 = vmatprep.subr.mxu0 0.0
    %1422 = vmatpush1.msra.mxu0 0.0
    %1423 = vmatprep.subr.mxu0 0.0
    %1424 = vmatpush1.msra.mxu0 0.0
    %1425 = vmatprep.subr.mxu0 0.0
    %1426 = vmatpush1.msra.mxu0 0.0
    %1427 = vmatprep.subr.mxu0 0.0
    %1428 = vmatpush1.msra.mxu0 0.0
    %1429 = vmatprep.subr.mxu0 0.0
    %1430 = vmatpush1.msra.mxu0 0.0
    %1431 = vmatprep.subr.mxu0 0.0
    %1432 = vmatpush1.msra.mxu0 0.0
    %1433 = vmatprep.subr.mxu0 0.0
    %1434 = vmatpush1.msra.mxu0 0.0
    %1435 = vmatprep.subr.mxu0 0.0
    %1436 = vmatpush1.msra.mxu0 0.0
    %1437 = vmatprep.subr.mxu0 0.0
    %1438 = vmatpush1.msra.mxu0 0.0
    %1439 = vmatprep.subr.mxu0 0.0
    %1440 = vmatpush1.msra.mxu0 0.0
    %1441 = vmatprep.subr.mxu0 0.0
    %1442 = vmatpush1.msra.mxu0 %v1414
    %1443 = vmatprep.subr.mxu0 0.0
    %1444 = vmatpush1.msra.mxu0 %v1413
    %1445 = vmatprep.subr.mxu0 0.0
    %1446 = vmatpush1.msra.mxu0 %v1412
    %1447 = vmatprep.subr.mxu0 0.0
    %1448 = vmatpush1.msra.mxu0 %v1411
    %1449 = vmatprep.subr.mxu0 0.0
    %1450 = vmatpush2.msra.mxu0 0.0
    %1451 = vmatprep.subr.mxu0 0.0
    %1452 = vmatpush2.msra.mxu0 0.0
    %1453 = vmatprep.subr.mxu0 0.0
    %1454 = vmatpush2.msra.mxu0 0.0
    %1455 = vmatprep.subr.mxu0 0.0
    %1456 = vmatpush2.msra.mxu0 0.0
    %1457 = vmatprep.subr.mxu0 0.0
    %1458 = vmatpush2.msra.mxu0 0.0
    %1459 = vmatprep.subr.mxu0 0.0
    %1460 = vmatpush2.msra.mxu0 0.0
    %1461 = vmatprep.subr.mxu0 0.0
    %1462 = vmatpush2.msra.mxu0 0.0
    %1463 = vmatprep.subr.mxu0 0.0
    %1464 = vmatpush2.msra.mxu0 0.0
    %1465 = vmatprep.subr.mxu0 0.0
    %1466 = vmatpush2.msra.mxu0 0.0
    %1467 = vmatprep.subr.mxu0 0.0
    %1468 = vmatpush2.msra.mxu0 0.0
    %1469 = vmatprep.subr.mxu0 0.0
    %1470 = vmatpush2.msra.mxu0 0.0
    %1471 = vmatprep.subr.mxu0 0.0
    %1472 = vmatpush2.msra.mxu0 0.0
    %1473 = vmatprep.subr.mxu0 0.0
    %1474 = vmatpush2.msra.mxu0 0.0
    %1475 = vmatprep.subr.mxu0 0.0
    %1476 = vmatpush2.msra.mxu0 0.0
    %1477 = vmatprep.subr.mxu0 0.0
    %1478 = vmatpush2.msra.mxu0 0.0
    %1479 = vmatprep.subr.mxu0 0.0
    %1480 = vmatpush2.msra.mxu0 0.0
    %1481 = vmatprep.mubr.f32.mxu0 0.0
    %1482 = vmatmul.mubr.f32.gmra.mxu0 %v1415
    %v1483 = vpop.f32.mrf.mxu0
    %v1484 = vadd.f32 0.0, %v1483
    %v1485 = vpop.f32.mrf.mxu0
    %1486 = vdwg.mxu0
    %v1487 = vadd.f32 %v1410, %v1484
    %s1488 = scalar_lea.vmem [#allocation3], 24
    %v1489 = vld [vmem:[%s1488] sm:$0xff]
    %v1490 = vld [vmem:[%s4] sm:$0xff]
    %v1491 = vld [vmem:[%s4 + $0x8] sm:$0xff]
    %v1492 = vld [vmem:[%s4 + $0x10] sm:$0xff]
    %v1493 = vld [vmem:[%s4 + $0x18] sm:$0xff]
    %1494 = vrot.lane.b32.xlu0 %v1396, 32
    %v1495 = vpop.permute.xlu0 %1494
    %v1496 = vsel %vm537, %v1495, 0
    %1498 = vmatprep.subr.mxu0 0.0
    %1499 = vmatpush1.msra.mxu0 0.0
    %1500 = vmatprep.subr.mxu0 0.0
    %1501 = vmatpush1.msra.mxu0 0.0
    %1502 = vmatprep.subr.mxu0 0.0
    %1503 = vmatpush1.msra.mxu0 0.0
    %1504 = vmatprep.subr.mxu0 0.0
    %1505 = vmatpush1.msra.mxu0 0.0
    %1506 = vmatprep.subr.mxu0 0.0
    %1507 = vmatpush1.msra.mxu0 0.0
    %1508 = vmatprep.subr.mxu0 0.0
    %1509 = vmatpush1.msra.mxu0 0.0
    %1510 = vmatprep.subr.mxu0 0.0
    %1511 = vmatpush1.msra.mxu0 0.0
    %1512 = vmatprep.subr.mxu0 0.0
    %1513 = vmatpush1.msra.mxu0 0.0
    %1514 = vmatprep.subr.mxu0 0.0
    %1515 = vmatpush1.msra.mxu0 0.0
    %1516 = vmatprep.subr.mxu0 0.0
    %1517 = vmatpush1.msra.mxu0 0.0
    %1518 = vmatprep.subr.mxu0 0.0
    %1519 = vmatpush1.msra.mxu0 0.0
    %1520 = vmatprep.subr.mxu0 0.0
    %1521 = vmatpush1.msra.mxu0 0.0
    %1522 = vmatprep.subr.mxu0 0.0
    %1523 = vmatpush1.msra.mxu0 %v1493
    %1524 = vmatprep.subr.mxu0 0.0
    %1525 = vmatpush1.msra.mxu0 %v1492
    %1526 = vmatprep.subr.mxu0 0.0
    %1527 = vmatpush1.msra.mxu0 %v1491
    %1528 = vmatprep.subr.mxu0 0.0
    %1529 = vmatpush1.msra.mxu0 %v1490
    %1530 = vmatprep.subr.mxu0 0.0
    %1531 = vmatpush2.msra.mxu0 0.0
    %1532 = vmatprep.subr.mxu0 0.0
    %1533 = vmatpush2.msra.mxu0 0.0
    %1534 = vmatprep.subr.mxu0 0.0
    %1535 = vmatpush2.msra.mxu0 0.0
    %1536 = vmatprep.subr.mxu0 0.0
    %1537 = vmatpush2.msra.mxu0 0.0
    %1538 = vmatprep.subr.mxu0 0.0
    %1539 = vmatpush2.msra.mxu0 0.0
    %1540 = vmatprep.subr.mxu0 0.0
    %1541 = vmatpush2.msra.mxu0 0.0
    %1542 = vmatprep.subr.mxu0 0.0
    %1543 = vmatpush2.msra.mxu0 0.0
    %1544 = vmatprep.subr.mxu0 0.0
    %1545 = vmatpush2.msra.mxu0 0.0
    %1546 = vmatprep.subr.mxu0 0.0
    %1547 = vmatpush2.msra.mxu0 0.0
    %1548 = vmatprep.subr.mxu0 0.0
    %1549 = vmatpush2.msra.mxu0 0.0
    %1550 = vmatprep.subr.mxu0 0.0
    %1551 = vmatpush2.msra.mxu0 0.0
    %1552 = vmatprep.subr.mxu0 0.0
    %1553 = vmatpush2.msra.mxu0 0.0
    %1554 = vmatprep.subr.mxu0 0.0
    %1555 = vmatpush2.msra.mxu0 0.0
    %1556 = vmatprep.subr.mxu0 0.0
    %1557 = vmatpush2.msra.mxu0 0.0
    %1558 = vmatprep.subr.mxu0 0.0
    %1559 = vmatpush2.msra.mxu0 0.0
    %1560 = vmatprep.subr.mxu0 0.0
    %1561 = vmatpush2.msra.mxu0 0.0
    %1562 = vmatprep.mubr.f32.mxu0 0.0
    %1563 = vmatmul.mubr.f32.gmra.mxu0 %v1496
    %v1564 = vpop.f32.mrf.mxu0
    %v1565 = vadd.f32 0.0, %v1564
    %v1566 = vpop.f32.mrf.mxu0
    %1567 = vdwg.mxu0
    %v1568 = vadd.f32 %v1489, %v1565
    %v1569 = vxor.u32 %v1487, 2147483648
    %v1570 = vmul.f32 %v1569, 1.442695
    %v1571 = vpow.pop %v1570
    %v1572 = vadd.f32 %v1571, 1.0
    %v1573 = vrcp.pop %v1572
    %v1574 = vmul.f32 1.0, %v1573
    %v1575 = vtanh.pop %v1487
    %v1576 = vmul.f32 %v1574, %v1366
    %1578 = vrot.lane.b32.xlu0 %v1575, 64
    %v1579 = vpop.permute.xlu0 %1578
    %v1581 = vmul.f32 %v1574, %v1579
    %1583 = vrot.lane.b32.xlu0 %v1581, 32
    %v1584 = vpop.permute.xlu0 %1583
    %v1586 = vadd.f32 %v1576, %v1584
    %v1587 = vtanh.pop %v1586
    %1589 = vrot.lane.b32.xlu0 %v1587, 64
    %v1590 = vpop.permute.xlu0 %1589
    %v1592 = vmul.f32 %v1574, %v1590
    %v1593 = vxor.u32 %v1568, 2147483648
    %v1594 = vmul.f32 %v1593, 1.442695
    %v1595 = vpow.pop %v1594
    %v1596 = vadd.f32 %v1595, 1.0
    %v1597 = vrcp.pop %v1596
    %v1598 = vmul.f32 1.0, %v1597
    %v1599 = vtanh.pop %v1568
    %v1600 = vmul.f32 %v1598, %v1390
    %1602 = vrot.lane.b32.xlu0 %v1599, 64
    %v1603 = vpop.permute.xlu0 %1602
    %v1605 = vmul.f32 %v1598, %v1603
    %1607 = vrot.lane.b32.xlu0 %v1605, 32
    %v1608 = vpop.permute.xlu0 %1607
    %v1610 = vadd.f32 %v1600, %v1608
    %v1611 = vtanh.pop %v1610
    %1613 = vrot.lane.b32.xlu0 %v1611, 64
    %v1614 = vpop.permute.xlu0 %1613
    %v1616 = vmul.f32 %v1598, %v1614
    %1618 = vrot.lane.b32.xlu0 %v1592, 32
    %v1619 = vpop.permute.xlu0 %1618
    %1621 = vst.msk [vmem:[%s1407] sm:$0xff] %vm537, %v1619
    %1623 = vrot.lane.b32.xlu0 %v1616, 64
    %v1624 = vpop.permute.xlu0 %1623
    %1626 = vst.msk [vmem:[%s1401] sm:$0xff] %vm747, %v1624
    %s1627 = scalar_lea.vmem [#allocation2], 40
    %v1628 = vld [vmem:[%s1627] sm:$0xff]
    %v1629 = vld [vmem:[#allocation9] sm:$0xff]
    %v1630 = vld [vmem:[#allocation9 + $0x8] sm:$0xff]
    %v1631 = vld [vmem:[#allocation9 + $0x10] sm:$0xff]
    %v1632 = vld [vmem:[#allocation9 + $0x18] sm:$0xff]
    %v1633 = vsel %vm537, %v1619, 0
    %1635 = vmatprep.subr.mxu0 0.0
    %1636 = vmatpush1.msra.mxu0 0.0
    %1637 = vmatprep.subr.mxu0 0.0
    %1638 = vmatpush1.msra.mxu0 0.0
    %1639 = vmatprep.subr.mxu0 0.0
    %1640 = vmatpush1.msra.mxu0 0.0
    %1641 = vmatprep.subr.mxu0 0.0
    %1642 = vmatpush1.msra.mxu0 0.0
    %1643 = vmatprep.subr.mxu0 0.0
    %1644 = vmatpush1.msra.mxu0 0.0
    %1645 = vmatprep.subr.mxu0 0.0
    %1646 = vmatpush1.msra.mxu0 0.0
    %1647 = vmatprep.subr.mxu0 0.0
    %1648 = vmatpush1.msra.mxu0 0.0
    %1649 = vmatprep.subr.mxu0 0.0
    %1650 = vmatpush1.msra.mxu0 0.0
    %1651 = vmatprep.subr.mxu0 0.0
    %1652 = vmatpush1.msra.mxu0 0.0
    %1653 = vmatprep.subr.mxu0 0.0
    %1654 = vmatpush1.msra.mxu0 0.0
    %1655 = vmatprep.subr.mxu0 0.0
    %1656 = vmatpush1.msra.mxu0 0.0
    %1657 = vmatprep.subr.mxu0 0.0
    %1658 = vmatpush1.msra.mxu0 0.0
    %1659 = vmatprep.subr.mxu0 0.0
    %1660 = vmatpush1.msra.mxu0 %v1632
    %1661 = vmatprep.subr.mxu0 0.0
    %1662 = vmatpush1.msra.mxu0 %v1631
    %1663 = vmatprep.subr.mxu0 0.0
    %1664 = vmatpush1.msra.mxu0 %v1630
    %1665 = vmatprep.subr.mxu0 0.0
    %1666 = vmatpush1.msra.mxu0 %v1629
    %1667 = vmatprep.subr.mxu0 0.0
    %1668 = vmatpush2.msra.mxu0 0.0
    %1669 = vmatprep.subr.mxu0 0.0
    %1670 = vmatpush2.msra.mxu0 0.0
    %1671 = vmatprep.subr.mxu0 0.0
    %1672 = vmatpush2.msra.mxu0 0.0
    %1673 = vmatprep.subr.mxu0 0.0
    %1674 = vmatpush2.msra.mxu0 0.0
    %1675 = vmatprep.subr.mxu0 0.0
    %1676 = vmatpush2.msra.mxu0 0.0
    %1677 = vmatprep.subr.mxu0 0.0
    %1678 = vmatpush2.msra.mxu0 0.0
    %1679 = vmatprep.subr.mxu0 0.0
    %1680 = vmatpush2.msra.mxu0 0.0
    %1681 = vmatprep.subr.mxu0 0.0
    %1682 = vmatpush2.msra.mxu0 0.0
    %1683 = vmatprep.subr.mxu0 0.0
    %1684 = vmatpush2.msra.mxu0 0.0
    %1685 = vmatprep.subr.mxu0 0.0
    %1686 = vmatpush2.msra.mxu0 0.0
    %1687 = vmatprep.subr.mxu0 0.0
    %1688 = vmatpush2.msra.mxu0 0.0
    %1689 = vmatprep.subr.mxu0 0.0
    %1690 = vmatpush2.msra.mxu0 0.0
    %1691 = vmatprep.subr.mxu0 0.0
    %1692 = vmatpush2.msra.mxu0 0.0
    %1693 = vmatprep.subr.mxu0 0.0
    %1694 = vmatpush2.msra.mxu0 0.0
    %1695 = vmatprep.subr.mxu0 0.0
    %1696 = vmatpush2.msra.mxu0 0.0
    %1697 = vmatprep.subr.mxu0 0.0
    %1698 = vmatpush2.msra.mxu0 0.0
    %1699 = vmatprep.mubr.f32.mxu0 0.0
    %1700 = vmatmul.mubr.f32.gmra.mxu0 %v1633
    %v1701 = vpop.f32.mrf.mxu0
    %v1702 = vadd.f32 0.0, %v1701
    %v1703 = vpop.f32.mrf.mxu0
    %1704 = vdwg.mxu0
    %v1705 = vadd.f32 %v1628, %v1702
    %s1706 = scalar_lea.vmem [#allocation3], 16
    %v1707 = vld [vmem:[%s1706] sm:$0xff]
    %v1708 = vld [vmem:[%s4] sm:$0xff]
    %v1709 = vld [vmem:[%s4 + $0x8] sm:$0xff]
    %v1710 = vld [vmem:[%s4 + $0x10] sm:$0xff]
    %v1711 = vld [vmem:[%s4 + $0x18] sm:$0xff]
    %1712 = vrot.lane.b32.xlu0 %v1616, 32
    %v1713 = vpop.permute.xlu0 %1712
    %v1714 = vsel %vm537, %v1713, 0
    %1716 = vmatprep.subr.mxu0 0.0
    %1717 = vmatpush1.msra.mxu0 0.0
    %1718 = vmatprep.subr.mxu0 0.0
    %1719 = vmatpush1.msra.mxu0 0.0
    %1720 = vmatprep.subr.mxu0 0.0
    %1721 = vmatpush1.msra.mxu0 0.0
    %1722 = vmatprep.subr.mxu0 0.0
    %1723 = vmatpush1.msra.mxu0 0.0
    %1724 = vmatprep.subr.mxu0 0.0
    %1725 = vmatpush1.msra.mxu0 0.0
    %1726 = vmatprep.subr.mxu0 0.0
    %1727 = vmatpush1.msra.mxu0 0.0
    %1728 = vmatprep.subr.mxu0 0.0
    %1729 = vmatpush1.msra.mxu0 0.0
    %1730 = vmatprep.subr.mxu0 0.0
    %1731 = vmatpush1.msra.mxu0 0.0
    %1732 = vmatprep.subr.mxu0 0.0
    %1733 = vmatpush1.msra.mxu0 0.0
    %1734 = vmatprep.subr.mxu0 0.0
    %1735 = vmatpush1.msra.mxu0 0.0
    %1736 = vmatprep.subr.mxu0 0.0
    %1737 = vmatpush1.msra.mxu0 0.0
    %1738 = vmatprep.subr.mxu0 0.0
    %1739 = vmatpush1.msra.mxu0 0.0
    %1740 = vmatprep.subr.mxu0 0.0
    %1741 = vmatpush1.msra.mxu0 %v1711
    %1742 = vmatprep.subr.mxu0 0.0
    %1743 = vmatpush1.msra.mxu0 %v1710
    %1744 = vmatprep.subr.mxu0 0.0
    %1745 = vmatpush1.msra.mxu0 %v1709
    %1746 = vmatprep.subr.mxu0 0.0
    %1747 = vmatpush1.msra.mxu0 %v1708
    %1748 = vmatprep.subr.mxu0 0.0
    %1749 = vmatpush2.msra.mxu0 0.0
    %1750 = vmatprep.subr.mxu0 0.0
    %1751 = vmatpush2.msra.mxu0 0.0
    %1752 = vmatprep.subr.mxu0 0.0
    %1753 = vmatpush2.msra.mxu0 0.0
    %1754 = vmatprep.subr.mxu0 0.0
    %1755 = vmatpush2.msra.mxu0 0.0
    %1756 = vmatprep.subr.mxu0 0.0
    %1757 = vmatpush2.msra.mxu0 0.0
    %1758 = vmatprep.subr.mxu0 0.0
    %1759 = vmatpush2.msra.mxu0 0.0
    %1760 = vmatprep.subr.mxu0 0.0
    %1761 = vmatpush2.msra.mxu0 0.0
    %1762 = vmatprep.subr.mxu0 0.0
    %1763 = vmatpush2.msra.mxu0 0.0
    %1764 = vmatprep.subr.mxu0 0.0
    %1765 = vmatpush2.msra.mxu0 0.0
    %1766 = vmatprep.subr.mxu0 0.0
    %1767 = vmatpush2.msra.mxu0 0.0
    %1768 = vmatprep.subr.mxu0 0.0
    %1769 = vmatpush2.msra.mxu0 0.0
    %1770 = vmatprep.subr.mxu0 0.0
    %1771 = vmatpush2.msra.mxu0 0.0
    %1772 = vmatprep.subr.mxu0 0.0
    %1773 = vmatpush2.msra.mxu0 0.0
    %1774 = vmatprep.subr.mxu0 0.0
    %1775 = vmatpush2.msra.mxu0 0.0
    %1776 = vmatprep.subr.mxu0 0.0
    %1777 = vmatpush2.msra.mxu0 0.0
    %1778 = vmatprep.subr.mxu0 0.0
    %1779 = vmatpush2.msra.mxu0 0.0
    %1780 = vmatprep.mubr.f32.mxu0 0.0
    %1781 = vmatmul.mubr.f32.gmra.mxu0 %v1714
    %v1782 = vpop.f32.mrf.mxu0
    %v1783 = vadd.f32 0.0, %v1782
    %v1784 = vpop.f32.mrf.mxu0
    %1785 = vdwg.mxu0
    %v1786 = vadd.f32 %v1707, %v1783
    %v1787 = vxor.u32 %v1705, 2147483648
    %v1788 = vmul.f32 %v1787, 1.442695
    %v1789 = vpow.pop %v1788
    %v1790 = vadd.f32 %v1789, 1.0
    %v1791 = vrcp.pop %v1790
    %v1792 = vmul.f32 1.0, %v1791
    %v1793 = vtanh.pop %v1705
    %v1794 = vmul.f32 %v1792, %v1586
    %1796 = vrot.lane.b32.xlu0 %v1793, 64
    %v1797 = vpop.permute.xlu0 %1796
    %v1799 = vmul.f32 %v1792, %v1797
    %1801 = vrot.lane.b32.xlu0 %v1799, 32
    %v1802 = vpop.permute.xlu0 %1801
    %v1804 = vadd.f32 %v1794, %v1802
    %v1805 = vtanh.pop %v1804
    %1807 = vrot.lane.b32.xlu0 %v1805, 64
    %v1808 = vpop.permute.xlu0 %1807
    %v1810 = vmul.f32 %v1792, %v1808
    %v1811 = vxor.u32 %v1786, 2147483648
    %v1812 = vmul.f32 %v1811, 1.442695
    %v1813 = vpow.pop %v1812
    %v1814 = vadd.f32 %v1813, 1.0
    %v1815 = vrcp.pop %v1814
    %v1816 = vmul.f32 1.0, %v1815
    %v1817 = vtanh.pop %v1786
    %v1818 = vmul.f32 %v1816, %v1610
    %1820 = vrot.lane.b32.xlu0 %v1817, 64
    %v1821 = vpop.permute.xlu0 %1820
    %v1823 = vmul.f32 %v1816, %v1821
    %1825 = vrot.lane.b32.xlu0 %v1823, 32
    %v1826 = vpop.permute.xlu0 %1825
    %v1828 = vadd.f32 %v1818, %v1826
    %v1829 = vtanh.pop %v1828
    %1831 = vrot.lane.b32.xlu0 %v1829, 64
    %v1832 = vpop.permute.xlu0 %1831
    %v1834 = vmul.f32 %v1816, %v1832
    %1836 = vrot.lane.b32.xlu0 %v1810, 32
    %v1837 = vpop.permute.xlu0 %1836
    %1839 = vst.msk [vmem:[%s1187] sm:$0xff] %vm537, %v1837
    %1841 = vrot.lane.b32.xlu0 %v1834, 64
    %v1842 = vpop.permute.xlu0 %1841
    %1844 = vst.msk [vmem:[%s1181] sm:$0xff] %vm747, %v1842
    %s1845 = scalar_lea.vmem [#allocation2], 48
    %v1846 = vld [vmem:[%s1845] sm:$0xff]
    %v1847 = vld [vmem:[#allocation9] sm:$0xff]
    %v1848 = vld [vmem:[#allocation9 + $0x8] sm:$0xff]
    %v1849 = vld [vmem:[#allocation9 + $0x10] sm:$0xff]
    %v1850 = vld [vmem:[#allocation9 + $0x18] sm:$0xff]
    %v1851 = vsel %vm537, %v1837, 0
    %1853 = vmatprep.subr.mxu0 0.0
    %1854 = vmatpush1.msra.mxu0 0.0
    %1855 = vmatprep.subr.mxu0 0.0
    %1856 = vmatpush1.msra.mxu0 0.0
    %1857 = vmatprep.subr.mxu0 0.0
    %1858 = vmatpush1.msra.mxu0 0.0
    %1859 = vmatprep.subr.mxu0 0.0
    %1860 = vmatpush1.msra.mxu0 0.0
    %1861 = vmatprep.subr.mxu0 0.0
    %1862 = vmatpush1.msra.mxu0 0.0
    %1863 = vmatprep.subr.mxu0 0.0
    %1864 = vmatpush1.msra.mxu0 0.0
    %1865 = vmatprep.subr.mxu0 0.0
    %1866 = vmatpush1.msra.mxu0 0.0
    %1867 = vmatprep.subr.mxu0 0.0
    %1868 = vmatpush1.msra.mxu0 0.0
    %1869 = vmatprep.subr.mxu0 0.0
    %1870 = vmatpush1.msra.mxu0 0.0
    %1871 = vmatprep.subr.mxu0 0.0
    %1872 = vmatpush1.msra.mxu0 0.0
    %1873 = vmatprep.subr.mxu0 0.0
    %1874 = vmatpush1.msra.mxu0 0.0
    %1875 = vmatprep.subr.mxu0 0.0
    %1876 = vmatpush1.msra.mxu0 0.0
    %1877 = vmatprep.subr.mxu0 0.0
    %1878 = vmatpush1.msra.mxu0 %v1850
    %1879 = vmatprep.subr.mxu0 0.0
    %1880 = vmatpush1.msra.mxu0 %v1849
    %1881 = vmatprep.subr.mxu0 0.0
    %1882 = vmatpush1.msra.mxu0 %v1848
    %1883 = vmatprep.subr.mxu0 0.0
    %1884 = vmatpush1.msra.mxu0 %v1847
    %1885 = vmatprep.subr.mxu0 0.0
    %1886 = vmatpush2.msra.mxu0 0.0
    %1887 = vmatprep.subr.mxu0 0.0
    %1888 = vmatpush2.msra.mxu0 0.0
    %1889 = vmatprep.subr.mxu0 0.0
    %1890 = vmatpush2.msra.mxu0 0.0
    %1891 = vmatprep.subr.mxu0 0.0
    %1892 = vmatpush2.msra.mxu0 0.0
    %1893 = vmatprep.subr.mxu0 0.0
    %1894 = vmatpush2.msra.mxu0 0.0
    %1895 = vmatprep.subr.mxu0 0.0
    %1896 = vmatpush2.msra.mxu0 0.0
    %1897 = vmatprep.subr.mxu0 0.0
    %1898 = vmatpush2.msra.mxu0 0.0
    %1899 = vmatprep.subr.mxu0 0.0
    %1900 = vmatpush2.msra.mxu0 0.0
    %1901 = vmatprep.subr.mxu0 0.0
    %1902 = vmatpush2.msra.mxu0 0.0
    %1903 = vmatprep.subr.mxu0 0.0
    %1904 = vmatpush2.msra.mxu0 0.0
    %1905 = vmatprep.subr.mxu0 0.0
    %1906 = vmatpush2.msra.mxu0 0.0
    %1907 = vmatprep.subr.mxu0 0.0
    %1908 = vmatpush2.msra.mxu0 0.0
    %1909 = vmatprep.subr.mxu0 0.0
    %1910 = vmatpush2.msra.mxu0 0.0
    %1911 = vmatprep.subr.mxu0 0.0
    %1912 = vmatpush2.msra.mxu0 0.0
    %1913 = vmatprep.subr.mxu0 0.0
    %1914 = vmatpush2.msra.mxu0 0.0
    %1915 = vmatprep.subr.mxu0 0.0
    %1916 = vmatpush2.msra.mxu0 0.0
    %1917 = vmatprep.mubr.f32.mxu0 0.0
    %1918 = vmatmul.mubr.f32.gmra.mxu0 %v1851
    %v1919 = vpop.f32.mrf.mxu0
    %v1920 = vadd.f32 0.0, %v1919
    %v1921 = vpop.f32.mrf.mxu0
    %1922 = vdwg.mxu0
    %v1923 = vadd.f32 %v1846, %v1920
    %s1924 = scalar_lea.vmem [#allocation3], 8
    %v1925 = vld [vmem:[%s1924] sm:$0xff]
    %v1926 = vld [vmem:[%s4] sm:$0xff]
    %v1927 = vld [vmem:[%s4 + $0x8] sm:$0xff]
    %v1928 = vld [vmem:[%s4 + $0x10] sm:$0xff]
    %v1929 = vld [vmem:[%s4 + $0x18] sm:$0xff]
    %1930 = vrot.lane.b32.xlu0 %v1834, 32
    %v1931 = vpop.permute.xlu0 %1930
    %v1932 = vsel %vm537, %v1931, 0
    %1934 = vmatprep.subr.mxu0 0.0
    %1935 = vmatpush1.msra.mxu0 0.0
    %1936 = vmatprep.subr.mxu0 0.0
    %1937 = vmatpush1.msra.mxu0 0.0
    %1938 = vmatprep.subr.mxu0 0.0
    %1939 = vmatpush1.msra.mxu0 0.0
    %1940 = vmatprep.subr.mxu0 0.0
    %1941 = vmatpush1.msra.mxu0 0.0
    %1942 = vmatprep.subr.mxu0 0.0
    %1943 = vmatpush1.msra.mxu0 0.0
    %1944 = vmatprep.subr.mxu0 0.0
    %1945 = vmatpush1.msra.mxu0 0.0
    %1946 = vmatprep.subr.mxu0 0.0
    %1947 = vmatpush1.msra.mxu0 0.0
    %1948 = vmatprep.subr.mxu0 0.0
    %1949 = vmatpush1.msra.mxu0 0.0
    %1950 = vmatprep.subr.mxu0 0.0
    %1951 = vmatpush1.msra.mxu0 0.0
    %1952 = vmatprep.subr.mxu0 0.0
    %1953 = vmatpush1.msra.mxu0 0.0
    %1954 = vmatprep.subr.mxu0 0.0
    %1955 = vmatpush1.msra.mxu0 0.0
    %1956 = vmatprep.subr.mxu0 0.0
    %1957 = vmatpush1.msra.mxu0 0.0
    %1958 = vmatprep.subr.mxu0 0.0
    %1959 = vmatpush1.msra.mxu0 %v1929
    %1960 = vmatprep.subr.mxu0 0.0
    %1961 = vmatpush1.msra.mxu0 %v1928
    %1962 = vmatprep.subr.mxu0 0.0
    %1963 = vmatpush1.msra.mxu0 %v1927
    %1964 = vmatprep.subr.mxu0 0.0
    %1965 = vmatpush1.msra.mxu0 %v1926
    %1966 = vmatprep.subr.mxu0 0.0
    %1967 = vmatpush2.msra.mxu0 0.0
    %1968 = vmatprep.subr.mxu0 0.0
    %1969 = vmatpush2.msra.mxu0 0.0
    %1970 = vmatprep.subr.mxu0 0.0
    %1971 = vmatpush2.msra.mxu0 0.0
    %1972 = vmatprep.subr.mxu0 0.0
    %1973 = vmatpush2.msra.mxu0 0.0
    %1974 = vmatprep.subr.mxu0 0.0
    %1975 = vmatpush2.msra.mxu0 0.0
    %1976 = vmatprep.subr.mxu0 0.0
    %1977 = vmatpush2.msra.mxu0 0.0
    %1978 = vmatprep.subr.mxu0 0.0
    %1979 = vmatpush2.msra.mxu0 0.0
    %1980 = vmatprep.subr.mxu0 0.0
    %1981 = vmatpush2.msra.mxu0 0.0
    %1982 = vmatprep.subr.mxu0 0.0
    %1983 = vmatpush2.msra.mxu0 0.0
    %1984 = vmatprep.subr.mxu0 0.0
    %1985 = vmatpush2.msra.mxu0 0.0
    %1986 = vmatprep.subr.mxu0 0.0
    %1987 = vmatpush2.msra.mxu0 0.0
    %1988 = vmatprep.subr.mxu0 0.0
    %1989 = vmatpush2.msra.mxu0 0.0
    %1990 = vmatprep.subr.mxu0 0.0
    %1991 = vmatpush2.msra.mxu0 0.0
    %1992 = vmatprep.subr.mxu0 0.0
    %1993 = vmatpush2.msra.mxu0 0.0
    %1994 = vmatprep.subr.mxu0 0.0
    %1995 = vmatpush2.msra.mxu0 0.0
    %1996 = vmatprep.subr.mxu0 0.0
    %1997 = vmatpush2.msra.mxu0 0.0
    %1998 = vmatprep.mubr.f32.mxu0 0.0
    %1999 = vmatmul.mubr.f32.gmra.mxu0 %v1932
    %v2000 = vpop.f32.mrf.mxu0
    %v2001 = vadd.f32 0.0, %v2000
    %v2002 = vpop.f32.mrf.mxu0
    %2003 = vdwg.mxu0
    %v2004 = vadd.f32 %v1925, %v2001
    %v2005 = vxor.u32 %v1923, 2147483648
    %v2006 = vmul.f32 %v2005, 1.442695
    %v2007 = vpow.pop %v2006
    %v2008 = vadd.f32 %v2007, 1.0
    %v2009 = vrcp.pop %v2008
    %v2010 = vmul.f32 1.0, %v2009
    %v2011 = vtanh.pop %v1923
    %v2012 = vmul.f32 %v2010, %v1804
    %2014 = vrot.lane.b32.xlu0 %v2011, 64
    %v2015 = vpop.permute.xlu0 %2014
    %v2017 = vmul.f32 %v2010, %v2015
    %2019 = vrot.lane.b32.xlu0 %v2017, 32
    %v2020 = vpop.permute.xlu0 %2019
    %v2022 = vadd.f32 %v2012, %v2020
    %v2023 = vtanh.pop %v2022
    %2025 = vrot.lane.b32.xlu0 %v2023, 64
    %v2026 = vpop.permute.xlu0 %2025
    %v2028 = vmul.f32 %v2010, %v2026
    %v2029 = vxor.u32 %v2004, 2147483648
    %v2030 = vmul.f32 %v2029, 1.442695
    %v2031 = vpow.pop %v2030
    %v2032 = vadd.f32 %v2031, 1.0
    %v2033 = vrcp.pop %v2032
    %v2034 = vmul.f32 1.0, %v2033
    %v2035 = vtanh.pop %v2004
    %v2036 = vmul.f32 %v2034, %v1828
    %2038 = vrot.lane.b32.xlu0 %v2035, 64
    %v2039 = vpop.permute.xlu0 %2038
    %v2041 = vmul.f32 %v2034, %v2039
    %2043 = vrot.lane.b32.xlu0 %v2041, 32
    %v2044 = vpop.permute.xlu0 %2043
    %v2046 = vadd.f32 %v2036, %v2044
    %v2047 = vtanh.pop %v2046
    %2049 = vrot.lane.b32.xlu0 %v2047, 64
    %v2050 = vpop.permute.xlu0 %2049
    %v2052 = vmul.f32 %v2034, %v2050
    %2054 = vrot.lane.b32.xlu0 %v2028, 32
    %v2055 = vpop.permute.xlu0 %2054
    %2057 = vst.msk [vmem:[%s967] sm:$0xff] %vm537, %v2055
    %2059 = vrot.lane.b32.xlu0 %v2052, 64
    %v2060 = vpop.permute.xlu0 %2059
    %2062 = vst.msk [vmem:[%s961] sm:$0xff] %vm747, %v2060
    %s2063 = scalar_lea.vmem [#allocation2], 56
    %v2064 = vld [vmem:[%s2063] sm:$0xff]
    %v2065 = vld [vmem:[#allocation9] sm:$0xff]
    %v2066 = vld [vmem:[#allocation9 + $0x8] sm:$0xff]
    %v2067 = vld [vmem:[#allocation9 + $0x10] sm:$0xff]
    %v2068 = vld [vmem:[#allocation9 + $0x18] sm:$0xff]
    %v2069 = vsel %vm537, %v2055, 0
    %2071 = vmatprep.subr.mxu0 0.0
    %2072 = vmatpush1.msra.mxu0 0.0
    %2073 = vmatprep.subr.mxu0 0.0
    %2074 = vmatpush1.msra.mxu0 0.0
    %2075 = vmatprep.subr.mxu0 0.0
    %2076 = vmatpush1.msra.mxu0 0.0
    %2077 = vmatprep.subr.mxu0 0.0
    %2078 = vmatpush1.msra.mxu0 0.0
    %2079 = vmatprep.subr.mxu0 0.0
    %2080 = vmatpush1.msra.mxu0 0.0
    %2081 = vmatprep.subr.mxu0 0.0
    %2082 = vmatpush1.msra.mxu0 0.0
    %2083 = vmatprep.subr.mxu0 0.0
    %2084 = vmatpush1.msra.mxu0 0.0
    %2085 = vmatprep.subr.mxu0 0.0
    %2086 = vmatpush1.msra.mxu0 0.0
    %2087 = vmatprep.subr.mxu0 0.0
    %2088 = vmatpush1.msra.mxu0 0.0
    %2089 = vmatprep.subr.mxu0 0.0
    %2090 = vmatpush1.msra.mxu0 0.0
    %2091 = vmatprep.subr.mxu0 0.0
    %2092 = vmatpush1.msra.mxu0 0.0
    %2093 = vmatprep.subr.mxu0 0.0
    %2094 = vmatpush1.msra.mxu0 0.0
    %2095 = vmatprep.subr.mxu0 0.0
    %2096 = vmatpush1.msra.mxu0 %v2068
    %2097 = vmatprep.subr.mxu0 0.0
    %2098 = vmatpush1.msra.mxu0 %v2067
    %2099 = vmatprep.subr.mxu0 0.0
    %2100 = vmatpush1.msra.mxu0 %v2066
    %2101 = vmatprep.subr.mxu0 0.0
    %2102 = vmatpush1.msra.mxu0 %v2065
    %2103 = vmatprep.subr.mxu0 0.0
    %2104 = vmatpush2.msra.mxu0 0.0
    %2105 = vmatprep.subr.mxu0 0.0
    %2106 = vmatpush2.msra.mxu0 0.0
    %2107 = vmatprep.subr.mxu0 0.0
    %2108 = vmatpush2.msra.mxu0 0.0
    %2109 = vmatprep.subr.mxu0 0.0
    %2110 = vmatpush2.msra.mxu0 0.0
    %2111 = vmatprep.subr.mxu0 0.0
    %2112 = vmatpush2.msra.mxu0 0.0
    %2113 = vmatprep.subr.mxu0 0.0
    %2114 = vmatpush2.msra.mxu0 0.0
    %2115 = vmatprep.subr.mxu0 0.0
    %2116 = vmatpush2.msra.mxu0 0.0
    %2117 = vmatprep.subr.mxu0 0.0
    %2118 = vmatpush2.msra.mxu0 0.0
    %2119 = vmatprep.subr.mxu0 0.0
    %2120 = vmatpush2.msra.mxu0 0.0
    %2121 = vmatprep.subr.mxu0 0.0
    %2122 = vmatpush2.msra.mxu0 0.0
    %2123 = vmatprep.subr.mxu0 0.0
    %2124 = vmatpush2.msra.mxu0 0.0
    %2125 = vmatprep.subr.mxu0 0.0
    %2126 = vmatpush2.msra.mxu0 0.0
    %2127 = vmatprep.subr.mxu0 0.0
    %2128 = vmatpush2.msra.mxu0 0.0
    %2129 = vmatprep.subr.mxu0 0.0
    %2130 = vmatpush2.msra.mxu0 0.0
    %2131 = vmatprep.subr.mxu0 0.0
    %2132 = vmatpush2.msra.mxu0 0.0
    %2133 = vmatprep.subr.mxu0 0.0
    %2134 = vmatpush2.msra.mxu0 0.0
    %2135 = vmatprep.mubr.f32.mxu0 0.0
    %2136 = vmatmul.mubr.f32.gmra.mxu0 %v2069
    %v2137 = vpop.f32.mrf.mxu0
    %v2138 = vadd.f32 0.0, %v2137
    %v2139 = vpop.f32.mrf.mxu0
    %2140 = vdwg.mxu0
    %v2141 = vadd.f32 %v2064, %v2138
    %v2142 = vld [vmem:[#allocation3] sm:$0xff]
    %v2143 = vld [vmem:[%s4] sm:$0xff]
    %v2144 = vld [vmem:[%s4 + $0x8] sm:$0xff]
    %v2145 = vld [vmem:[%s4 + $0x10] sm:$0xff]
    %v2146 = vld [vmem:[%s4 + $0x18] sm:$0xff]
    %2147 = vrot.lane.b32.xlu0 %v2052, 32
    %v2148 = vpop.permute.xlu0 %2147
    %v2149 = vsel %vm537, %v2148, 0
    %2151 = vmatprep.subr.mxu0 0.0
    %2152 = vmatpush1.msra.mxu0 0.0
    %2153 = vmatprep.subr.mxu0 0.0
    %2154 = vmatpush1.msra.mxu0 0.0
    %2155 = vmatprep.subr.mxu0 0.0
    %2156 = vmatpush1.msra.mxu0 0.0
    %2157 = vmatprep.subr.mxu0 0.0
    %2158 = vmatpush1.msra.mxu0 0.0
    %2159 = vmatprep.subr.mxu0 0.0
    %2160 = vmatpush1.msra.mxu0 0.0
    %2161 = vmatprep.subr.mxu0 0.0
    %2162 = vmatpush1.msra.mxu0 0.0
    %2163 = vmatprep.subr.mxu0 0.0
    %2164 = vmatpush1.msra.mxu0 0.0
    %2165 = vmatprep.subr.mxu0 0.0
    %2166 = vmatpush1.msra.mxu0 0.0
    %2167 = vmatprep.subr.mxu0 0.0
    %2168 = vmatpush1.msra.mxu0 0.0
    %2169 = vmatprep.subr.mxu0 0.0
    %2170 = vmatpush1.msra.mxu0 0.0
    %2171 = vmatprep.subr.mxu0 0.0
    %2172 = vmatpush1.msra.mxu0 0.0
    %2173 = vmatprep.subr.mxu0 0.0
    %2174 = vmatpush1.msra.mxu0 0.0
    %2175 = vmatprep.subr.mxu0 0.0
    %2176 = vmatpush1.msra.mxu0 %v2146
    %2177 = vmatprep.subr.mxu0 0.0
    %2178 = vmatpush1.msra.mxu0 %v2145
    %2179 = vmatprep.subr.mxu0 0.0
    %2180 = vmatpush1.msra.mxu0 %v2144
    %2181 = vmatprep.subr.mxu0 0.0
    %2182 = vmatpush1.msra.mxu0 %v2143
    %2183 = vmatprep.subr.mxu0 0.0
    %2184 = vmatpush2.msra.mxu0 0.0
    %2185 = vmatprep.subr.mxu0 0.0
    %2186 = vmatpush2.msra.mxu0 0.0
    %2187 = vmatprep.subr.mxu0 0.0
    %2188 = vmatpush2.msra.mxu0 0.0
    %2189 = vmatprep.subr.mxu0 0.0
    %2190 = vmatpush2.msra.mxu0 0.0
    %2191 = vmatprep.subr.mxu0 0.0
    %2192 = vmatpush2.msra.mxu0 0.0
    %2193 = vmatprep.subr.mxu0 0.0
    %2194 = vmatpush2.msra.mxu0 0.0
    %2195 = vmatprep.subr.mxu0 0.0
    %2196 = vmatpush2.msra.mxu0 0.0
    %2197 = vmatprep.subr.mxu0 0.0
    %2198 = vmatpush2.msra.mxu0 0.0
    %2199 = vmatprep.subr.mxu0 0.0
    %2200 = vmatpush2.msra.mxu0 0.0
    %2201 = vmatprep.subr.mxu0 0.0
    %2202 = vmatpush2.msra.mxu0 0.0
    %2203 = vmatprep.subr.mxu0 0.0
    %2204 = vmatpush2.msra.mxu0 0.0
    %2205 = vmatprep.subr.mxu0 0.0
    %2206 = vmatpush2.msra.mxu0 0.0
    %2207 = vmatprep.subr.mxu0 0.0
    %2208 = vmatpush2.msra.mxu0 0.0
    %2209 = vmatprep.subr.mxu0 0.0
    %2210 = vmatpush2.msra.mxu0 0.0
    %2211 = vmatprep.subr.mxu0 0.0
    %2212 = vmatpush2.msra.mxu0 0.0
    %2213 = vmatprep.subr.mxu0 0.0
    %2214 = vmatpush2.msra.mxu0 0.0
    %2215 = vmatprep.mubr.f32.mxu0 0.0
    %2216 = vmatmul.mubr.f32.gmra.mxu0 %v2149
    %v2217 = vpop.f32.mrf.mxu0
    %v2218 = vadd.f32 0.0, %v2217
    %v2219 = vpop.f32.mrf.mxu0
    %2220 = vdwg.mxu0
    %v2221 = vadd.f32 %v2142, %v2218
    %v2222 = vxor.u32 %v2141, 2147483648
    %v2223 = vmul.f32 %v2222, 1.442695
    %v2224 = vpow.pop %v2223
    %v2225 = vadd.f32 %v2224, 1.0
    %v2226 = vrcp.pop %v2225
    %v2227 = vmul.f32 1.0, %v2226
    %v2228 = vtanh.pop %v2141
    %v2229 = vmul.f32 %v2227, %v2022
    %2231 = vrot.lane.b32.xlu0 %v2228, 64
    %v2232 = vpop.permute.xlu0 %2231
    %v2234 = vmul.f32 %v2227, %v2232
    %2236 = vrot.lane.b32.xlu0 %v2234, 32
    %v2237 = vpop.permute.xlu0 %2236
    %v2239 = vadd.f32 %v2229, %v2237
    %v2240 = vtanh.pop %v2239
    %2242 = vrot.lane.b32.xlu0 %v2240, 64
    %v2243 = vpop.permute.xlu0 %2242
    %v2245 = vmul.f32 %v2227, %v2243
    %v2246 = vxor.u32 %v2221, 2147483648
    %v2247 = vmul.f32 %v2246, 1.442695
    %v2248 = vpow.pop %v2247
    %v2249 = vadd.f32 %v2248, 1.0
    %v2250 = vrcp.pop %v2249
    %v2251 = vmul.f32 1.0, %v2250
    %v2252 = vtanh.pop %v2221
    %v2253 = vmul.f32 %v2251, %v2046
    %2255 = vrot.lane.b32.xlu0 %v2252, 64
    %v2256 = vpop.permute.xlu0 %2255
    %v2258 = vmul.f32 %v2251, %v2256
    %2260 = vrot.lane.b32.xlu0 %v2258, 32
    %v2261 = vpop.permute.xlu0 %2260
    %v2263 = vadd.f32 %v2253, %v2261
    %v2264 = vtanh.pop %v2263
    %2266 = vrot.lane.b32.xlu0 %v2264, 64
    %v2267 = vpop.permute.xlu0 %2266
    %v2269 = vmul.f32 %v2251, %v2267
    %2271 = vrot.lane.b32.xlu0 %v2245, 32
    %v2272 = vpop.permute.xlu0 %2271
    %2274 = vst.msk [vmem:[%s746] sm:$0xff] %vm537, %v2272
    %2276 = vrot.lane.b32.xlu0 %v2269, 64
    %v2277 = vpop.permute.xlu0 %2276
    %2279 = vst.msk [vmem:[#allocation4] sm:$0xff] %vm747, %v2277
    %v2280 = vld [vmem:[#allocation4] sm:$0xff]
    %v2281 = vld [vmem:[#allocation4 + $0x8] sm:$0xff]
    %v2282 = vld [vmem:[#allocation4 + $0x10] sm:$0xff]
    %v2283 = vld [vmem:[#allocation4 + $0x18] sm:$0xff]
    %v2284 = vld [vmem:[#allocation4 + $0x20] sm:$0xff]
    %v2285 = vld [vmem:[#allocation4 + $0x28] sm:$0xff]
    %v2286 = vld [vmem:[#allocation4 + $0x30] sm:$0xff]
    %v2287 = vld [vmem:[#allocation4 + $0x38] sm:$0xff]
    %v2288 = vld [vmem:[%s7] sm:$0xff]
    %v2289 = vld [vmem:[%s7 + $0x8] sm:$0xff]
    %v2290 = vld [vmem:[%s7 + $0x10] sm:$0xff]
    %v2291 = vld [vmem:[%s7 + $0x18] sm:$0xff]
    %v2292 = vld [vmem:[%s7 + $0x20] sm:$0xff]
    %v2293 = vld [vmem:[%s7 + $0x28] sm:$0xff]
    %v2294 = vld [vmem:[%s7 + $0x30] sm:$0xff]
    %v2295 = vld [vmem:[%s7 + $0x38] sm:$0xff]
    %v2296 = vld [vmem:[#allocation16] sm:$0x1]
    %v2298 = vlaneseq
    %v2299 = vshrl.u32 %v2298, 7
    %v2300 = vsub.s32 0, %v2299
    %v2301 = vrot.slane %v2296, %v2300
    %vm2303 = vcmask 523264
    %v2305 = vsel %vm2303, %v2280, 0
    %v2308 = vsel %vm2303, %v2281, 0
    %v2311 = vsel %vm2303, %v2282, 0
    %v2314 = vsel %vm2303, %v2283, 0
    %v2317 = vsel %vm2303, %v2284, 0
    %v2320 = vsel %vm2303, %v2285, 0
    %v2323 = vsel %vm2303, %v2286, 0
    %v2326 = vsel %vm2303, %v2287, 0
    %2328 = vmatprep.subr.mxu0 0.0
    %2329 = vmatpush1.msra.mxu0 0.0
    %2330 = vmatprep.subr.mxu0 0.0
    %2331 = vmatpush1.msra.mxu0 0.0
    %2332 = vmatprep.subr.mxu0 0.0
    %2333 = vmatpush1.msra.mxu0 0.0
    %2334 = vmatprep.subr.mxu0 0.0
    %2335 = vmatpush1.msra.mxu0 0.0
    %2336 = vmatprep.subr.mxu0 0.0
    %2337 = vmatpush1.msra.mxu0 0.0
    %2338 = vmatprep.subr.mxu0 0.0
    %2339 = vmatpush1.msra.mxu0 0.0
    %2340 = vmatprep.subr.mxu0 0.0
    %2341 = vmatpush1.msra.mxu0 0.0
    %2342 = vmatprep.subr.mxu0 0.0
    %2343 = vmatpush1.msra.mxu0 0.0
    %2344 = vmatprep.subr.mxu0 0.0
    %2345 = vmatpush1.msra.mxu0 %v2295
    %2346 = vmatprep.subr.mxu0 0.0
    %2347 = vmatpush1.msra.mxu0 %v2294
    %2348 = vmatprep.subr.mxu0 0.0
    %2349 = vmatpush1.msra.mxu0 %v2293
    %2350 = vmatprep.subr.mxu0 0.0
    %2351 = vmatpush1.msra.mxu0 %v2292
    %2352 = vmatprep.subr.mxu0 0.0
    %2353 = vmatpush1.msra.mxu0 %v2291
    %2354 = vmatprep.subr.mxu0 0.0
    %2355 = vmatpush1.msra.mxu0 %v2290
    %2356 = vmatprep.subr.mxu0 0.0
    %2357 = vmatpush1.msra.mxu0 %v2289
    %2358 = vmatprep.subr.mxu0 0.0
    %2359 = vmatpush1.msra.mxu0 %v2288
    %2360 = vmatprep.subr.mxu0 0.0
    %2361 = vmatpush2.msra.mxu0 0.0
    %2362 = vmatprep.subr.mxu0 0.0
    %2363 = vmatpush2.msra.mxu0 0.0
    %2364 = vmatprep.subr.mxu0 0.0
    %2365 = vmatpush2.msra.mxu0 0.0
    %2366 = vmatprep.subr.mxu0 0.0
    %2367 = vmatpush2.msra.mxu0 0.0
    %2368 = vmatprep.subr.mxu0 0.0
    %2369 = vmatpush2.msra.mxu0 0.0
    %2370 = vmatprep.subr.mxu0 0.0
    %2371 = vmatpush2.msra.mxu0 0.0
    %2372 = vmatprep.subr.mxu0 0.0
    %2373 = vmatpush2.msra.mxu0 0.0
    %2374 = vmatprep.subr.mxu0 0.0
    %2375 = vmatpush2.msra.mxu0 0.0
    %2376 = vmatprep.subr.mxu0 0.0
    %2377 = vmatpush2.msra.mxu0 0.0
    %2378 = vmatprep.subr.mxu0 0.0
    %2379 = vmatpush2.msra.mxu0 0.0
    %2380 = vmatprep.subr.mxu0 0.0
    %2381 = vmatpush2.msra.mxu0 0.0
    %2382 = vmatprep.subr.mxu0 0.0
    %2383 = vmatpush2.msra.mxu0 0.0
    %2384 = vmatprep.subr.mxu0 0.0
    %2385 = vmatpush2.msra.mxu0 0.0
    %2386 = vmatprep.subr.mxu0 0.0
    %2387 = vmatpush2.msra.mxu0 0.0
    %2388 = vmatprep.subr.mxu0 0.0
    %2389 = vmatpush2.msra.mxu0 0.0
    %2390 = vmatprep.subr.mxu0 0.0
    %2391 = vmatpush2.msra.mxu0 0.0
    %2392 = vmatprep.mubr.f32.mxu0 0.0
    %2393 = vmatmul.mubr.f32.gmra.mxu0 %v2305
    %v2394 = vpop.f32.mrf.mxu0
    %v2395 = vadd.f32 %v2301, %v2394
    %v2396 = vpop.f32.mrf.mxu0
    %2397 = vmatprep.mubr.f32.mxu0 0.0
    %2398 = vmatmul.mubr.f32.gmra.mxu0 %v2308
    %v2399 = vpop.f32.mrf.mxu0
    %v2400 = vadd.f32 %v2301, %v2399
    %v2401 = vpop.f32.mrf.mxu0
    %2402 = vmatprep.mubr.f32.mxu0 0.0
    %2403 = vmatmul.mubr.f32.gmra.mxu0 %v2311
    %v2404 = vpop.f32.mrf.mxu0
    %v2405 = vadd.f32 %v2301, %v2404
    %v2406 = vpop.f32.mrf.mxu0
    %2407 = vmatprep.mubr.f32.mxu0 0.0
    %2408 = vmatmul.mubr.f32.gmra.mxu0 %v2314
    %v2409 = vpop.f32.mrf.mxu0
    %v2410 = vadd.f32 %v2301, %v2409
    %v2411 = vpop.f32.mrf.mxu0
    %2412 = vmatprep.mubr.f32.mxu0 0.0
    %2413 = vmatmul.mubr.f32.gmra.mxu0 %v2317
    %v2414 = vpop.f32.mrf.mxu0
    %v2415 = vadd.f32 %v2301, %v2414
    %v2416 = vpop.f32.mrf.mxu0
    %2417 = vmatprep.mubr.f32.mxu0 0.0
    %2418 = vmatmul.mubr.f32.gmra.mxu0 %v2320
    %v2419 = vpop.f32.mrf.mxu0
    %v2420 = vadd.f32 %v2301, %v2419
    %v2421 = vpop.f32.mrf.mxu0
    %2422 = vmatprep.mubr.f32.mxu0 0.0
    %2423 = vmatmul.mubr.f32.gmra.mxu0 %v2323
    %v2424 = vpop.f32.mrf.mxu0
    %v2425 = vadd.f32 %v2301, %v2424
    %v2426 = vpop.f32.mrf.mxu0
    %2427 = vmatprep.mubr.f32.mxu0 0.0
    %2428 = vmatmul.mubr.f32.gmra.mxu0 %v2326
    %v2429 = vpop.f32.mrf.mxu0
    %v2430 = vadd.f32 %v2301, %v2429
    %v2431 = vpop.f32.mrf.mxu0
    %2432 = vdwg.mxu0
    %2433 = vst [vmem:[#allocation2] sm:$0xff] %v2395
    %2434 = vst [vmem:[#allocation2 + $0x8] sm:$0xff] %v2400
    %2435 = vst [vmem:[#allocation2 + $0x10] sm:$0xff] %v2405
    %2436 = vst [vmem:[#allocation2 + $0x18] sm:$0xff] %v2410
    %2437 = vst [vmem:[#allocation2 + $0x20] sm:$0xff] %v2415
    %2438 = vst [vmem:[#allocation2 + $0x28] sm:$0xff] %v2420
    %2439 = vst [vmem:[#allocation2 + $0x30] sm:$0xff] %v2425
    %2440 = vst [vmem:[#allocation2 + $0x38] sm:$0xff] %v2430
    %v2441 = vld [vmem:[#allocation4] sm:$0xff]
    %v2442 = vld [vmem:[#allocation4 + $0x8] sm:$0xff]
    %v2443 = vld [vmem:[#allocation4 + $0x10] sm:$0xff]
    %v2444 = vld [vmem:[#allocation4 + $0x18] sm:$0xff]
    %v2445 = vld [vmem:[#allocation4 + $0x20] sm:$0xff]
    %v2446 = vld [vmem:[#allocation4 + $0x28] sm:$0xff]
    %v2447 = vld [vmem:[#allocation4 + $0x30] sm:$0xff]
    %v2448 = vld [vmem:[#allocation4 + $0x38] sm:$0xff]
    %v2449 = vld [vmem:[%s8] sm:$0xff]
    %v2450 = vld [vmem:[%s8 + $0x8] sm:$0xff]
    %v2451 = vld [vmem:[%s8 + $0x10] sm:$0xff]
    %v2452 = vld [vmem:[%s8 + $0x18] sm:$0xff]
    %v2453 = vld [vmem:[%s8 + $0x20] sm:$0xff]
    %v2454 = vld [vmem:[%s8 + $0x28] sm:$0xff]
    %v2455 = vld [vmem:[%s8 + $0x30] sm:$0xff]
    %v2456 = vld [vmem:[%s8 + $0x38] sm:$0xff]
    %v2457 = vld [vmem:[#allocation18] sm:$0x1]
    %v2459 = vlaneseq
    %v2460 = vshrl.u32 %v2459, 7
    %v2461 = vsub.s32 0, %v2460
    %v2462 = vrot.slane %v2457, %v2461
    %v2465 = vsel %vm2303, %v2441, 0
    %v2468 = vsel %vm2303, %v2442, 0
    %v2471 = vsel %vm2303, %v2443, 0
    %v2474 = vsel %vm2303, %v2444, 0
    %v2477 = vsel %vm2303, %v2445, 0
    %v2480 = vsel %vm2303, %v2446, 0
    %v2483 = vsel %vm2303, %v2447, 0
    %v2486 = vsel %vm2303, %v2448, 0
    %2488 = vmatprep.subr.mxu0 0.0
    %2489 = vmatpush1.msra.mxu0 0.0
    %2490 = vmatprep.subr.mxu0 0.0
    %2491 = vmatpush1.msra.mxu0 0.0
    %2492 = vmatprep.subr.mxu0 0.0
    %2493 = vmatpush1.msra.mxu0 0.0
    %2494 = vmatprep.subr.mxu0 0.0
    %2495 = vmatpush1.msra.mxu0 0.0
    %2496 = vmatprep.subr.mxu0 0.0
    %2497 = vmatpush1.msra.mxu0 0.0
    %2498 = vmatprep.subr.mxu0 0.0
    %2499 = vmatpush1.msra.mxu0 0.0
    %2500 = vmatprep.subr.mxu0 0.0
    %2501 = vmatpush1.msra.mxu0 0.0
    %2502 = vmatprep.subr.mxu0 0.0
    %2503 = vmatpush1.msra.mxu0 0.0
    %2504 = vmatprep.subr.mxu0 0.0
    %2505 = vmatpush1.msra.mxu0 %v2456
    %2506 = vmatprep.subr.mxu0 0.0
    %2507 = vmatpush1.msra.mxu0 %v2455
    %2508 = vmatprep.subr.mxu0 0.0
    %2509 = vmatpush1.msra.mxu0 %v2454
    %2510 = vmatprep.subr.mxu0 0.0
    %2511 = vmatpush1.msra.mxu0 %v2453
    %2512 = vmatprep.subr.mxu0 0.0
    %2513 = vmatpush1.msra.mxu0 %v2452
    %2514 = vmatprep.subr.mxu0 0.0
    %2515 = vmatpush1.msra.mxu0 %v2451
    %2516 = vmatprep.subr.mxu0 0.0
    %2517 = vmatpush1.msra.mxu0 %v2450
    %2518 = vmatprep.subr.mxu0 0.0
    %2519 = vmatpush1.msra.mxu0 %v2449
    %2520 = vmatprep.subr.mxu0 0.0
    %2521 = vmatpush2.msra.mxu0 0.0
    %2522 = vmatprep.subr.mxu0 0.0
    %2523 = vmatpush2.msra.mxu0 0.0
    %2524 = vmatprep.subr.mxu0 0.0
    %2525 = vmatpush2.msra.mxu0 0.0
    %2526 = vmatprep.subr.mxu0 0.0
    %2527 = vmatpush2.msra.mxu0 0.0
    %2528 = vmatprep.subr.mxu0 0.0
    %2529 = vmatpush2.msra.mxu0 0.0
    %2530 = vmatprep.subr.mxu0 0.0
    %2531 = vmatpush2.msra.mxu0 0.0
    %2532 = vmatprep.subr.mxu0 0.0
    %2533 = vmatpush2.msra.mxu0 0.0
    %2534 = vmatprep.subr.mxu0 0.0
    %2535 = vmatpush2.msra.mxu0 0.0
    %2536 = vmatprep.subr.mxu0 0.0
    %2537 = vmatpush2.msra.mxu0 0.0
    %2538 = vmatprep.subr.mxu0 0.0
    %2539 = vmatpush2.msra.mxu0 0.0
    %2540 = vmatprep.subr.mxu0 0.0
    %2541 = vmatpush2.msra.mxu0 0.0
    %2542 = vmatprep.subr.mxu0 0.0
    %2543 = vmatpush2.msra.mxu0 0.0
    %2544 = vmatprep.subr.mxu0 0.0
    %2545 = vmatpush2.msra.mxu0 0.0
    %2546 = vmatprep.subr.mxu0 0.0
    %2547 = vmatpush2.msra.mxu0 0.0
    %2548 = vmatprep.subr.mxu0 0.0
    %2549 = vmatpush2.msra.mxu0 0.0
    %2550 = vmatprep.subr.mxu0 0.0
    %2551 = vmatpush2.msra.mxu0 0.0
    %2552 = vmatprep.mubr.f32.mxu0 0.0
    %2553 = vmatmul.mubr.f32.gmra.mxu0 %v2465
    %v2554 = vpop.f32.mrf.mxu0
    %v2555 = vadd.f32 %v2462, %v2554
    %v2556 = vpop.f32.mrf.mxu0
    %2557 = vmatprep.mubr.f32.mxu0 0.0
    %2558 = vmatmul.mubr.f32.gmra.mxu0 %v2468
    %v2559 = vpop.f32.mrf.mxu0
    %v2560 = vadd.f32 %v2462, %v2559
    %v2561 = vpop.f32.mrf.mxu0
    %2562 = vmatprep.mubr.f32.mxu0 0.0
    %2563 = vmatmul.mubr.f32.gmra.mxu0 %v2471
    %v2564 = vpop.f32.mrf.mxu0
    %v2565 = vadd.f32 %v2462, %v2564
    %v2566 = vpop.f32.mrf.mxu0
    %2567 = vmatprep.mubr.f32.mxu0 0.0
    %2568 = vmatmul.mubr.f32.gmra.mxu0 %v2474
    %v2569 = vpop.f32.mrf.mxu0
    %v2570 = vadd.f32 %v2462, %v2569
    %v2571 = vpop.f32.mrf.mxu0
    %2572 = vmatprep.mubr.f32.mxu0 0.0
    %2573 = vmatmul.mubr.f32.gmra.mxu0 %v2477
    %v2574 = vpop.f32.mrf.mxu0
    %v2575 = vadd.f32 %v2462, %v2574
    %v2576 = vpop.f32.mrf.mxu0
    %2577 = vmatprep.mubr.f32.mxu0 0.0
    %2578 = vmatmul.mubr.f32.gmra.mxu0 %v2480
    %v2579 = vpop.f32.mrf.mxu0
    %v2580 = vadd.f32 %v2462, %v2579
    %v2581 = vpop.f32.mrf.mxu0
    %2582 = vmatprep.mubr.f32.mxu0 0.0
    %2583 = vmatmul.mubr.f32.gmra.mxu0 %v2483
    %v2584 = vpop.f32.mrf.mxu0
    %v2585 = vadd.f32 %v2462, %v2584
    %v2586 = vpop.f32.mrf.mxu0
    %2587 = vmatprep.mubr.f32.mxu0 0.0
    %2588 = vmatmul.mubr.f32.gmra.mxu0 %v2486
    %v2589 = vpop.f32.mrf.mxu0
    %v2590 = vadd.f32 %v2462, %v2589
    %v2591 = vpop.f32.mrf.mxu0
    %2592 = vdwg.mxu0
    %2593 = vst [vmem:[#allocation3] sm:$0xff] %v2555
    %2594 = vst [vmem:[#allocation3 + $0x8] sm:$0xff] %v2560
    %2595 = vst [vmem:[#allocation3 + $0x10] sm:$0xff] %v2565
    %2596 = vst [vmem:[#allocation3 + $0x18] sm:$0xff] %v2570
    %2597 = vst [vmem:[#allocation3 + $0x20] sm:$0xff] %v2575
    %2598 = vst [vmem:[#allocation3 + $0x28] sm:$0xff] %v2580
    %2599 = vst [vmem:[#allocation3 + $0x30] sm:$0xff] %v2585
    %2600 = vst [vmem:[#allocation3 + $0x38] sm:$0xff] %v2590
    %v2601 = vld [vmem:[#allocation2] sm:$0xff]
    %v2602 = vld [vmem:[#allocation13] sm:$0xff]
    %v2603 = vld [vmem:[#allocation13 + $0x8] sm:$0xff]
    %v2604 = vld [vmem:[#allocation13 + $0x10] sm:$0xff]
    %v2605 = vld [vmem:[#allocation13 + $0x18] sm:$0xff]
    %2606 = vmatprep.subr.mxu0 0.0
    %2607 = vmatpush1.msra.mxu0 0.0
    %2608 = vmatprep.subr.mxu0 0.0
    %2609 = vmatpush1.msra.mxu0 0.0
    %2610 = vmatprep.subr.mxu0 0.0
    %2611 = vmatpush1.msra.mxu0 0.0
    %2612 = vmatprep.subr.mxu0 0.0
    %2613 = vmatpush1.msra.mxu0 0.0
    %2614 = vmatprep.subr.mxu0 0.0
    %2615 = vmatpush1.msra.mxu0 0.0
    %2616 = vmatprep.subr.mxu0 0.0
    %2617 = vmatpush1.msra.mxu0 0.0
    %2618 = vmatprep.subr.mxu0 0.0
    %2619 = vmatpush1.msra.mxu0 0.0
    %2620 = vmatprep.subr.mxu0 0.0
    %2621 = vmatpush1.msra.mxu0 0.0
    %2622 = vmatprep.subr.mxu0 0.0
    %2623 = vmatpush1.msra.mxu0 0.0
    %2624 = vmatprep.subr.mxu0 0.0
    %2625 = vmatpush1.msra.mxu0 0.0
    %2626 = vmatprep.subr.mxu0 0.0
    %2627 = vmatpush1.msra.mxu0 0.0
    %2628 = vmatprep.subr.mxu0 0.0
    %2629 = vmatpush1.msra.mxu0 0.0
    %2630 = vmatprep.subr.mxu0 0.0
    %2631 = vmatpush1.msra.mxu0 %v2605
    %2632 = vmatprep.subr.mxu0 0.0
    %2633 = vmatpush1.msra.mxu0 %v2604
    %2634 = vmatprep.subr.mxu0 0.0
    %2635 = vmatpush1.msra.mxu0 %v2603
    %2636 = vmatprep.subr.mxu0 0.0
    %2637 = vmatpush1.msra.mxu0 %v2602
    %2638 = vmatprep.subr.mxu0 0.0
    %2639 = vmatpush2.msra.mxu0 0.0
    %2640 = vmatprep.subr.mxu0 0.0
    %2641 = vmatpush2.msra.mxu0 0.0
    %2642 = vmatprep.subr.mxu0 0.0
    %2643 = vmatpush2.msra.mxu0 0.0
    %2644 = vmatprep.subr.mxu0 0.0
    %2645 = vmatpush2.msra.mxu0 0.0
    %2646 = vmatprep.subr.mxu0 0.0
    %2647 = vmatpush2.msra.mxu0 0.0
    %2648 = vmatprep.subr.mxu0 0.0
    %2649 = vmatpush2.msra.mxu0 0.0
    %2650 = vmatprep.subr.mxu0 0.0
    %2651 = vmatpush2.msra.mxu0 0.0
    %2652 = vmatprep.subr.mxu0 0.0
    %2653 = vmatpush2.msra.mxu0 0.0
    %2654 = vmatprep.subr.mxu0 0.0
    %2655 = vmatpush2.msra.mxu0 0.0
    %2656 = vmatprep.subr.mxu0 0.0
    %2657 = vmatpush2.msra.mxu0 0.0
    %2658 = vmatprep.subr.mxu0 0.0
    %2659 = vmatpush2.msra.mxu0 0.0
    %2660 = vmatprep.subr.mxu0 0.0
    %2661 = vmatpush2.msra.mxu0 0.0
    %2662 = vmatprep.subr.mxu0 0.0
    %2663 = vmatpush2.msra.mxu0 0.0
    %2664 = vmatprep.subr.mxu0 0.0
    %2665 = vmatpush2.msra.mxu0 0.0
    %2666 = vmatprep.subr.mxu0 0.0
    %2667 = vmatpush2.msra.mxu0 0.0
    %2668 = vmatprep.subr.mxu0 0.0
    %2669 = vmatpush2.msra.mxu0 0.0
    %2670 = vmatprep.mubr.f32.mxu0 0.0
    %2671 = vmatmul.mubr.f32.gmra.mxu0 %v539
    %v2672 = vpop.f32.mrf.mxu0
    %v2673 = vadd.f32 0.0, %v2672
    %v2674 = vpop.f32.mrf.mxu0
    %2675 = vdwg.mxu0
    %v2676 = vadd.f32 %v2601, %v2673
    %v2677 = vld [vmem:[%s612] sm:$0xff]
    %v2678 = vld [vmem:[#allocation15] sm:$0xff]
    %v2679 = vld [vmem:[#allocation15 + $0x8] sm:$0xff]
    %v2680 = vld [vmem:[#allocation15 + $0x10] sm:$0xff]
    %v2681 = vld [vmem:[#allocation15 + $0x18] sm:$0xff]
    %2682 = vmatprep.subr.mxu0 0.0
    %2683 = vmatpush1.msra.mxu0 0.0
    %2684 = vmatprep.subr.mxu0 0.0
    %2685 = vmatpush1.msra.mxu0 0.0
    %2686 = vmatprep.subr.mxu0 0.0
    %2687 = vmatpush1.msra.mxu0 0.0
    %2688 = vmatprep.subr.mxu0 0.0
    %2689 = vmatpush1.msra.mxu0 0.0
    %2690 = vmatprep.subr.mxu0 0.0
    %2691 = vmatpush1.msra.mxu0 0.0
    %2692 = vmatprep.subr.mxu0 0.0
    %2693 = vmatpush1.msra.mxu0 0.0
    %2694 = vmatprep.subr.mxu0 0.0
    %2695 = vmatpush1.msra.mxu0 0.0
    %2696 = vmatprep.subr.mxu0 0.0
    %2697 = vmatpush1.msra.mxu0 0.0
    %2698 = vmatprep.subr.mxu0 0.0
    %2699 = vmatpush1.msra.mxu0 0.0
    %2700 = vmatprep.subr.mxu0 0.0
    %2701 = vmatpush1.msra.mxu0 0.0
    %2702 = vmatprep.subr.mxu0 0.0
    %2703 = vmatpush1.msra.mxu0 0.0
    %2704 = vmatprep.subr.mxu0 0.0
    %2705 = vmatpush1.msra.mxu0 0.0
    %2706 = vmatprep.subr.mxu0 0.0
    %2707 = vmatpush1.msra.mxu0 %v2681
    %2708 = vmatprep.subr.mxu0 0.0
    %2709 = vmatpush1.msra.mxu0 %v2680
    %2710 = vmatprep.subr.mxu0 0.0
    %2711 = vmatpush1.msra.mxu0 %v2679
    %2712 = vmatprep.subr.mxu0 0.0
    %2713 = vmatpush1.msra.mxu0 %v2678
    %2714 = vmatprep.subr.mxu0 0.0
    %2715 = vmatpush2.msra.mxu0 0.0
    %2716 = vmatprep.subr.mxu0 0.0
    %2717 = vmatpush2.msra.mxu0 0.0
    %2718 = vmatprep.subr.mxu0 0.0
    %2719 = vmatpush2.msra.mxu0 0.0
    %2720 = vmatprep.subr.mxu0 0.0
    %2721 = vmatpush2.msra.mxu0 0.0
    %2722 = vmatprep.subr.mxu0 0.0
    %2723 = vmatpush2.msra.mxu0 0.0
    %2724 = vmatprep.subr.mxu0 0.0
    %2725 = vmatpush2.msra.mxu0 0.0
    %2726 = vmatprep.subr.mxu0 0.0
    %2727 = vmatpush2.msra.mxu0 0.0
    %2728 = vmatprep.subr.mxu0 0.0
    %2729 = vmatpush2.msra.mxu0 0.0
    %2730 = vmatprep.subr.mxu0 0.0
    %2731 = vmatpush2.msra.mxu0 0.0
    %2732 = vmatprep.subr.mxu0 0.0
    %2733 = vmatpush2.msra.mxu0 0.0
    %2734 = vmatprep.subr.mxu0 0.0
    %2735 = vmatpush2.msra.mxu0 0.0
    %2736 = vmatprep.subr.mxu0 0.0
    %2737 = vmatpush2.msra.mxu0 0.0
    %2738 = vmatprep.subr.mxu0 0.0
    %2739 = vmatpush2.msra.mxu0 0.0
    %2740 = vmatprep.subr.mxu0 0.0
    %2741 = vmatpush2.msra.mxu0 0.0
    %2742 = vmatprep.subr.mxu0 0.0
    %2743 = vmatpush2.msra.mxu0 0.0
    %2744 = vmatprep.subr.mxu0 0.0
    %2745 = vmatpush2.msra.mxu0 0.0
    %2746 = vmatprep.mubr.f32.mxu0 0.0
    %2747 = vmatmul.mubr.f32.gmra.mxu0 %v539
    %v2748 = vpop.f32.mrf.mxu0
    %v2749 = vadd.f32 0.0, %v2748
    %v2750 = vpop.f32.mrf.mxu0
    %2751 = vdwg.mxu0
    %v2752 = vadd.f32 %v2677, %v2749
    %v2753 = vxor.u32 %v2676, 2147483648
    %v2754 = vmul.f32 %v2753, 1.442695
    %v2755 = vpow.pop %v2754
    %v2756 = vadd.f32 %v2755, 1.0
    %v2757 = vrcp.pop %v2756
    %v2758 = vmul.f32 1.0, %v2757
    %v2759 = vtanh.pop %v2676
    %v2760 = vmul.f32 %v2758, 0.0
    %2762 = vrot.lane.b32.xlu0 %v2759, 64
    %v2763 = vpop.permute.xlu0 %2762
    %v2765 = vmul.f32 %v2758, %v2763
    %2767 = vrot.lane.b32.xlu0 %v2765, 32
    %v2768 = vpop.permute.xlu0 %2767
    %v2770 = vadd.f32 %v2760, %v2768
    %v2771 = vtanh.pop %v2770
    %2773 = vrot.lane.b32.xlu0 %v2771, 64
    %v2774 = vpop.permute.xlu0 %2773
    %v2776 = vmul.f32 %v2758, %v2774
    %v2777 = vxor.u32 %v2752, 2147483648
    %v2778 = vmul.f32 %v2777, 1.442695
    %v2779 = vpow.pop %v2778
    %v2780 = vadd.f32 %v2779, 1.0
    %v2781 = vrcp.pop %v2780
    %v2782 = vmul.f32 1.0, %v2781
    %v2783 = vtanh.pop %v2752
    %v2784 = vmul.f32 %v2782, 0.0
    %2786 = vrot.lane.b32.xlu0 %v2783, 64
    %v2787 = vpop.permute.xlu0 %2786
    %v2789 = vmul.f32 %v2782, %v2787
    %2791 = vrot.lane.b32.xlu0 %v2789, 32
    %v2792 = vpop.permute.xlu0 %2791
    %v2794 = vadd.f32 %v2784, %v2792
    %v2795 = vtanh.pop %v2794
    %2797 = vrot.lane.b32.xlu0 %v2795, 64
    %v2798 = vpop.permute.xlu0 %2797
    %v2800 = vmul.f32 %v2782, %v2798
    %v2801 = vld [vmem:[%s749] sm:$0xff]
    %2803 = vrot.lane.b32.xlu0 %v2776, 32
    %v2804 = vpop.permute.xlu0 %2803
    %v2805 = vsel %vm537, %v2804, 0
    %2807 = vmatprep.subr.mxu0 0.0
    %2808 = vmatpush1.msra.mxu0 0.0
    %2809 = vmatprep.subr.mxu0 0.0
    %2810 = vmatpush1.msra.mxu0 0.0
    %2811 = vmatprep.subr.mxu0 0.0
    %2812 = vmatpush1.msra.mxu0 0.0
    %2813 = vmatprep.subr.mxu0 0.0
    %2814 = vmatpush1.msra.mxu0 0.0
    %2815 = vmatprep.subr.mxu0 0.0
    %2816 = vmatpush1.msra.mxu0 0.0
    %2817 = vmatprep.subr.mxu0 0.0
    %2818 = vmatpush1.msra.mxu0 0.0
    %2819 = vmatprep.subr.mxu0 0.0
    %2820 = vmatpush1.msra.mxu0 0.0
    %2821 = vmatprep.subr.mxu0 0.0
    %2822 = vmatpush1.msra.mxu0 0.0
    %2823 = vmatprep.subr.mxu0 0.0
    %2824 = vmatpush1.msra.mxu0 0.0
    %2825 = vmatprep.subr.mxu0 0.0
    %2826 = vmatpush1.msra.mxu0 0.0
    %2827 = vmatprep.subr.mxu0 0.0
    %2828 = vmatpush1.msra.mxu0 0.0
    %2829 = vmatprep.subr.mxu0 0.0
    %2830 = vmatpush1.msra.mxu0 0.0
    %2831 = vmatprep.subr.mxu0 0.0
    %2832 = vmatpush1.msra.mxu0 %v2605
    %2833 = vmatprep.subr.mxu0 0.0
    %2834 = vmatpush1.msra.mxu0 %v2604
    %2835 = vmatprep.subr.mxu0 0.0
    %2836 = vmatpush1.msra.mxu0 %v2603
    %2837 = vmatprep.subr.mxu0 0.0
    %2838 = vmatpush1.msra.mxu0 %v2602
    %2839 = vmatprep.subr.mxu0 0.0
    %2840 = vmatpush2.msra.mxu0 0.0
    %2841 = vmatprep.subr.mxu0 0.0
    %2842 = vmatpush2.msra.mxu0 0.0
    %2843 = vmatprep.subr.mxu0 0.0
    %2844 = vmatpush2.msra.mxu0 0.0
    %2845 = vmatprep.subr.mxu0 0.0
    %2846 = vmatpush2.msra.mxu0 0.0
    %2847 = vmatprep.subr.mxu0 0.0
    %2848 = vmatpush2.msra.mxu0 0.0
    %2849 = vmatprep.subr.mxu0 0.0
    %2850 = vmatpush2.msra.mxu0 0.0
    %2851 = vmatprep.subr.mxu0 0.0
    %2852 = vmatpush2.msra.mxu0 0.0
    %2853 = vmatprep.subr.mxu0 0.0
    %2854 = vmatpush2.msra.mxu0 0.0
    %2855 = vmatprep.subr.mxu0 0.0
    %2856 = vmatpush2.msra.mxu0 0.0
    %2857 = vmatprep.subr.mxu0 0.0
    %2858 = vmatpush2.msra.mxu0 0.0
    %2859 = vmatprep.subr.mxu0 0.0
    %2860 = vmatpush2.msra.mxu0 0.0
    %2861 = vmatprep.subr.mxu0 0.0
    %2862 = vmatpush2.msra.mxu0 0.0
    %2863 = vmatprep.subr.mxu0 0.0
    %2864 = vmatpush2.msra.mxu0 0.0
    %2865 = vmatprep.subr.mxu0 0.0
    %2866 = vmatpush2.msra.mxu0 0.0
    %2867 = vmatprep.subr.mxu0 0.0
    %2868 = vmatpush2.msra.mxu0 0.0
    %2869 = vmatprep.subr.mxu0 0.0
    %2870 = vmatpush2.msra.mxu0 0.0
    %2871 = vmatprep.mubr.f32.mxu0 0.0
    %2872 = vmatmul.mubr.f32.gmra.mxu0 %v2805
    %v2873 = vpop.f32.mrf.mxu0
    %v2874 = vadd.f32 0.0, %v2873
    %v2875 = vpop.f32.mrf.mxu0
    %2876 = vdwg.mxu0
    %v2877 = vadd.f32 %v2801, %v2874
    %v2878 = vld [vmem:[%s828] sm:$0xff]
    %2880 = vrot.lane.b32.xlu0 %v2800, 32
    %v2881 = vpop.permute.xlu0 %2880
    %v2882 = vsel %vm537, %v2881, 0
    %2884 = vmatprep.subr.mxu0 0.0
    %2885 = vmatpush1.msra.mxu0 0.0
    %2886 = vmatprep.subr.mxu0 0.0
    %2887 = vmatpush1.msra.mxu0 0.0
    %2888 = vmatprep.subr.mxu0 0.0
    %2889 = vmatpush1.msra.mxu0 0.0
    %2890 = vmatprep.subr.mxu0 0.0
    %2891 = vmatpush1.msra.mxu0 0.0
    %2892 = vmatprep.subr.mxu0 0.0
    %2893 = vmatpush1.msra.mxu0 0.0
    %2894 = vmatprep.subr.mxu0 0.0
    %2895 = vmatpush1.msra.mxu0 0.0
    %2896 = vmatprep.subr.mxu0 0.0
    %2897 = vmatpush1.msra.mxu0 0.0
    %2898 = vmatprep.subr.mxu0 0.0
    %2899 = vmatpush1.msra.mxu0 0.0
    %2900 = vmatprep.subr.mxu0 0.0
    %2901 = vmatpush1.msra.mxu0 0.0
    %2902 = vmatprep.subr.mxu0 0.0
    %2903 = vmatpush1.msra.mxu0 0.0
    %2904 = vmatprep.subr.mxu0 0.0
    %2905 = vmatpush1.msra.mxu0 0.0
    %2906 = vmatprep.subr.mxu0 0.0
    %2907 = vmatpush1.msra.mxu0 0.0
    %2908 = vmatprep.subr.mxu0 0.0
    %2909 = vmatpush1.msra.mxu0 %v2681
    %2910 = vmatprep.subr.mxu0 0.0
    %2911 = vmatpush1.msra.mxu0 %v2680
    %2912 = vmatprep.subr.mxu0 0.0
    %2913 = vmatpush1.msra.mxu0 %v2679
    %2914 = vmatprep.subr.mxu0 0.0
    %2915 = vmatpush1.msra.mxu0 %v2678
    %2916 = vmatprep.subr.mxu0 0.0
    %2917 = vmatpush2.msra.mxu0 0.0
    %2918 = vmatprep.subr.mxu0 0.0
    %2919 = vmatpush2.msra.mxu0 0.0
    %2920 = vmatprep.subr.mxu0 0.0
    %2921 = vmatpush2.msra.mxu0 0.0
    %2922 = vmatprep.subr.mxu0 0.0
    %2923 = vmatpush2.msra.mxu0 0.0
    %2924 = vmatprep.subr.mxu0 0.0
    %2925 = vmatpush2.msra.mxu0 0.0
    %2926 = vmatprep.subr.mxu0 0.0
    %2927 = vmatpush2.msra.mxu0 0.0
    %2928 = vmatprep.subr.mxu0 0.0
    %2929 = vmatpush2.msra.mxu0 0.0
    %2930 = vmatprep.subr.mxu0 0.0
    %2931 = vmatpush2.msra.mxu0 0.0
    %2932 = vmatprep.subr.mxu0 0.0
    %2933 = vmatpush2.msra.mxu0 0.0
    %2934 = vmatprep.subr.mxu0 0.0
    %2935 = vmatpush2.msra.mxu0 0.0
    %2936 = vmatprep.subr.mxu0 0.0
    %2937 = vmatpush2.msra.mxu0 0.0
    %2938 = vmatprep.subr.mxu0 0.0
    %2939 = vmatpush2.msra.mxu0 0.0
    %2940 = vmatprep.subr.mxu0 0.0
    %2941 = vmatpush2.msra.mxu0 0.0
    %2942 = vmatprep.subr.mxu0 0.0
    %2943 = vmatpush2.msra.mxu0 0.0
    %2944 = vmatprep.subr.mxu0 0.0
    %2945 = vmatpush2.msra.mxu0 0.0
    %2946 = vmatprep.subr.mxu0 0.0
    %2947 = vmatpush2.msra.mxu0 0.0
    %2948 = vmatprep.mubr.f32.mxu0 0.0
    %2949 = vmatmul.mubr.f32.gmra.mxu0 %v2882
    %v2950 = vpop.f32.mrf.mxu0
    %v2951 = vadd.f32 0.0, %v2950
    %v2952 = vpop.f32.mrf.mxu0
    %2953 = vdwg.mxu0
    %v2954 = vadd.f32 %v2878, %v2951
    %v2955 = vxor.u32 %v2877, 2147483648
    %v2956 = vmul.f32 %v2955, 1.442695
    %v2957 = vpow.pop %v2956
    %v2958 = vadd.f32 %v2957, 1.0
    %v2959 = vrcp.pop %v2958
    %v2960 = vmul.f32 1.0, %v2959
    %v2961 = vtanh.pop %v2877
    %v2962 = vmul.f32 %v2960, %v2770
    %2964 = vrot.lane.b32.xlu0 %v2961, 64
    %v2965 = vpop.permute.xlu0 %2964
    %v2967 = vmul.f32 %v2960, %v2965
    %2969 = vrot.lane.b32.xlu0 %v2967, 32
    %v2970 = vpop.permute.xlu0 %2969
    %v2972 = vadd.f32 %v2962, %v2970
    %v2973 = vtanh.pop %v2972
    %2975 = vrot.lane.b32.xlu0 %v2973, 64
    %v2976 = vpop.permute.xlu0 %2975
    %v2978 = vmul.f32 %v2960, %v2976
    %v2979 = vxor.u32 %v2954, 2147483648
    %v2980 = vmul.f32 %v2979, 1.442695
    %v2981 = vpow.pop %v2980
    %v2982 = vadd.f32 %v2981, 1.0
    %v2983 = vrcp.pop %v2982
    %v2984 = vmul.f32 1.0, %v2983
    %v2985 = vtanh.pop %v2954
    %v2986 = vmul.f32 %v2984, %v2794
    %2988 = vrot.lane.b32.xlu0 %v2985, 64
    %v2989 = vpop.permute.xlu0 %2988
    %v2991 = vmul.f32 %v2984, %v2989
    %2993 = vrot.lane.b32.xlu0 %v2991, 32
    %v2994 = vpop.permute.xlu0 %2993
    %v2996 = vadd.f32 %v2986, %v2994
    %v2997 = vtanh.pop %v2996
    %2999 = vrot.lane.b32.xlu0 %v2997, 64
    %v3000 = vpop.permute.xlu0 %2999
    %v3002 = vmul.f32 %v2984, %v3000
    %v3003 = vld [vmem:[%s969] sm:$0xff]
    %3005 = vrot.lane.b32.xlu0 %v2978, 32
    %v3006 = vpop.permute.xlu0 %3005
    %v3007 = vsel %vm537, %v3006, 0
    %3009 = vmatprep.subr.mxu0 0.0
    %3010 = vmatpush1.msra.mxu0 0.0
    %3011 = vmatprep.subr.mxu0 0.0
    %3012 = vmatpush1.msra.mxu0 0.0
    %3013 = vmatprep.subr.mxu0 0.0
    %3014 = vmatpush1.msra.mxu0 0.0
    %3015 = vmatprep.subr.mxu0 0.0
    %3016 = vmatpush1.msra.mxu0 0.0
    %3017 = vmatprep.subr.mxu0 0.0
    %3018 = vmatpush1.msra.mxu0 0.0
    %3019 = vmatprep.subr.mxu0 0.0
    %3020 = vmatpush1.msra.mxu0 0.0
    %3021 = vmatprep.subr.mxu0 0.0
    %3022 = vmatpush1.msra.mxu0 0.0
    %3023 = vmatprep.subr.mxu0 0.0
    %3024 = vmatpush1.msra.mxu0 0.0
    %3025 = vmatprep.subr.mxu0 0.0
    %3026 = vmatpush1.msra.mxu0 0.0
    %3027 = vmatprep.subr.mxu0 0.0
    %3028 = vmatpush1.msra.mxu0 0.0
    %3029 = vmatprep.subr.mxu0 0.0
    %3030 = vmatpush1.msra.mxu0 0.0
    %3031 = vmatprep.subr.mxu0 0.0
    %3032 = vmatpush1.msra.mxu0 0.0
    %3033 = vmatprep.subr.mxu0 0.0
    %3034 = vmatpush1.msra.mxu0 %v2605
    %3035 = vmatprep.subr.mxu0 0.0
    %3036 = vmatpush1.msra.mxu0 %v2604
    %3037 = vmatprep.subr.mxu0 0.0
    %3038 = vmatpush1.msra.mxu0 %v2603
    %3039 = vmatprep.subr.mxu0 0.0
    %3040 = vmatpush1.msra.mxu0 %v2602
    %3041 = vmatprep.subr.mxu0 0.0
    %3042 = vmatpush2.msra.mxu0 0.0
    %3043 = vmatprep.subr.mxu0 0.0
    %3044 = vmatpush2.msra.mxu0 0.0
    %3045 = vmatprep.subr.mxu0 0.0
    %3046 = vmatpush2.msra.mxu0 0.0
    %3047 = vmatprep.subr.mxu0 0.0
    %3048 = vmatpush2.msra.mxu0 0.0
    %3049 = vmatprep.subr.mxu0 0.0
    %3050 = vmatpush2.msra.mxu0 0.0
    %3051 = vmatprep.subr.mxu0 0.0
    %3052 = vmatpush2.msra.mxu0 0.0
    %3053 = vmatprep.subr.mxu0 0.0
    %3054 = vmatpush2.msra.mxu0 0.0
    %3055 = vmatprep.subr.mxu0 0.0
    %3056 = vmatpush2.msra.mxu0 0.0
    %3057 = vmatprep.subr.mxu0 0.0
    %3058 = vmatpush2.msra.mxu0 0.0
    %3059 = vmatprep.subr.mxu0 0.0
    %3060 = vmatpush2.msra.mxu0 0.0
    %3061 = vmatprep.subr.mxu0 0.0
    %3062 = vmatpush2.msra.mxu0 0.0
    %3063 = vmatprep.subr.mxu0 0.0
    %3064 = vmatpush2.msra.mxu0 0.0
    %3065 = vmatprep.subr.mxu0 0.0
    %3066 = vmatpush2.msra.mxu0 0.0
    %3067 = vmatprep.subr.mxu0 0.0
    %3068 = vmatpush2.msra.mxu0 0.0
    %3069 = vmatprep.subr.mxu0 0.0
    %3070 = vmatpush2.msra.mxu0 0.0
    %3071 = vmatprep.subr.mxu0 0.0
    %3072 = vmatpush2.msra.mxu0 0.0
    %3073 = vmatprep.mubr.f32.mxu0 0.0
    %3074 = vmatmul.mubr.f32.gmra.mxu0 %v3007
    %v3075 = vpop.f32.mrf.mxu0
    %v3076 = vadd.f32 0.0, %v3075
    %v3077 = vpop.f32.mrf.mxu0
    %3078 = vdwg.mxu0
    %v3079 = vadd.f32 %v3003, %v3076
    %v3080 = vld [vmem:[%s1048] sm:$0xff]
    %3082 = vrot.lane.b32.xlu0 %v3002, 32
    %v3083 = vpop.permute.xlu0 %3082
    %v3084 = vsel %vm537, %v3083, 0
    %3086 = vmatprep.subr.mxu0 0.0
    %3087 = vmatpush1.msra.mxu0 0.0
    %3088 = vmatprep.subr.mxu0 0.0
    %3089 = vmatpush1.msra.mxu0 0.0
    %3090 = vmatprep.subr.mxu0 0.0
    %3091 = vmatpush1.msra.mxu0 0.0
    %3092 = vmatprep.subr.mxu0 0.0
    %3093 = vmatpush1.msra.mxu0 0.0
    %3094 = vmatprep.subr.mxu0 0.0
    %3095 = vmatpush1.msra.mxu0 0.0
    %3096 = vmatprep.subr.mxu0 0.0
    %3097 = vmatpush1.msra.mxu0 0.0
    %3098 = vmatprep.subr.mxu0 0.0
    %3099 = vmatpush1.msra.mxu0 0.0
    %3100 = vmatprep.subr.mxu0 0.0
    %3101 = vmatpush1.msra.mxu0 0.0
    %3102 = vmatprep.subr.mxu0 0.0
    %3103 = vmatpush1.msra.mxu0 0.0
    %3104 = vmatprep.subr.mxu0 0.0
    %3105 = vmatpush1.msra.mxu0 0.0
    %3106 = vmatprep.subr.mxu0 0.0
    %3107 = vmatpush1.msra.mxu0 0.0
    %3108 = vmatprep.subr.mxu0 0.0
    %3109 = vmatpush1.msra.mxu0 0.0
    %3110 = vmatprep.subr.mxu0 0.0
    %3111 = vmatpush1.msra.mxu0 %v2681
    %3112 = vmatprep.subr.mxu0 0.0
    %3113 = vmatpush1.msra.mxu0 %v2680
    %3114 = vmatprep.subr.mxu0 0.0
    %3115 = vmatpush1.msra.mxu0 %v2679
    %3116 = vmatprep.subr.mxu0 0.0
    %3117 = vmatpush1.msra.mxu0 %v2678
    %3118 = vmatprep.subr.mxu0 0.0
    %3119 = vmatpush2.msra.mxu0 0.0
    %3120 = vmatprep.subr.mxu0 0.0
    %3121 = vmatpush2.msra.mxu0 0.0
    %3122 = vmatprep.subr.mxu0 0.0
    %3123 = vmatpush2.msra.mxu0 0.0
    %3124 = vmatprep.subr.mxu0 0.0
    %3125 = vmatpush2.msra.mxu0 0.0
    %3126 = vmatprep.subr.mxu0 0.0
    %3127 = vmatpush2.msra.mxu0 0.0
    %3128 = vmatprep.subr.mxu0 0.0
    %3129 = vmatpush2.msra.mxu0 0.0
    %3130 = vmatprep.subr.mxu0 0.0
    %3131 = vmatpush2.msra.mxu0 0.0
    %3132 = vmatprep.subr.mxu0 0.0
    %3133 = vmatpush2.msra.mxu0 0.0
    %3134 = vmatprep.subr.mxu0 0.0
    %3135 = vmatpush2.msra.mxu0 0.0
    %3136 = vmatprep.subr.mxu0 0.0
    %3137 = vmatpush2.msra.mxu0 0.0
    %3138 = vmatprep.subr.mxu0 0.0
    %3139 = vmatpush2.msra.mxu0 0.0
    %3140 = vmatprep.subr.mxu0 0.0
    %3141 = vmatpush2.msra.mxu0 0.0
    %3142 = vmatprep.subr.mxu0 0.0
    %3143 = vmatpush2.msra.mxu0 0.0
    %3144 = vmatprep.subr.mxu0 0.0
    %3145 = vmatpush2.msra.mxu0 0.0
    %3146 = vmatprep.subr.mxu0 0.0
    %3147 = vmatpush2.msra.mxu0 0.0
    %3148 = vmatprep.subr.mxu0 0.0
    %3149 = vmatpush2.msra.mxu0 0.0
    %3150 = vmatprep.mubr.f32.mxu0 0.0
    %3151 = vmatmul.mubr.f32.gmra.mxu0 %v3084
    %v3152 = vpop.f32.mrf.mxu0
    %v3153 = vadd.f32 0.0, %v3152
    %v3154 = vpop.f32.mrf.mxu0
    %3155 = vdwg.mxu0
    %v3156 = vadd.f32 %v3080, %v3153
    %v3157 = vxor.u32 %v3079, 2147483648
    %v3158 = vmul.f32 %v3157, 1.442695
    %v3159 = vpow.pop %v3158
    %v3160 = vadd.f32 %v3159, 1.0
    %v3161 = vrcp.pop %v3160
    %v3162 = vmul.f32 1.0, %v3161
    %v3163 = vtanh.pop %v3079
    %v3164 = vmul.f32 %v3162, %v2972
    %3166 = vrot.lane.b32.xlu0 %v3163, 64
    %v3167 = vpop.permute.xlu0 %3166
    %v3169 = vmul.f32 %v3162, %v3167
    %3171 = vrot.lane.b32.xlu0 %v3169, 32
    %v3172 = vpop.permute.xlu0 %3171
    %v3174 = vadd.f32 %v3164, %v3172
    %v3175 = vtanh.pop %v3174
    %3177 = vrot.lane.b32.xlu0 %v3175, 64
    %v3178 = vpop.permute.xlu0 %3177
    %v3180 = vmul.f32 %v3162, %v3178
    %v3181 = vxor.u32 %v3156, 2147483648
    %v3182 = vmul.f32 %v3181, 1.442695
    %v3183 = vpow.pop %v3182
    %v3184 = vadd.f32 %v3183, 1.0
    %v3185 = vrcp.pop %v3184
    %v3186 = vmul.f32 1.0, %v3185
    %v3187 = vtanh.pop %v3156
    %v3188 = vmul.f32 %v3186, %v2996
    %3190 = vrot.lane.b32.xlu0 %v3187, 64
    %v3191 = vpop.permute.xlu0 %3190
    %v3193 = vmul.f32 %v3186, %v3191
    %3195 = vrot.lane.b32.xlu0 %v3193, 32
    %v3196 = vpop.permute.xlu0 %3195
    %v3198 = vadd.f32 %v3188, %v3196
    %v3199 = vtanh.pop %v3198
    %3201 = vrot.lane.b32.xlu0 %v3199, 64
    %v3202 = vpop.permute.xlu0 %3201
    %v3204 = vmul.f32 %v3186, %v3202
    %v3205 = vld [vmem:[%s1189] sm:$0xff]
    %3207 = vrot.lane.b32.xlu0 %v3180, 32
    %v3208 = vpop.permute.xlu0 %3207
    %v3209 = vsel %vm537, %v3208, 0
    %3211 = vmatprep.subr.mxu0 0.0
    %3212 = vmatpush1.msra.mxu0 0.0
    %3213 = vmatprep.subr.mxu0 0.0
    %3214 = vmatpush1.msra.mxu0 0.0
    %3215 = vmatprep.subr.mxu0 0.0
    %3216 = vmatpush1.msra.mxu0 0.0
    %3217 = vmatprep.subr.mxu0 0.0
    %3218 = vmatpush1.msra.mxu0 0.0
    %3219 = vmatprep.subr.mxu0 0.0
    %3220 = vmatpush1.msra.mxu0 0.0
    %3221 = vmatprep.subr.mxu0 0.0
    %3222 = vmatpush1.msra.mxu0 0.0
    %3223 = vmatprep.subr.mxu0 0.0
    %3224 = vmatpush1.msra.mxu0 0.0
    %3225 = vmatprep.subr.mxu0 0.0
    %3226 = vmatpush1.msra.mxu0 0.0
    %3227 = vmatprep.subr.mxu0 0.0
    %3228 = vmatpush1.msra.mxu0 0.0
    %3229 = vmatprep.subr.mxu0 0.0
    %3230 = vmatpush1.msra.mxu0 0.0
    %3231 = vmatprep.subr.mxu0 0.0
    %3232 = vmatpush1.msra.mxu0 0.0
    %3233 = vmatprep.subr.mxu0 0.0
    %3234 = vmatpush1.msra.mxu0 0.0
    %3235 = vmatprep.subr.mxu0 0.0
    %3236 = vmatpush1.msra.mxu0 %v2605
    %3237 = vmatprep.subr.mxu0 0.0
    %3238 = vmatpush1.msra.mxu0 %v2604
    %3239 = vmatprep.subr.mxu0 0.0
    %3240 = vmatpush1.msra.mxu0 %v2603
    %3241 = vmatprep.subr.mxu0 0.0
    %3242 = vmatpush1.msra.mxu0 %v2602
    %3243 = vmatprep.subr.mxu0 0.0
    %3244 = vmatpush2.msra.mxu0 0.0
    %3245 = vmatprep.subr.mxu0 0.0
    %3246 = vmatpush2.msra.mxu0 0.0
    %3247 = vmatprep.subr.mxu0 0.0
    %3248 = vmatpush2.msra.mxu0 0.0
    %3249 = vmatprep.subr.mxu0 0.0
    %3250 = vmatpush2.msra.mxu0 0.0
    %3251 = vmatprep.subr.mxu0 0.0
    %3252 = vmatpush2.msra.mxu0 0.0
    %3253 = vmatprep.subr.mxu0 0.0
    %3254 = vmatpush2.msra.mxu0 0.0
    %3255 = vmatprep.subr.mxu0 0.0
    %3256 = vmatpush2.msra.mxu0 0.0
    %3257 = vmatprep.subr.mxu0 0.0
    %3258 = vmatpush2.msra.mxu0 0.0
    %3259 = vmatprep.subr.mxu0 0.0
    %3260 = vmatpush2.msra.mxu0 0.0
    %3261 = vmatprep.subr.mxu0 0.0
    %3262 = vmatpush2.msra.mxu0 0.0
    %3263 = vmatprep.subr.mxu0 0.0
    %3264 = vmatpush2.msra.mxu0 0.0
    %3265 = vmatprep.subr.mxu0 0.0
    %3266 = vmatpush2.msra.mxu0 0.0
    %3267 = vmatprep.subr.mxu0 0.0
    %3268 = vmatpush2.msra.mxu0 0.0
    %3269 = vmatprep.subr.mxu0 0.0
    %3270 = vmatpush2.msra.mxu0 0.0
    %3271 = vmatprep.subr.mxu0 0.0
    %3272 = vmatpush2.msra.mxu0 0.0
    %3273 = vmatprep.subr.mxu0 0.0
    %3274 = vmatpush2.msra.mxu0 0.0
    %3275 = vmatprep.mubr.f32.mxu0 0.0
    %3276 = vmatmul.mubr.f32.gmra.mxu0 %v3209
    %v3277 = vpop.f32.mrf.mxu0
    %v3278 = vadd.f32 0.0, %v3277
    %v3279 = vpop.f32.mrf.mxu0
    %3280 = vdwg.mxu0
    %v3281 = vadd.f32 %v3205, %v3278
    %v3282 = vld [vmem:[%s1268] sm:$0xff]
    %3284 = vrot.lane.b32.xlu0 %v3204, 32
    %v3285 = vpop.permute.xlu0 %3284
    %v3286 = vsel %vm537, %v3285, 0
    %3288 = vmatprep.subr.mxu0 0.0
    %3289 = vmatpush1.msra.mxu0 0.0
    %3290 = vmatprep.subr.mxu0 0.0
    %3291 = vmatpush1.msra.mxu0 0.0
    %3292 = vmatprep.subr.mxu0 0.0
    %3293 = vmatpush1.msra.mxu0 0.0
    %3294 = vmatprep.subr.mxu0 0.0
    %3295 = vmatpush1.msra.mxu0 0.0
    %3296 = vmatprep.subr.mxu0 0.0
    %3297 = vmatpush1.msra.mxu0 0.0
    %3298 = vmatprep.subr.mxu0 0.0
    %3299 = vmatpush1.msra.mxu0 0.0
    %3300 = vmatprep.subr.mxu0 0.0
    %3301 = vmatpush1.msra.mxu0 0.0
    %3302 = vmatprep.subr.mxu0 0.0
    %3303 = vmatpush1.msra.mxu0 0.0
    %3304 = vmatprep.subr.mxu0 0.0
    %3305 = vmatpush1.msra.mxu0 0.0
    %3306 = vmatprep.subr.mxu0 0.0
    %3307 = vmatpush1.msra.mxu0 0.0
    %3308 = vmatprep.subr.mxu0 0.0
    %3309 = vmatpush1.msra.mxu0 0.0
    %3310 = vmatprep.subr.mxu0 0.0
    %3311 = vmatpush1.msra.mxu0 0.0
    %3312 = vmatprep.subr.mxu0 0.0
    %3313 = vmatpush1.msra.mxu0 %v2681
    %3314 = vmatprep.subr.mxu0 0.0
    %3315 = vmatpush1.msra.mxu0 %v2680
    %3316 = vmatprep.subr.mxu0 0.0
    %3317 = vmatpush1.msra.mxu0 %v2679
    %3318 = vmatprep.subr.mxu0 0.0
    %3319 = vmatpush1.msra.mxu0 %v2678
    %3320 = vmatprep.subr.mxu0 0.0
    %3321 = vmatpush2.msra.mxu0 0.0
    %3322 = vmatprep.subr.mxu0 0.0
    %3323 = vmatpush2.msra.mxu0 0.0
    %3324 = vmatprep.subr.mxu0 0.0
    %3325 = vmatpush2.msra.mxu0 0.0
    %3326 = vmatprep.subr.mxu0 0.0
    %3327 = vmatpush2.msra.mxu0 0.0
    %3328 = vmatprep.subr.mxu0 0.0
    %3329 = vmatpush2.msra.mxu0 0.0
    %3330 = vmatprep.subr.mxu0 0.0
    %3331 = vmatpush2.msra.mxu0 0.0
    %3332 = vmatprep.subr.mxu0 0.0
    %3333 = vmatpush2.msra.mxu0 0.0
    %3334 = vmatprep.subr.mxu0 0.0
    %3335 = vmatpush2.msra.mxu0 0.0
    %3336 = vmatprep.subr.mxu0 0.0
    %3337 = vmatpush2.msra.mxu0 0.0
    %3338 = vmatprep.subr.mxu0 0.0
    %3339 = vmatpush2.msra.mxu0 0.0
    %3340 = vmatprep.subr.mxu0 0.0
    %3341 = vmatpush2.msra.mxu0 0.0
    %3342 = vmatprep.subr.mxu0 0.0
    %3343 = vmatpush2.msra.mxu0 0.0
    %3344 = vmatprep.subr.mxu0 0.0
    %3345 = vmatpush2.msra.mxu0 0.0
    %3346 = vmatprep.subr.mxu0 0.0
    %3347 = vmatpush2.msra.mxu0 0.0
    %3348 = vmatprep.subr.mxu0 0.0
    %3349 = vmatpush2.msra.mxu0 0.0
    %3350 = vmatprep.subr.mxu0 0.0
    %3351 = vmatpush2.msra.mxu0 0.0
    %3352 = vmatprep.mubr.f32.mxu0 0.0
    %3353 = vmatmul.mubr.f32.gmra.mxu0 %v3286
    %v3354 = vpop.f32.mrf.mxu0
    %v3355 = vadd.f32 0.0, %v3354
    %v3356 = vpop.f32.mrf.mxu0
    %3357 = vdwg.mxu0
    %v3358 = vadd.f32 %v3282, %v3355
    %v3359 = vxor.u32 %v3281, 2147483648
    %v3360 = vmul.f32 %v3359, 1.442695
    %v3361 = vpow.pop %v3360
    %v3362 = vadd.f32 %v3361, 1.0
    %v3363 = vrcp.pop %v3362
    %v3364 = vmul.f32 1.0, %v3363
    %v3365 = vtanh.pop %v3281
    %v3366 = vmul.f32 %v3364, %v3174
    %3368 = vrot.lane.b32.xlu0 %v3365, 64
    %v3369 = vpop.permute.xlu0 %3368
    %v3371 = vmul.f32 %v3364, %v3369
    %3373 = vrot.lane.b32.xlu0 %v3371, 32
    %v3374 = vpop.permute.xlu0 %3373
    %v3376 = vadd.f32 %v3366, %v3374
    %v3377 = vtanh.pop %v3376
    %3379 = vrot.lane.b32.xlu0 %v3377, 64
    %v3380 = vpop.permute.xlu0 %3379
    %v3382 = vmul.f32 %v3364, %v3380
    %v3383 = vxor.u32 %v3358, 2147483648
    %v3384 = vmul.f32 %v3383, 1.442695
    %v3385 = vpow.pop %v3384
    %v3386 = vadd.f32 %v3385, 1.0
    %v3387 = vrcp.pop %v3386
    %v3388 = vmul.f32 1.0, %v3387
    %v3389 = vtanh.pop %v3358
    %v3390 = vmul.f32 %v3388, %v3198
    %3392 = vrot.lane.b32.xlu0 %v3389, 64
    %v3393 = vpop.permute.xlu0 %3392
    %v3395 = vmul.f32 %v3388, %v3393
    %3397 = vrot.lane.b32.xlu0 %v3395, 32
    %v3398 = vpop.permute.xlu0 %3397
    %v3400 = vadd.f32 %v3390, %v3398
    %v3401 = vtanh.pop %v3400
    %3403 = vrot.lane.b32.xlu0 %v3401, 64
    %v3404 = vpop.permute.xlu0 %3403
    %v3406 = vmul.f32 %v3388, %v3404
    %v3407 = vld [vmem:[%s1409] sm:$0xff]
    %3409 = vrot.lane.b32.xlu0 %v3382, 32
    %v3410 = vpop.permute.xlu0 %3409
    %v3411 = vsel %vm537, %v3410, 0
    %3413 = vmatprep.subr.mxu0 0.0
    %3414 = vmatpush1.msra.mxu0 0.0
    %3415 = vmatprep.subr.mxu0 0.0
    %3416 = vmatpush1.msra.mxu0 0.0
    %3417 = vmatprep.subr.mxu0 0.0
    %3418 = vmatpush1.msra.mxu0 0.0
    %3419 = vmatprep.subr.mxu0 0.0
    %3420 = vmatpush1.msra.mxu0 0.0
    %3421 = vmatprep.subr.mxu0 0.0
    %3422 = vmatpush1.msra.mxu0 0.0
    %3423 = vmatprep.subr.mxu0 0.0
    %3424 = vmatpush1.msra.mxu0 0.0
    %3425 = vmatprep.subr.mxu0 0.0
    %3426 = vmatpush1.msra.mxu0 0.0
    %3427 = vmatprep.subr.mxu0 0.0
    %3428 = vmatpush1.msra.mxu0 0.0
    %3429 = vmatprep.subr.mxu0 0.0
    %3430 = vmatpush1.msra.mxu0 0.0
    %3431 = vmatprep.subr.mxu0 0.0
    %3432 = vmatpush1.msra.mxu0 0.0
    %3433 = vmatprep.subr.mxu0 0.0
    %3434 = vmatpush1.msra.mxu0 0.0
    %3435 = vmatprep.subr.mxu0 0.0
    %3436 = vmatpush1.msra.mxu0 0.0
    %3437 = vmatprep.subr.mxu0 0.0
    %3438 = vmatpush1.msra.mxu0 %v2605
    %3439 = vmatprep.subr.mxu0 0.0
    %3440 = vmatpush1.msra.mxu0 %v2604
    %3441 = vmatprep.subr.mxu0 0.0
    %3442 = vmatpush1.msra.mxu0 %v2603
    %3443 = vmatprep.subr.mxu0 0.0
    %3444 = vmatpush1.msra.mxu0 %v2602
    %3445 = vmatprep.subr.mxu0 0.0
    %3446 = vmatpush2.msra.mxu0 0.0
    %3447 = vmatprep.subr.mxu0 0.0
    %3448 = vmatpush2.msra.mxu0 0.0
    %3449 = vmatprep.subr.mxu0 0.0
    %3450 = vmatpush2.msra.mxu0 0.0
    %3451 = vmatprep.subr.mxu0 0.0
    %3452 = vmatpush2.msra.mxu0 0.0
    %3453 = vmatprep.subr.mxu0 0.0
    %3454 = vmatpush2.msra.mxu0 0.0
    %3455 = vmatprep.subr.mxu0 0.0
    %3456 = vmatpush2.msra.mxu0 0.0
    %3457 = vmatprep.subr.mxu0 0.0
    %3458 = vmatpush2.msra.mxu0 0.0
    %3459 = vmatprep.subr.mxu0 0.0
    %3460 = vmatpush2.msra.mxu0 0.0
    %3461 = vmatprep.subr.mxu0 0.0
    %3462 = vmatpush2.msra.mxu0 0.0
    %3463 = vmatprep.subr.mxu0 0.0
    %3464 = vmatpush2.msra.mxu0 0.0
    %3465 = vmatprep.subr.mxu0 0.0
    %3466 = vmatpush2.msra.mxu0 0.0
    %3467 = vmatprep.subr.mxu0 0.0
    %3468 = vmatpush2.msra.mxu0 0.0
    %3469 = vmatprep.subr.mxu0 0.0
    %3470 = vmatpush2.msra.mxu0 0.0
    %3471 = vmatprep.subr.mxu0 0.0
    %3472 = vmatpush2.msra.mxu0 0.0
    %3473 = vmatprep.subr.mxu0 0.0
    %3474 = vmatpush2.msra.mxu0 0.0
    %3475 = vmatprep.subr.mxu0 0.0
    %3476 = vmatpush2.msra.mxu0 0.0
    %3477 = vmatprep.mubr.f32.mxu0 0.0
    %3478 = vmatmul.mubr.f32.gmra.mxu0 %v3411
    %v3479 = vpop.f32.mrf.mxu0
    %v3480 = vadd.f32 0.0, %v3479
    %v3481 = vpop.f32.mrf.mxu0
    %3482 = vdwg.mxu0
    %v3483 = vadd.f32 %v3407, %v3480
    %v3484 = vld [vmem:[%s1488] sm:$0xff]
    %3486 = vrot.lane.b32.xlu0 %v3406, 32
    %v3487 = vpop.permute.xlu0 %3486
    %v3488 = vsel %vm537, %v3487, 0
    %3490 = vmatprep.subr.mxu0 0.0
    %3491 = vmatpush1.msra.mxu0 0.0
    %3492 = vmatprep.subr.mxu0 0.0
    %3493 = vmatpush1.msra.mxu0 0.0
    %3494 = vmatprep.subr.mxu0 0.0
    %3495 = vmatpush1.msra.mxu0 0.0
    %3496 = vmatprep.subr.mxu0 0.0
    %3497 = vmatpush1.msra.mxu0 0.0
    %3498 = vmatprep.subr.mxu0 0.0
    %3499 = vmatpush1.msra.mxu0 0.0
    %3500 = vmatprep.subr.mxu0 0.0
    %3501 = vmatpush1.msra.mxu0 0.0
    %3502 = vmatprep.subr.mxu0 0.0
    %3503 = vmatpush1.msra.mxu0 0.0
    %3504 = vmatprep.subr.mxu0 0.0
    %3505 = vmatpush1.msra.mxu0 0.0
    %3506 = vmatprep.subr.mxu0 0.0
    %3507 = vmatpush1.msra.mxu0 0.0
    %3508 = vmatprep.subr.mxu0 0.0
    %3509 = vmatpush1.msra.mxu0 0.0
    %3510 = vmatprep.subr.mxu0 0.0
    %3511 = vmatpush1.msra.mxu0 0.0
    %3512 = vmatprep.subr.mxu0 0.0
    %3513 = vmatpush1.msra.mxu0 0.0
    %3514 = vmatprep.subr.mxu0 0.0
    %3515 = vmatpush1.msra.mxu0 %v2681
    %3516 = vmatprep.subr.mxu0 0.0
    %3517 = vmatpush1.msra.mxu0 %v2680
    %3518 = vmatprep.subr.mxu0 0.0
    %3519 = vmatpush1.msra.mxu0 %v2679
    %3520 = vmatprep.subr.mxu0 0.0
    %3521 = vmatpush1.msra.mxu0 %v2678
    %3522 = vmatprep.subr.mxu0 0.0
    %3523 = vmatpush2.msra.mxu0 0.0
    %3524 = vmatprep.subr.mxu0 0.0
    %3525 = vmatpush2.msra.mxu0 0.0
    %3526 = vmatprep.subr.mxu0 0.0
    %3527 = vmatpush2.msra.mxu0 0.0
    %3528 = vmatprep.subr.mxu0 0.0
    %3529 = vmatpush2.msra.mxu0 0.0
    %3530 = vmatprep.subr.mxu0 0.0
    %3531 = vmatpush2.msra.mxu0 0.0
    %3532 = vmatprep.subr.mxu0 0.0
    %3533 = vmatpush2.msra.mxu0 0.0
    %3534 = vmatprep.subr.mxu0 0.0
    %3535 = vmatpush2.msra.mxu0 0.0
    %3536 = vmatprep.subr.mxu0 0.0
    %3537 = vmatpush2.msra.mxu0 0.0
    %3538 = vmatprep.subr.mxu0 0.0
    %3539 = vmatpush2.msra.mxu0 0.0
    %3540 = vmatprep.subr.mxu0 0.0
    %3541 = vmatpush2.msra.mxu0 0.0
    %3542 = vmatprep.subr.mxu0 0.0
    %3543 = vmatpush2.msra.mxu0 0.0
    %3544 = vmatprep.subr.mxu0 0.0
    %3545 = vmatpush2.msra.mxu0 0.0
    %3546 = vmatprep.subr.mxu0 0.0
    %3547 = vmatpush2.msra.mxu0 0.0
    %3548 = vmatprep.subr.mxu0 0.0
    %3549 = vmatpush2.msra.mxu0 0.0
    %3550 = vmatprep.subr.mxu0 0.0
    %3551 = vmatpush2.msra.mxu0 0.0
    %3552 = vmatprep.subr.mxu0 0.0
    %3553 = vmatpush2.msra.mxu0 0.0
    %3554 = vmatprep.mubr.f32.mxu0 0.0
    %3555 = vmatmul.mubr.f32.gmra.mxu0 %v3488
    %v3556 = vpop.f32.mrf.mxu0
    %v3557 = vadd.f32 0.0, %v3556
    %v3558 = vpop.f32.mrf.mxu0
    %3559 = vdwg.mxu0
    %v3560 = vadd.f32 %v3484, %v3557
    %v3561 = vxor.u32 %v3483, 2147483648
    %v3562 = vmul.f32 %v3561, 1.442695
    %v3563 = vpow.pop %v3562
    %v3564 = vadd.f32 %v3563, 1.0
    %v3565 = vrcp.pop %v3564
    %v3566 = vmul.f32 1.0, %v3565
    %v3567 = vtanh.pop %v3483
    %v3568 = vmul.f32 %v3566, %v3376
    %3570 = vrot.lane.b32.xlu0 %v3567, 64
    %v3571 = vpop.permute.xlu0 %3570
    %v3573 = vmul.f32 %v3566, %v3571
    %3575 = vrot.lane.b32.xlu0 %v3573, 32
    %v3576 = vpop.permute.xlu0 %3575
    %v3578 = vadd.f32 %v3568, %v3576
    %v3579 = vtanh.pop %v3578
    %3581 = vrot.lane.b32.xlu0 %v3579, 64
    %v3582 = vpop.permute.xlu0 %3581
    %v3584 = vmul.f32 %v3566, %v3582
    %v3585 = vxor.u32 %v3560, 2147483648
    %v3586 = vmul.f32 %v3585, 1.442695
    %v3587 = vpow.pop %v3586
    %v3588 = vadd.f32 %v3587, 1.0
    %v3589 = vrcp.pop %v3588
    %v3590 = vmul.f32 1.0, %v3589
    %v3591 = vtanh.pop %v3560
    %v3592 = vmul.f32 %v3590, %v3400
    %3594 = vrot.lane.b32.xlu0 %v3591, 64
    %v3595 = vpop.permute.xlu0 %3594
    %v3597 = vmul.f32 %v3590, %v3595
    %3599 = vrot.lane.b32.xlu0 %v3597, 32
    %v3600 = vpop.permute.xlu0 %3599
    %v3602 = vadd.f32 %v3592, %v3600
    %v3603 = vtanh.pop %v3602
    %3605 = vrot.lane.b32.xlu0 %v3603, 64
    %v3606 = vpop.permute.xlu0 %3605
    %v3608 = vmul.f32 %v3590, %v3606
    %v3609 = vld [vmem:[%s1627] sm:$0xff]
    %3611 = vrot.lane.b32.xlu0 %v3584, 32
    %v3612 = vpop.permute.xlu0 %3611
    %v3613 = vsel %vm537, %v3612, 0
    %3615 = vmatprep.subr.mxu0 0.0
    %3616 = vmatpush1.msra.mxu0 0.0
    %3617 = vmatprep.subr.mxu0 0.0
    %3618 = vmatpush1.msra.mxu0 0.0
    %3619 = vmatprep.subr.mxu0 0.0
    %3620 = vmatpush1.msra.mxu0 0.0
    %3621 = vmatprep.subr.mxu0 0.0
    %3622 = vmatpush1.msra.mxu0 0.0
    %3623 = vmatprep.subr.mxu0 0.0
    %3624 = vmatpush1.msra.mxu0 0.0
    %3625 = vmatprep.subr.mxu0 0.0
    %3626 = vmatpush1.msra.mxu0 0.0
    %3627 = vmatprep.subr.mxu0 0.0
    %3628 = vmatpush1.msra.mxu0 0.0
    %3629 = vmatprep.subr.mxu0 0.0
    %3630 = vmatpush1.msra.mxu0 0.0
    %3631 = vmatprep.subr.mxu0 0.0
    %3632 = vmatpush1.msra.mxu0 0.0
    %3633 = vmatprep.subr.mxu0 0.0
    %3634 = vmatpush1.msra.mxu0 0.0
    %3635 = vmatprep.subr.mxu0 0.0
    %3636 = vmatpush1.msra.mxu0 0.0
    %3637 = vmatprep.subr.mxu0 0.0
    %3638 = vmatpush1.msra.mxu0 0.0
    %3639 = vmatprep.subr.mxu0 0.0
    %3640 = vmatpush1.msra.mxu0 %v2605
    %3641 = vmatprep.subr.mxu0 0.0
    %3642 = vmatpush1.msra.mxu0 %v2604
    %3643 = vmatprep.subr.mxu0 0.0
    %3644 = vmatpush1.msra.mxu0 %v2603
    %3645 = vmatprep.subr.mxu0 0.0
    %3646 = vmatpush1.msra.mxu0 %v2602
    %3647 = vmatprep.subr.mxu0 0.0
    %3648 = vmatpush2.msra.mxu0 0.0
    %3649 = vmatprep.subr.mxu0 0.0
    %3650 = vmatpush2.msra.mxu0 0.0
    %3651 = vmatprep.subr.mxu0 0.0
    %3652 = vmatpush2.msra.mxu0 0.0
    %3653 = vmatprep.subr.mxu0 0.0
    %3654 = vmatpush2.msra.mxu0 0.0
    %3655 = vmatprep.subr.mxu0 0.0
    %3656 = vmatpush2.msra.mxu0 0.0
    %3657 = vmatprep.subr.mxu0 0.0
    %3658 = vmatpush2.msra.mxu0 0.0
    %3659 = vmatprep.subr.mxu0 0.0
    %3660 = vmatpush2.msra.mxu0 0.0
    %3661 = vmatprep.subr.mxu0 0.0
    %3662 = vmatpush2.msra.mxu0 0.0
    %3663 = vmatprep.subr.mxu0 0.0
    %3664 = vmatpush2.msra.mxu0 0.0
    %3665 = vmatprep.subr.mxu0 0.0
    %3666 = vmatpush2.msra.mxu0 0.0
    %3667 = vmatprep.subr.mxu0 0.0
    %3668 = vmatpush2.msra.mxu0 0.0
    %3669 = vmatprep.subr.mxu0 0.0
    %3670 = vmatpush2.msra.mxu0 0.0
    %3671 = vmatprep.subr.mxu0 0.0
    %3672 = vmatpush2.msra.mxu0 0.0
    %3673 = vmatprep.subr.mxu0 0.0
    %3674 = vmatpush2.msra.mxu0 0.0
    %3675 = vmatprep.subr.mxu0 0.0
    %3676 = vmatpush2.msra.mxu0 0.0
    %3677 = vmatprep.subr.mxu0 0.0
    %3678 = vmatpush2.msra.mxu0 0.0
    %3679 = vmatprep.mubr.f32.mxu0 0.0
    %3680 = vmatmul.mubr.f32.gmra.mxu0 %v3613
    %v3681 = vpop.f32.mrf.mxu0
    %v3682 = vadd.f32 0.0, %v3681
    %v3683 = vpop.f32.mrf.mxu0
    %3684 = vdwg.mxu0
    %v3685 = vadd.f32 %v3609, %v3682
    %v3686 = vld [vmem:[%s1706] sm:$0xff]
    %3688 = vrot.lane.b32.xlu0 %v3608, 32
    %v3689 = vpop.permute.xlu0 %3688
    %v3690 = vsel %vm537, %v3689, 0
    %3692 = vmatprep.subr.mxu0 0.0
    %3693 = vmatpush1.msra.mxu0 0.0
    %3694 = vmatprep.subr.mxu0 0.0
    %3695 = vmatpush1.msra.mxu0 0.0
    %3696 = vmatprep.subr.mxu0 0.0
    %3697 = vmatpush1.msra.mxu0 0.0
    %3698 = vmatprep.subr.mxu0 0.0
    %3699 = vmatpush1.msra.mxu0 0.0
    %3700 = vmatprep.subr.mxu0 0.0
    %3701 = vmatpush1.msra.mxu0 0.0
    %3702 = vmatprep.subr.mxu0 0.0
    %3703 = vmatpush1.msra.mxu0 0.0
    %3704 = vmatprep.subr.mxu0 0.0
    %3705 = vmatpush1.msra.mxu0 0.0
    %3706 = vmatprep.subr.mxu0 0.0
    %3707 = vmatpush1.msra.mxu0 0.0
    %3708 = vmatprep.subr.mxu0 0.0
    %3709 = vmatpush1.msra.mxu0 0.0
    %3710 = vmatprep.subr.mxu0 0.0
    %3711 = vmatpush1.msra.mxu0 0.0
    %3712 = vmatprep.subr.mxu0 0.0
    %3713 = vmatpush1.msra.mxu0 0.0
    %3714 = vmatprep.subr.mxu0 0.0
    %3715 = vmatpush1.msra.mxu0 0.0
    %3716 = vmatprep.subr.mxu0 0.0
    %3717 = vmatpush1.msra.mxu0 %v2681
    %3718 = vmatprep.subr.mxu0 0.0
    %3719 = vmatpush1.msra.mxu0 %v2680
    %3720 = vmatprep.subr.mxu0 0.0
    %3721 = vmatpush1.msra.mxu0 %v2679
    %3722 = vmatprep.subr.mxu0 0.0
    %3723 = vmatpush1.msra.mxu0 %v2678
    %3724 = vmatprep.subr.mxu0 0.0
    %3725 = vmatpush2.msra.mxu0 0.0
    %3726 = vmatprep.subr.mxu0 0.0
    %3727 = vmatpush2.msra.mxu0 0.0
    %3728 = vmatprep.subr.mxu0 0.0
    %3729 = vmatpush2.msra.mxu0 0.0
    %3730 = vmatprep.subr.mxu0 0.0
    %3731 = vmatpush2.msra.mxu0 0.0
    %3732 = vmatprep.subr.mxu0 0.0
    %3733 = vmatpush2.msra.mxu0 0.0
    %3734 = vmatprep.subr.mxu0 0.0
    %3735 = vmatpush2.msra.mxu0 0.0
    %3736 = vmatprep.subr.mxu0 0.0
    %3737 = vmatpush2.msra.mxu0 0.0
    %3738 = vmatprep.subr.mxu0 0.0
    %3739 = vmatpush2.msra.mxu0 0.0
    %3740 = vmatprep.subr.mxu0 0.0
    %3741 = vmatpush2.msra.mxu0 0.0
    %3742 = vmatprep.subr.mxu0 0.0
    %3743 = vmatpush2.msra.mxu0 0.0
    %3744 = vmatprep.subr.mxu0 0.0
    %3745 = vmatpush2.msra.mxu0 0.0
    %3746 = vmatprep.subr.mxu0 0.0
    %3747 = vmatpush2.msra.mxu0 0.0
    %3748 = vmatprep.subr.mxu0 0.0
    %3749 = vmatpush2.msra.mxu0 0.0
    %3750 = vmatprep.subr.mxu0 0.0
    %3751 = vmatpush2.msra.mxu0 0.0
    %3752 = vmatprep.subr.mxu0 0.0
    %3753 = vmatpush2.msra.mxu0 0.0
    %3754 = vmatprep.subr.mxu0 0.0
    %3755 = vmatpush2.msra.mxu0 0.0
    %3756 = vmatprep.mubr.f32.mxu0 0.0
    %3757 = vmatmul.mubr.f32.gmra.mxu0 %v3690
    %v3758 = vpop.f32.mrf.mxu0
    %v3759 = vadd.f32 0.0, %v3758
    %v3760 = vpop.f32.mrf.mxu0
    %3761 = vdwg.mxu0
    %v3762 = vadd.f32 %v3686, %v3759
    %v3763 = vxor.u32 %v3685, 2147483648
    %v3764 = vmul.f32 %v3763, 1.442695
    %v3765 = vpow.pop %v3764
    %v3766 = vadd.f32 %v3765, 1.0
    %v3767 = vrcp.pop %v3766
    %v3768 = vmul.f32 1.0, %v3767
    %v3769 = vtanh.pop %v3685
    %v3770 = vmul.f32 %v3768, %v3578
    %3772 = vrot.lane.b32.xlu0 %v3769, 64
    %v3773 = vpop.permute.xlu0 %3772
    %v3775 = vmul.f32 %v3768, %v3773
    %3777 = vrot.lane.b32.xlu0 %v3775, 32
    %v3778 = vpop.permute.xlu0 %3777
    %v3780 = vadd.f32 %v3770, %v3778
    %v3781 = vtanh.pop %v3780
    %3783 = vrot.lane.b32.xlu0 %v3781, 64
    %v3784 = vpop.permute.xlu0 %3783
    %v3786 = vmul.f32 %v3768, %v3784
    %v3787 = vxor.u32 %v3762, 2147483648
    %v3788 = vmul.f32 %v3787, 1.442695
    %v3789 = vpow.pop %v3788
    %v3790 = vadd.f32 %v3789, 1.0
    %v3791 = vrcp.pop %v3790
    %v3792 = vmul.f32 1.0, %v3791
    %v3793 = vtanh.pop %v3762
    %v3794 = vmul.f32 %v3792, %v3602
    %3796 = vrot.lane.b32.xlu0 %v3793, 64
    %v3797 = vpop.permute.xlu0 %3796
    %v3799 = vmul.f32 %v3792, %v3797
    %3801 = vrot.lane.b32.xlu0 %v3799, 32
    %v3802 = vpop.permute.xlu0 %3801
    %v3804 = vadd.f32 %v3794, %v3802
    %v3805 = vtanh.pop %v3804
    %3807 = vrot.lane.b32.xlu0 %v3805, 64
    %v3808 = vpop.permute.xlu0 %3807
    %v3810 = vmul.f32 %v3792, %v3808
    %v3811 = vld [vmem:[%s1845] sm:$0xff]
    %3813 = vrot.lane.b32.xlu0 %v3786, 32
    %v3814 = vpop.permute.xlu0 %3813
    %v3815 = vsel %vm537, %v3814, 0
    %3817 = vmatprep.subr.mxu0 0.0
    %3818 = vmatpush1.msra.mxu0 0.0
    %3819 = vmatprep.subr.mxu0 0.0
    %3820 = vmatpush1.msra.mxu0 0.0
    %3821 = vmatprep.subr.mxu0 0.0
    %3822 = vmatpush1.msra.mxu0 0.0
    %3823 = vmatprep.subr.mxu0 0.0
    %3824 = vmatpush1.msra.mxu0 0.0
    %3825 = vmatprep.subr.mxu0 0.0
    %3826 = vmatpush1.msra.mxu0 0.0
    %3827 = vmatprep.subr.mxu0 0.0
    %3828 = vmatpush1.msra.mxu0 0.0
    %3829 = vmatprep.subr.mxu0 0.0
    %3830 = vmatpush1.msra.mxu0 0.0
    %3831 = vmatprep.subr.mxu0 0.0
    %3832 = vmatpush1.msra.mxu0 0.0
    %3833 = vmatprep.subr.mxu0 0.0
    %3834 = vmatpush1.msra.mxu0 0.0
    %3835 = vmatprep.subr.mxu0 0.0
    %3836 = vmatpush1.msra.mxu0 0.0
    %3837 = vmatprep.subr.mxu0 0.0
    %3838 = vmatpush1.msra.mxu0 0.0
    %3839 = vmatprep.subr.mxu0 0.0
    %3840 = vmatpush1.msra.mxu0 0.0
    %3841 = vmatprep.subr.mxu0 0.0
    %3842 = vmatpush1.msra.mxu0 %v2605
    %3843 = vmatprep.subr.mxu0 0.0
    %3844 = vmatpush1.msra.mxu0 %v2604
    %3845 = vmatprep.subr.mxu0 0.0
    %3846 = vmatpush1.msra.mxu0 %v2603
    %3847 = vmatprep.subr.mxu0 0.0
    %3848 = vmatpush1.msra.mxu0 %v2602
    %3849 = vmatprep.subr.mxu0 0.0
    %3850 = vmatpush2.msra.mxu0 0.0
    %3851 = vmatprep.subr.mxu0 0.0
    %3852 = vmatpush2.msra.mxu0 0.0
    %3853 = vmatprep.subr.mxu0 0.0
    %3854 = vmatpush2.msra.mxu0 0.0
    %3855 = vmatprep.subr.mxu0 0.0
    %3856 = vmatpush2.msra.mxu0 0.0
    %3857 = vmatprep.subr.mxu0 0.0
    %3858 = vmatpush2.msra.mxu0 0.0
    %3859 = vmatprep.subr.mxu0 0.0
    %3860 = vmatpush2.msra.mxu0 0.0
    %3861 = vmatprep.subr.mxu0 0.0
    %3862 = vmatpush2.msra.mxu0 0.0
    %3863 = vmatprep.subr.mxu0 0.0
    %3864 = vmatpush2.msra.mxu0 0.0
    %3865 = vmatprep.subr.mxu0 0.0
    %3866 = vmatpush2.msra.mxu0 0.0
    %3867 = vmatprep.subr.mxu0 0.0
    %3868 = vmatpush2.msra.mxu0 0.0
    %3869 = vmatprep.subr.mxu0 0.0
    %3870 = vmatpush2.msra.mxu0 0.0
    %3871 = vmatprep.subr.mxu0 0.0
    %3872 = vmatpush2.msra.mxu0 0.0
    %3873 = vmatprep.subr.mxu0 0.0
    %3874 = vmatpush2.msra.mxu0 0.0
    %3875 = vmatprep.subr.mxu0 0.0
    %3876 = vmatpush2.msra.mxu0 0.0
    %3877 = vmatprep.subr.mxu0 0.0
    %3878 = vmatpush2.msra.mxu0 0.0
    %3879 = vmatprep.subr.mxu0 0.0
    %3880 = vmatpush2.msra.mxu0 0.0
    %3881 = vmatprep.mubr.f32.mxu0 0.0
    %3882 = vmatmul.mubr.f32.gmra.mxu0 %v3815
    %v3883 = vpop.f32.mrf.mxu0
    %v3884 = vadd.f32 0.0, %v3883
    %v3885 = vpop.f32.mrf.mxu0
    %3886 = vdwg.mxu0
    %v3887 = vadd.f32 %v3811, %v3884
    %v3888 = vld [vmem:[%s1924] sm:$0xff]
    %3890 = vrot.lane.b32.xlu0 %v3810, 32
    %v3891 = vpop.permute.xlu0 %3890
    %v3892 = vsel %vm537, %v3891, 0
    %3894 = vmatprep.subr.mxu0 0.0
    %3895 = vmatpush1.msra.mxu0 0.0
    %3896 = vmatprep.subr.mxu0 0.0
    %3897 = vmatpush1.msra.mxu0 0.0
    %3898 = vmatprep.subr.mxu0 0.0
    %3899 = vmatpush1.msra.mxu0 0.0
    %3900 = vmatprep.subr.mxu0 0.0
    %3901 = vmatpush1.msra.mxu0 0.0
    %3902 = vmatprep.subr.mxu0 0.0
    %3903 = vmatpush1.msra.mxu0 0.0
    %3904 = vmatprep.subr.mxu0 0.0
    %3905 = vmatpush1.msra.mxu0 0.0
    %3906 = vmatprep.subr.mxu0 0.0
    %3907 = vmatpush1.msra.mxu0 0.0
    %3908 = vmatprep.subr.mxu0 0.0
    %3909 = vmatpush1.msra.mxu0 0.0
    %3910 = vmatprep.subr.mxu0 0.0
    %3911 = vmatpush1.msra.mxu0 0.0
    %3912 = vmatprep.subr.mxu0 0.0
    %3913 = vmatpush1.msra.mxu0 0.0
    %3914 = vmatprep.subr.mxu0 0.0
    %3915 = vmatpush1.msra.mxu0 0.0
    %3916 = vmatprep.subr.mxu0 0.0
    %3917 = vmatpush1.msra.mxu0 0.0
    %3918 = vmatprep.subr.mxu0 0.0
    %3919 = vmatpush1.msra.mxu0 %v2681
    %3920 = vmatprep.subr.mxu0 0.0
    %3921 = vmatpush1.msra.mxu0 %v2680
    %3922 = vmatprep.subr.mxu0 0.0
    %3923 = vmatpush1.msra.mxu0 %v2679
    %3924 = vmatprep.subr.mxu0 0.0
    %3925 = vmatpush1.msra.mxu0 %v2678
    %3926 = vmatprep.subr.mxu0 0.0
    %3927 = vmatpush2.msra.mxu0 0.0
    %3928 = vmatprep.subr.mxu0 0.0
    %3929 = vmatpush2.msra.mxu0 0.0
    %3930 = vmatprep.subr.mxu0 0.0
    %3931 = vmatpush2.msra.mxu0 0.0
    %3932 = vmatprep.subr.mxu0 0.0
    %3933 = vmatpush2.msra.mxu0 0.0
    %3934 = vmatprep.subr.mxu0 0.0
    %3935 = vmatpush2.msra.mxu0 0.0
    %3936 = vmatprep.subr.mxu0 0.0
    %3937 = vmatpush2.msra.mxu0 0.0
    %3938 = vmatprep.subr.mxu0 0.0
    %3939 = vmatpush2.msra.mxu0 0.0
    %3940 = vmatprep.subr.mxu0 0.0
    %3941 = vmatpush2.msra.mxu0 0.0
    %3942 = vmatprep.subr.mxu0 0.0
    %3943 = vmatpush2.msra.mxu0 0.0
    %3944 = vmatprep.subr.mxu0 0.0
    %3945 = vmatpush2.msra.mxu0 0.0
    %3946 = vmatprep.subr.mxu0 0.0
    %3947 = vmatpush2.msra.mxu0 0.0
    %3948 = vmatprep.subr.mxu0 0.0
    %3949 = vmatpush2.msra.mxu0 0.0
    %3950 = vmatprep.subr.mxu0 0.0
    %3951 = vmatpush2.msra.mxu0 0.0
    %3952 = vmatprep.subr.mxu0 0.0
    %3953 = vmatpush2.msra.mxu0 0.0
    %3954 = vmatprep.subr.mxu0 0.0
    %3955 = vmatpush2.msra.mxu0 0.0
    %3956 = vmatprep.subr.mxu0 0.0
    %3957 = vmatpush2.msra.mxu0 0.0
    %3958 = vmatprep.mubr.f32.mxu0 0.0
    %3959 = vmatmul.mubr.f32.gmra.mxu0 %v3892
    %v3960 = vpop.f32.mrf.mxu0
    %v3961 = vadd.f32 0.0, %v3960
    %v3962 = vpop.f32.mrf.mxu0
    %3963 = vdwg.mxu0
    %v3964 = vadd.f32 %v3888, %v3961
    %v3965 = vxor.u32 %v3887, 2147483648
    %v3966 = vmul.f32 %v3965, 1.442695
    %v3967 = vpow.pop %v3966
    %v3968 = vadd.f32 %v3967, 1.0
    %v3969 = vrcp.pop %v3968
    %v3970 = vmul.f32 1.0, %v3969
    %v3971 = vtanh.pop %v3887
    %v3972 = vmul.f32 %v3970, %v3780
    %3974 = vrot.lane.b32.xlu0 %v3971, 64
    %v3975 = vpop.permute.xlu0 %3974
    %v3977 = vmul.f32 %v3970, %v3975
    %3979 = vrot.lane.b32.xlu0 %v3977, 32
    %v3980 = vpop.permute.xlu0 %3979
    %v3982 = vadd.f32 %v3972, %v3980
    %v3983 = vtanh.pop %v3982
    %3985 = vrot.lane.b32.xlu0 %v3983, 64
    %v3986 = vpop.permute.xlu0 %3985
    %v3988 = vmul.f32 %v3970, %v3986
    %v3989 = vxor.u32 %v3964, 2147483648
    %v3990 = vmul.f32 %v3989, 1.442695
    %v3991 = vpow.pop %v3990
    %v3992 = vadd.f32 %v3991, 1.0
    %v3993 = vrcp.pop %v3992
    %v3994 = vmul.f32 1.0, %v3993
    %v3995 = vtanh.pop %v3964
    %v3996 = vmul.f32 %v3994, %v3804
    %3998 = vrot.lane.b32.xlu0 %v3995, 64
    %v3999 = vpop.permute.xlu0 %3998
    %v4001 = vmul.f32 %v3994, %v3999
    %4003 = vrot.lane.b32.xlu0 %v4001, 32
    %v4004 = vpop.permute.xlu0 %4003
    %v4006 = vadd.f32 %v3996, %v4004
    %v4007 = vtanh.pop %v4006
    %4009 = vrot.lane.b32.xlu0 %v4007, 64
    %v4010 = vpop.permute.xlu0 %4009
    %v4012 = vmul.f32 %v3994, %v4010
    %v4013 = vld [vmem:[%s2063] sm:$0xff]
    %4015 = vrot.lane.b32.xlu0 %v3988, 32
    %v4016 = vpop.permute.xlu0 %4015
    %v4017 = vsel %vm537, %v4016, 0
    %4019 = vmatprep.subr.mxu0 0.0
    %4020 = vmatpush1.msra.mxu0 0.0
    %4021 = vmatprep.subr.mxu0 0.0
    %4022 = vmatpush1.msra.mxu0 0.0
    %4023 = vmatprep.subr.mxu0 0.0
    %4024 = vmatpush1.msra.mxu0 0.0
    %4025 = vmatprep.subr.mxu0 0.0
    %4026 = vmatpush1.msra.mxu0 0.0
    %4027 = vmatprep.subr.mxu0 0.0
    %4028 = vmatpush1.msra.mxu0 0.0
    %4029 = vmatprep.subr.mxu0 0.0
    %4030 = vmatpush1.msra.mxu0 0.0
    %4031 = vmatprep.subr.mxu0 0.0
    %4032 = vmatpush1.msra.mxu0 0.0
    %4033 = vmatprep.subr.mxu0 0.0
    %4034 = vmatpush1.msra.mxu0 0.0
    %4035 = vmatprep.subr.mxu0 0.0
    %4036 = vmatpush1.msra.mxu0 0.0
    %4037 = vmatprep.subr.mxu0 0.0
    %4038 = vmatpush1.msra.mxu0 0.0
    %4039 = vmatprep.subr.mxu0 0.0
    %4040 = vmatpush1.msra.mxu0 0.0
    %4041 = vmatprep.subr.mxu0 0.0
    %4042 = vmatpush1.msra.mxu0 0.0
    %4043 = vmatprep.subr.mxu0 0.0
    %4044 = vmatpush1.msra.mxu0 %v2605
    %4045 = vmatprep.subr.mxu0 0.0
    %4046 = vmatpush1.msra.mxu0 %v2604
    %4047 = vmatprep.subr.mxu0 0.0
    %4048 = vmatpush1.msra.mxu0 %v2603
    %4049 = vmatprep.subr.mxu0 0.0
    %4050 = vmatpush1.msra.mxu0 %v2602
    %4051 = vmatprep.subr.mxu0 0.0
    %4052 = vmatpush2.msra.mxu0 0.0
    %4053 = vmatprep.subr.mxu0 0.0
    %4054 = vmatpush2.msra.mxu0 0.0
    %4055 = vmatprep.subr.mxu0 0.0
    %4056 = vmatpush2.msra.mxu0 0.0
    %4057 = vmatprep.subr.mxu0 0.0
    %4058 = vmatpush2.msra.mxu0 0.0
    %4059 = vmatprep.subr.mxu0 0.0
    %4060 = vmatpush2.msra.mxu0 0.0
    %4061 = vmatprep.subr.mxu0 0.0
    %4062 = vmatpush2.msra.mxu0 0.0
    %4063 = vmatprep.subr.mxu0 0.0
    %4064 = vmatpush2.msra.mxu0 0.0
    %4065 = vmatprep.subr.mxu0 0.0
    %4066 = vmatpush2.msra.mxu0 0.0
    %4067 = vmatprep.subr.mxu0 0.0
    %4068 = vmatpush2.msra.mxu0 0.0
    %4069 = vmatprep.subr.mxu0 0.0
    %4070 = vmatpush2.msra.mxu0 0.0
    %4071 = vmatprep.subr.mxu0 0.0
    %4072 = vmatpush2.msra.mxu0 0.0
    %4073 = vmatprep.subr.mxu0 0.0
    %4074 = vmatpush2.msra.mxu0 0.0
    %4075 = vmatprep.subr.mxu0 0.0
    %4076 = vmatpush2.msra.mxu0 0.0
    %4077 = vmatprep.subr.mxu0 0.0
    %4078 = vmatpush2.msra.mxu0 0.0
    %4079 = vmatprep.subr.mxu0 0.0
    %4080 = vmatpush2.msra.mxu0 0.0
    %4081 = vmatprep.subr.mxu0 0.0
    %4082 = vmatpush2.msra.mxu0 0.0
    %4083 = vmatprep.mubr.f32.mxu0 0.0
    %4084 = vmatmul.mubr.f32.gmra.mxu0 %v4017
    %v4085 = vpop.f32.mrf.mxu0
    %v4086 = vadd.f32 0.0, %v4085
    %v4087 = vpop.f32.mrf.mxu0
    %4088 = vdwg.mxu0
    %v4089 = vadd.f32 %v4013, %v4086
    %v4090 = vld [vmem:[#allocation3] sm:$0xff]
    %4092 = vrot.lane.b32.xlu0 %v4012, 32
    %v4093 = vpop.permute.xlu0 %4092
    %v4094 = vsel %vm537, %v4093, 0
    %4096 = vmatprep.subr.mxu0 0.0
    %4097 = vmatpush1.msra.mxu0 0.0
    %4098 = vmatprep.subr.mxu0 0.0
    %4099 = vmatpush1.msra.mxu0 0.0
    %4100 = vmatprep.subr.mxu0 0.0
    %4101 = vmatpush1.msra.mxu0 0.0
    %4102 = vmatprep.subr.mxu0 0.0
    %4103 = vmatpush1.msra.mxu0 0.0
    %4104 = vmatprep.subr.mxu0 0.0
    %4105 = vmatpush1.msra.mxu0 0.0
    %4106 = vmatprep.subr.mxu0 0.0
    %4107 = vmatpush1.msra.mxu0 0.0
    %4108 = vmatprep.subr.mxu0 0.0
    %4109 = vmatpush1.msra.mxu0 0.0
    %4110 = vmatprep.subr.mxu0 0.0
    %4111 = vmatpush1.msra.mxu0 0.0
    %4112 = vmatprep.subr.mxu0 0.0
    %4113 = vmatpush1.msra.mxu0 0.0
    %4114 = vmatprep.subr.mxu0 0.0
    %4115 = vmatpush1.msra.mxu0 0.0
    %4116 = vmatprep.subr.mxu0 0.0
    %4117 = vmatpush1.msra.mxu0 0.0
    %4118 = vmatprep.subr.mxu0 0.0
    %4119 = vmatpush1.msra.mxu0 0.0
    %4120 = vmatprep.subr.mxu0 0.0
    %4121 = vmatpush1.msra.mxu0 %v2681
    %4122 = vmatprep.subr.mxu0 0.0
    %4123 = vmatpush1.msra.mxu0 %v2680
    %4124 = vmatprep.subr.mxu0 0.0
    %4125 = vmatpush1.msra.mxu0 %v2679
    %4126 = vmatprep.subr.mxu0 0.0
    %4127 = vmatpush1.msra.mxu0 %v2678
    %4128 = vmatprep.subr.mxu0 0.0
    %4129 = vmatpush2.msra.mxu0 0.0
    %4130 = vmatprep.subr.mxu0 0.0
    %4131 = vmatpush2.msra.mxu0 0.0
    %4132 = vmatprep.subr.mxu0 0.0
    %4133 = vmatpush2.msra.mxu0 0.0
    %4134 = vmatprep.subr.mxu0 0.0
    %4135 = vmatpush2.msra.mxu0 0.0
    %4136 = vmatprep.subr.mxu0 0.0
    %4137 = vmatpush2.msra.mxu0 0.0
    %4138 = vmatprep.subr.mxu0 0.0
    %4139 = vmatpush2.msra.mxu0 0.0
    %4140 = vmatprep.subr.mxu0 0.0
    %4141 = vmatpush2.msra.mxu0 0.0
    %4142 = vmatprep.subr.mxu0 0.0
    %4143 = vmatpush2.msra.mxu0 0.0
    %4144 = vmatprep.subr.mxu0 0.0
    %4145 = vmatpush2.msra.mxu0 0.0
    %4146 = vmatprep.subr.mxu0 0.0
    %4147 = vmatpush2.msra.mxu0 0.0
    %4148 = vmatprep.subr.mxu0 0.0
    %4149 = vmatpush2.msra.mxu0 0.0
    %4150 = vmatprep.subr.mxu0 0.0
    %4151 = vmatpush2.msra.mxu0 0.0
    %4152 = vmatprep.subr.mxu0 0.0
    %4153 = vmatpush2.msra.mxu0 0.0
    %4154 = vmatprep.subr.mxu0 0.0
    %4155 = vmatpush2.msra.mxu0 0.0
    %4156 = vmatprep.subr.mxu0 0.0
    %4157 = vmatpush2.msra.mxu0 0.0
    %4158 = vmatprep.subr.mxu0 0.0
    %4159 = vmatpush2.msra.mxu0 0.0
    %4160 = vmatprep.mubr.f32.mxu0 0.0
    %4161 = vmatmul.mubr.f32.gmra.mxu0 %v4094
    %v4162 = vpop.f32.mrf.mxu0
    %v4163 = vadd.f32 0.0, %v4162
    %v4164 = vpop.f32.mrf.mxu0
    %4165 = vdwg.mxu0
    %v4166 = vadd.f32 %v4090, %v4163
    %v4167 = vxor.u32 %v4089, 2147483648
    %v4168 = vmul.f32 %v4167, 1.442695
    %v4169 = vpow.pop %v4168
    %v4170 = vadd.f32 %v4169, 1.0
    %v4171 = vrcp.pop %v4170
    %v4172 = vmul.f32 1.0, %v4171
    %v4173 = vtanh.pop %v4089
    %v4174 = vmul.f32 %v4172, %v3982
    %4176 = vrot.lane.b32.xlu0 %v4173, 64
    %v4177 = vpop.permute.xlu0 %4176
    %v4179 = vmul.f32 %v4172, %v4177
    %4181 = vrot.lane.b32.xlu0 %v4179, 32
    %v4182 = vpop.permute.xlu0 %4181
    %v4184 = vadd.f32 %v4174, %v4182
    %v4185 = vtanh.pop %v4184
    %4187 = vrot.lane.b32.xlu0 %v4185, 64
    %v4188 = vpop.permute.xlu0 %4187
    %v4190 = vmul.f32 %v4172, %v4188
    %v4191 = vxor.u32 %v4166, 2147483648
    %v4192 = vmul.f32 %v4191, 1.442695
    %v4193 = vpow.pop %v4192
    %v4194 = vadd.f32 %v4193, 1.0
    %v4195 = vrcp.pop %v4194
    %v4196 = vmul.f32 1.0, %v4195
    %v4197 = vtanh.pop %v4166
    %v4198 = vmul.f32 %v4196, %v4006
    %4200 = vrot.lane.b32.xlu0 %v4197, 64
    %v4201 = vpop.permute.xlu0 %4200
    %v4203 = vmul.f32 %v4196, %v4201
    %4205 = vrot.lane.b32.xlu0 %v4203, 32
    %v4206 = vpop.permute.xlu0 %4205
    %v4208 = vadd.f32 %v4198, %v4206
    %v4209 = vtanh.pop %v4208
    %4211 = vrot.lane.b32.xlu0 %v4209, 64
    %v4212 = vpop.permute.xlu0 %4211
    %v4214 = vmul.f32 %v4196, %v4212
    %v4215 = vld [vmem:[#allocation19] sm:$0xff]
    %v4216 = vld [vmem:[#allocation19 + $0x8] sm:$0xff]
    %v4217 = vld [vmem:[#allocation19 + $0x10] sm:$0xff]
    %v4218 = vld [vmem:[#allocation19 + $0x18] sm:$0xff]
    %v4219 = vld [vmem:[#allocation21] sm:$0xff]
    %v4220 = vld [vmem:[#allocation21 + $0x8] sm:$0xff]
    %v4221 = vld [vmem:[#allocation21 + $0x10] sm:$0xff]
    %v4222 = vld [vmem:[#allocation21 + $0x18] sm:$0xff]
    %4224 = vrot.lane.b32.xlu0 %v4214, 32
    %v4225 = vpop.permute.xlu0 %4224
    %v4226 = vsel %vm537, %v4225, 0
    %4228 = vmatprep.subr.mxu0 0.0
    %4229 = vmatpush1.msra.mxu0 0.0
    %4230 = vmatprep.subr.mxu0 0.0
    %4231 = vmatpush1.msra.mxu0 0.0
    %4232 = vmatprep.subr.mxu0 0.0
    %4233 = vmatpush1.msra.mxu0 0.0
    %4234 = vmatprep.subr.mxu0 0.0
    %4235 = vmatpush1.msra.mxu0 0.0
    %4236 = vmatprep.subr.mxu0 0.0
    %4237 = vmatpush1.msra.mxu0 0.0
    %4238 = vmatprep.subr.mxu0 0.0
    %4239 = vmatpush1.msra.mxu0 0.0
    %4240 = vmatprep.subr.mxu0 0.0
    %4241 = vmatpush1.msra.mxu0 0.0
    %4242 = vmatprep.subr.mxu0 0.0
    %4243 = vmatpush1.msra.mxu0 0.0
    %4244 = vmatprep.subr.mxu0 0.0
    %4245 = vmatpush1.msra.mxu0 0.0
    %4246 = vmatprep.subr.mxu0 0.0
    %4247 = vmatpush1.msra.mxu0 0.0
    %4248 = vmatprep.subr.mxu0 0.0
    %4249 = vmatpush1.msra.mxu0 0.0
    %4250 = vmatprep.subr.mxu0 0.0
    %4251 = vmatpush1.msra.mxu0 0.0
    %4252 = vmatprep.subr.mxu0 0.0
    %4253 = vmatpush1.msra.mxu0 %v4222
    %4254 = vmatprep.subr.mxu0 0.0
    %4255 = vmatpush1.msra.mxu0 %v4221
    %4256 = vmatprep.subr.mxu0 0.0
    %4257 = vmatpush1.msra.mxu0 %v4220
    %4258 = vmatprep.subr.mxu0 0.0
    %4259 = vmatpush1.msra.mxu0 %v4219
    %4260 = vmatprep.subr.mxu0 0.0
    %4261 = vmatpush2.msra.mxu0 0.0
    %4262 = vmatprep.subr.mxu0 0.0
    %4263 = vmatpush2.msra.mxu0 0.0
    %4264 = vmatprep.subr.mxu0 0.0
    %4265 = vmatpush2.msra.mxu0 0.0
    %4266 = vmatprep.subr.mxu0 0.0
    %4267 = vmatpush2.msra.mxu0 0.0
    %4268 = vmatprep.subr.mxu0 0.0
    %4269 = vmatpush2.msra.mxu0 0.0
    %4270 = vmatprep.subr.mxu0 0.0
    %4271 = vmatpush2.msra.mxu0 0.0
    %4272 = vmatprep.subr.mxu0 0.0
    %4273 = vmatpush2.msra.mxu0 0.0
    %4274 = vmatprep.subr.mxu0 0.0
    %4275 = vmatpush2.msra.mxu0 0.0
    %4276 = vmatprep.subr.mxu0 0.0
    %4277 = vmatpush2.msra.mxu0 0.0
    %4278 = vmatprep.subr.mxu0 0.0
    %4279 = vmatpush2.msra.mxu0 0.0
    %4280 = vmatprep.subr.mxu0 0.0
    %4281 = vmatpush2.msra.mxu0 0.0
    %4282 = vmatprep.subr.mxu0 0.0
    %4283 = vmatpush2.msra.mxu0 0.0
    %4284 = vmatprep.subr.mxu0 0.0
    %4285 = vmatpush2.msra.mxu0 0.0
    %4286 = vmatprep.subr.mxu0 0.0
    %4287 = vmatpush2.msra.mxu0 0.0
    %4288 = vmatprep.subr.mxu0 0.0
    %4289 = vmatpush2.msra.mxu0 0.0
    %4290 = vmatprep.subr.mxu0 0.0
    %4291 = vmatpush2.msra.mxu0 0.0
    %4292 = vmatprep.mubr.f32.mxu0 0.0
    %4293 = vmatmul.mubr.f32.gmra.mxu0 %v4226
    %v4294 = vpop.f32.mrf.mxu0
    %v4295 = vadd.f32 0.0, %v4294
    %v4296 = vpop.f32.mrf.mxu0
    %4297 = vdwg.mxu0
    %4299 = vrot.lane.b32.xlu0 %v4190, 32
    %v4300 = vpop.permute.xlu0 %4299
    %v4301 = vsel %vm537, %v4300, 0
    %4303 = vmatprep.subr.mxu0 0.0
    %4304 = vmatpush1.msra.mxu0 0.0
    %4305 = vmatprep.subr.mxu0 0.0
    %4306 = vmatpush1.msra.mxu0 0.0
    %4307 = vmatprep.subr.mxu0 0.0
    %4308 = vmatpush1.msra.mxu0 0.0
    %4309 = vmatprep.subr.mxu0 0.0
    %4310 = vmatpush1.msra.mxu0 0.0
    %4311 = vmatprep.subr.mxu0 0.0
    %4312 = vmatpush1.msra.mxu0 0.0
    %4313 = vmatprep.subr.mxu0 0.0
    %4314 = vmatpush1.msra.mxu0 0.0
    %4315 = vmatprep.subr.mxu0 0.0
    %4316 = vmatpush1.msra.mxu0 0.0
    %4317 = vmatprep.subr.mxu0 0.0
    %4318 = vmatpush1.msra.mxu0 0.0
    %4319 = vmatprep.subr.mxu0 0.0
    %4320 = vmatpush1.msra.mxu0 0.0
    %4321 = vmatprep.subr.mxu0 0.0
    %4322 = vmatpush1.msra.mxu0 0.0
    %4323 = vmatprep.subr.mxu0 0.0
    %4324 = vmatpush1.msra.mxu0 0.0
    %4325 = vmatprep.subr.mxu0 0.0
    %4326 = vmatpush1.msra.mxu0 0.0
    %4327 = vmatprep.subr.mxu0 0.0
    %4328 = vmatpush1.msra.mxu0 %v4218
    %4329 = vmatprep.subr.mxu0 0.0
    %4330 = vmatpush1.msra.mxu0 %v4217
    %4331 = vmatprep.subr.mxu0 0.0
    %4332 = vmatpush1.msra.mxu0 %v4216
    %4333 = vmatprep.subr.mxu0 0.0
    %4334 = vmatpush1.msra.mxu0 %v4215
    %4335 = vmatprep.subr.mxu0 0.0
    %4336 = vmatpush2.msra.mxu0 0.0
    %4337 = vmatprep.subr.mxu0 0.0
    %4338 = vmatpush2.msra.mxu0 0.0
    %4339 = vmatprep.subr.mxu0 0.0
    %4340 = vmatpush2.msra.mxu0 0.0
    %4341 = vmatprep.subr.mxu0 0.0
    %4342 = vmatpush2.msra.mxu0 0.0
    %4343 = vmatprep.subr.mxu0 0.0
    %4344 = vmatpush2.msra.mxu0 0.0
    %4345 = vmatprep.subr.mxu0 0.0
    %4346 = vmatpush2.msra.mxu0 0.0
    %4347 = vmatprep.subr.mxu0 0.0
    %4348 = vmatpush2.msra.mxu0 0.0
    %4349 = vmatprep.subr.mxu0 0.0
    %4350 = vmatpush2.msra.mxu0 0.0
    %4351 = vmatprep.subr.mxu0 0.0
    %4352 = vmatpush2.msra.mxu0 0.0
    %4353 = vmatprep.subr.mxu0 0.0
    %4354 = vmatpush2.msra.mxu0 0.0
    %4355 = vmatprep.subr.mxu0 0.0
    %4356 = vmatpush2.msra.mxu0 0.0
    %4357 = vmatprep.subr.mxu0 0.0
    %4358 = vmatpush2.msra.mxu0 0.0
    %4359 = vmatprep.subr.mxu0 0.0
    %4360 = vmatpush2.msra.mxu0 0.0
    %4361 = vmatprep.subr.mxu0 0.0
    %4362 = vmatpush2.msra.mxu0 0.0
    %4363 = vmatprep.subr.mxu0 0.0
    %4364 = vmatpush2.msra.mxu0 0.0
    %4365 = vmatprep.subr.mxu0 0.0
    %4366 = vmatpush2.msra.mxu0 0.0
    %4367 = vmatprep.mubr.f32.mxu0 0.0
    %4368 = vmatmul.mubr.f32.gmra.mxu0 %v4301
    %v4369 = vpop.f32.mrf.mxu0
    %v4370 = vadd.f32 %v4295, %v4369
    %v4371 = vpop.f32.mrf.mxu0
    %4372 = vdwg.mxu0
    %v4373 = vld [vmem:[#allocation22] sm:$0x1]
    %v4375 = vlaneseq
    %v4376 = vshrl.u32 %v4375, 7
    %v4377 = vsub.s32 0, %v4376
    %v4378 = vrot.slane %v4373, %v4377
    %v4380 = vadd.f32 %v4370, %v4378
    %v4381 = vmax.f32 %v4380, 0.0
    %v4382 = vld [vmem:[%s16] sm:$0xff]
    %v4383 = vld [vmem:[%s16 + $0x8] sm:$0xff]
    %v4384 = vld [vmem:[%s16 + $0x10] sm:$0xff]
    %v4385 = vld [vmem:[%s16 + $0x18] sm:$0xff]
    %v4386 = vld [vmem:[#allocation24] sm:$0x1]
    %v4388 = vlaneseq
    %v4389 = vshrl.u32 %v4388, 7
    %v4390 = vsub.s32 0, %v4389
    %v4391 = vrot.slane %v4386, %v4390
    %v4394 = vsel %vm537, %v4381, 0
    %4396 = vmatprep.subr.mxu0 0.0
    %4397 = vmatpush1.msra.mxu0 0.0
    %4398 = vmatprep.subr.mxu0 0.0
    %4399 = vmatpush1.msra.mxu0 0.0
    %4400 = vmatprep.subr.mxu0 0.0
    %4401 = vmatpush1.msra.mxu0 0.0
    %4402 = vmatprep.subr.mxu0 0.0
    %4403 = vmatpush1.msra.mxu0 0.0
    %4404 = vmatprep.subr.mxu0 0.0
    %4405 = vmatpush1.msra.mxu0 0.0
    %4406 = vmatprep.subr.mxu0 0.0
    %4407 = vmatpush1.msra.mxu0 0.0
    %4408 = vmatprep.subr.mxu0 0.0
    %4409 = vmatpush1.msra.mxu0 0.0
    %4410 = vmatprep.subr.mxu0 0.0
    %4411 = vmatpush1.msra.mxu0 0.0
    %4412 = vmatprep.subr.mxu0 0.0
    %4413 = vmatpush1.msra.mxu0 0.0
    %4414 = vmatprep.subr.mxu0 0.0
    %4415 = vmatpush1.msra.mxu0 0.0
    %4416 = vmatprep.subr.mxu0 0.0
    %4417 = vmatpush1.msra.mxu0 0.0
    %4418 = vmatprep.subr.mxu0 0.0
    %4419 = vmatpush1.msra.mxu0 0.0
    %4420 = vmatprep.subr.mxu0 0.0
    %4421 = vmatpush1.msra.mxu0 %v4385
    %4422 = vmatprep.subr.mxu0 0.0
    %4423 = vmatpush1.msra.mxu0 %v4384
    %4424 = vmatprep.subr.mxu0 0.0
    %4425 = vmatpush1.msra.mxu0 %v4383
    %4426 = vmatprep.subr.mxu0 0.0
    %4427 = vmatpush1.msra.mxu0 %v4382
    %4428 = vmatprep.subr.mxu0 0.0
    %4429 = vmatpush2.msra.mxu0 0.0
    %4430 = vmatprep.subr.mxu0 0.0
    %4431 = vmatpush2.msra.mxu0 0.0
    %4432 = vmatprep.subr.mxu0 0.0
    %4433 = vmatpush2.msra.mxu0 0.0
    %4434 = vmatprep.subr.mxu0 0.0
    %4435 = vmatpush2.msra.mxu0 0.0
    %4436 = vmatprep.subr.mxu0 0.0
    %4437 = vmatpush2.msra.mxu0 0.0
    %4438 = vmatprep.subr.mxu0 0.0
    %4439 = vmatpush2.msra.mxu0 0.0
    %4440 = vmatprep.subr.mxu0 0.0
    %4441 = vmatpush2.msra.mxu0 0.0
    %4442 = vmatprep.subr.mxu0 0.0
    %4443 = vmatpush2.msra.mxu0 0.0
    %4444 = vmatprep.subr.mxu0 0.0
    %4445 = vmatpush2.msra.mxu0 0.0
    %4446 = vmatprep.subr.mxu0 0.0
    %4447 = vmatpush2.msra.mxu0 0.0
    %4448 = vmatprep.subr.mxu0 0.0
    %4449 = vmatpush2.msra.mxu0 0.0
    %4450 = vmatprep.subr.mxu0 0.0
    %4451 = vmatpush2.msra.mxu0 0.0
    %4452 = vmatprep.subr.mxu0 0.0
    %4453 = vmatpush2.msra.mxu0 0.0
    %4454 = vmatprep.subr.mxu0 0.0
    %4455 = vmatpush2.msra.mxu0 0.0
    %4456 = vmatprep.subr.mxu0 0.0
    %4457 = vmatpush2.msra.mxu0 0.0
    %4458 = vmatprep.subr.mxu0 0.0
    %4459 = vmatpush2.msra.mxu0 0.0
    %4460 = vmatprep.mubr.f32.mxu0 0.0
    %4461 = vmatmul.mubr.f32.gmra.mxu0 %v4394
    %v4462 = vpop.f32.mrf.mxu0
    %v4463 = vadd.f32 %v4391, %v4462
    %v4464 = vpop.f32.mrf.mxu0
    %4465 = vdwg.mxu0
    %vm4466 = vcmask 31744
    %4467 = vst.msk [vmem:[%s18] sm:$0xff] %vm4466, %v4463
    // Predicated region
    $region126: #{classification_model_forward_prepared.1} parent=1 // pred_check
      _
    $region127: #{classification_model_forward_prepared.1} parent=1 // pred_check_branch
      %4469 = sbr.rel (0) target = $region129
    $region128: #{classification_model_forward_prepared.1} parent=1 // pred_region
      _
    $region129: #{classification_model_forward_prepared.1} parent=1 // pred_fallthru
      _
    // Predicated region
    $region130: #{classification_model_forward_prepared.1} parent=1 // pred_check
      _
    $region131: #{classification_model_forward_prepared.1} parent=1 // pred_check_branch
      %4471 = sbr.rel (0) target = $region133
    $region132: #{classification_model_forward_prepared.1} parent=1 // pred_region
      _
    $region133: #{classification_model_forward_prepared.1} parent=1 // pred_fallthru
      _
    %4472 = vsyncpa [#allocation6], 1
    %4473 = vsyncpa [#allocation8], 1
    %4474 = vsyncpa [#allocation11], 1
    %4475 = vsyncpa [#allocation14], 1
    %4476 = vsyncpa [#allocation17], 1
    %4477 = vsyncpa [#allocation20], 1
    %4478 = vsyncpa [#allocation23], 1

</llo_original>
